<compile_context>
chip_gen: v6e
topology: v6e:2x2x1
jax: 0.10.0
libtpu: 0.0.40
codegen_flags: <defaults>
</compile_context>

<pallas_src>
import functools
import numpy as np
import jax
import jax.numpy as jnp
from jax import lax
from jax.experimental import pallas as pl
from jax.experimental.pallas import tpu as pltpu

NEG_BIG = -1e30


def _round_up(n, m):
    return ((n + m - 1) // m) * m


def _pad_rows(x, rows):
    if x.shape[0] == rows:
        return x
    return jnp.concatenate(
        [x, jnp.zeros((rows - x.shape[0], x.shape[1]), x.dtype)], axis=0)


# ----------------------------------------------------------------------------
# Fused kernel: one grid step = one block of SB sentences.
#   in-kernel embedding gather (one-hot MXU matmul, projection pre-folded)
#   -> char-LSTM over T steps for all S*SB words in lockstep (length-masked)
#   -> word-LSTM over S positions for SB sentences in lockstep
#   -> hidden2tag + log_softmax (lane-padded output slab)
# Row ordering inside a block: char rows (t, s, sb); word rows (s, sb).
# ----------------------------------------------------------------------------
def _fused_tagger_kernel(cids_ref, wids_ref, lens_ref,
                         wc_ref, ww_ref, wo_ref, out_ref,
                         *, T, S, SB, Hc, Hw, Vc, Vw):
    f32 = jnp.float32
    SSB = S * SB

    # ---- unpack weight slabs (static, sublane-aligned views) ----
    char_tbl = wc_ref[0:Vc, :]                         # (Vc, 4Hc) = char_emb @ W_ih + b
    cw_hh = wc_ref[Vc:Vc + Hc, :]                      # (Hc, 4Hc)
    word_tbl = ww_ref[0:Vw, :]                         # (Vw, 4Hw) = word_emb @ W_ih[:Ew] + b
    w_ih_c = ww_ref[Vw:Vw + Hc, :]                     # (Hc, 4Hw) char-half of word W_ih
    ww_hh = ww_ref[Vw + Hc:Vw + Hc + Hw, :]            # (Hw, 4Hw)
    ow = wo_ref[0:Hw, :]                               # (Hw, Vp)
    ob = wo_ref[Hw:Hw + 1, :]                          # (1, Vp)   pad cols = -1e30

    # ---- in-kernel embedding gathers: one-hot @ pre-projected table (MXU) ----
    cids = cids_ref[...]                                               # (T*SSB, 1) int32
    oh_c = (cids == lax.broadcasted_iota(jnp.int32, (T * SSB, Vc), 1)).astype(f32)
    gates_xc = jnp.dot(oh_c, char_tbl, preferred_element_type=f32)     # (T*SSB, 4Hc)

    wids = wids_ref[...]                                               # (SSB, 1) int32
    oh_w = (wids == lax.broadcasted_iota(jnp.int32, (SSB, Vw), 1)).astype(f32)
    gxw_word = jnp.dot(oh_w, word_tbl, preferred_element_type=f32)     # (SSB, 4Hw)

    # ---- char LSTM: T steps, all S*SB words of the block in lockstep ----
    lens_b = jnp.broadcast_to(lens_ref[...], (SSB, Hc))                # hoisted broadcast
    h = jnp.zeros((SSB, Hc), f32)
    c = jnp.zeros((SSB, Hc), f32)
    for t in range(T):                                                 # static unroll
        g = gates_xc[t * SSB:(t + 1) * SSB, :] + jnp.dot(
            h, cw_hh, preferred_element_type=f32)                      # (SSB, 4Hc)
        i_f = jax.nn.sigmoid(g[:, 0:2 * Hc])                           # i,f: one EUP slab
        g_g = jnp.tanh(g[:, 2 * Hc:3 * Hc])
        o_g = jax.nn.sigmoid(g[:, 3 * Hc:4 * Hc])
        c_new = i_f[:, Hc:2 * Hc] * c + i_f[:, 0:Hc] * g_g
        h_new = o_g * jnp.tanh(c_new)
        valid = lens_b > t                                             # cmp vs. scalar only
        h = jnp.where(valid, h_new, h)
        c = jnp.where(valid, c_new, c)
    char_h = h                                                         # (SSB, Hc)

    # ---- word LSTM: S steps, SB sentences in lockstep ----
    gates_xw = gxw_word + jnp.dot(char_h, w_ih_c,
                                  preferred_element_type=f32)          # (SSB, 4Hw)
    hw = jnp.zeros((SB, Hw), f32)
    cw = jnp.zeros((SB, Hw), f32)
    hs_rows = []
    for s in range(S):                                                 # static unroll
        g = gates_xw[s * SB:(s + 1) * SB, :] + jnp.dot(
            hw, ww_hh, preferred_element_type=f32)                     # (SB, 4Hw)
        i_f = jax.nn.sigmoid(g[:, 0:2 * Hw])
        g_g = jnp.tanh(g[:, 2 * Hw:3 * Hw])
        o_g = jax.nn.sigmoid(g[:, 3 * Hw:4 * Hw])
        cw = i_f[:, Hw:2 * Hw] * cw + i_f[:, 0:Hw] * g_g
        hw = o_g * jnp.tanh(cw)
        hs_rows.append(hw)                                             # stays in vregs
    hs = jnp.concatenate(hs_rows, axis=0)                              # (SSB, Hw), (s,sb)

    # ---- hidden2tag + log_softmax (lane-dense padded slab) ----
    logits = jnp.dot(hs, ow, preferred_element_type=f32) + ob          # (SSB, Vp)
    m = jnp.max(logits, axis=1, keepdims=True)
    z = logits - m
    lse = jnp.log(jnp.sum(jnp.exp(z), axis=1, keepdims=True))
    out_ref[...] = z - lse


# ----------------------------------------------------------------------------
# Wrapper: layout prep (pure int/weight plumbing) + pallas_call.
# ----------------------------------------------------------------------------
def dual_lstm_tagger_forward(sents, words_padded, word_lens, p,
                             sentences_per_block=8):
    """Batched forward.  sents:(B,S) int32 word ids, words_padded:(B,S,T) int32
    char ids, word_lens:(B,S) int32 true word lengths.  Returns (B, S, tag_vocab)
    log-softmax scores; per-sentence semantics identical to the PyTorch module."""
    sents = jnp.asarray(sents, jnp.int32)
    words_padded = jnp.asarray(words_padded, jnp.int32)
    word_lens = jnp.asarray(word_lens, jnp.int32)

    B, S = sents.shape
    T = words_padded.shape[2]
    SB = max(1, min(sentences_per_block, B))
    while B % SB:                                   # pick a divisor of B
        SB -= 1
    NB = B // SB
    SSB = S * SB

    Ew = p["word_emb"].shape[1]
    Hc = p["char_w_hh"].shape[0]
    Hw = p["word_w_hh"].shape[0]
    V = p["out_w"].shape[1]
    Vc = _round_up(p["char_emb"].shape[0], 8)       # padded vocab rows (never indexed)
    Vw = _round_up(p["word_emb"].shape[0], 8)
    Vp = _round_up(V, 128)                          # lane-dense output width
    f32 = jnp.float32

    # --- fold embedding tables with LSTM input projections (+ biases) ---
    # row id of (emb @ W_ih + b) == emb[id] @ W_ih + b; one-hot rows sum to 1.
    # (In serving these slabs would be precomputed once and cached.)
    char_tbl = _pad_rows(p["char_emb"] @ p["char_w_ih"] + p["char_b"], Vc)          # (Vc,4Hc)
    word_tbl = _pad_rows(p["word_emb"] @ p["word_w_ih"][:Ew, :] + p["word_b"], Vw)  # (Vw,4Hw)

    # --- lane-pad hidden2tag: zero weight cols, -1e30 bias cols ---
    ow_pad = jnp.concatenate([p["out_w"], jnp.zeros((Hw, Vp - V), f32)], axis=1)
    ob_pad = jnp.concatenate([p["out_b"], jnp.full((1, Vp - V), NEG_BIG, f32)], axis=1)

    # --- pack weights into 3 VMEM-resident slabs (8-row-aligned segments) ---
    slab_c = jnp.concatenate([char_tbl, p["char_w_hh"]], axis=0)                    # (Vc+Hc,4Hc)
    slab_w = jnp.concatenate([word_tbl, p["word_w_ih"][Ew:, :],
                              p["word_w_hh"]], axis=0)                              # (Vw+Hc+Hw,4Hw)
    slab_o = jnp.concatenate([ow_pad, _pad_rows(ob_pad, 8)], axis=0)                # (Hw+8,Vp)

    # --- id layout: rows (block, t, s, sb) for chars, (block, s, sb) for words ---
    cids = words_padded.reshape(NB, SB, S, T).transpose(0, 3, 2, 1).reshape(NB * T * SSB, 1)
    wids = sents.reshape(NB, SB, S).transpose(0, 2, 1).reshape(NB * SSB, 1)
    lens = word_lens.reshape(NB, SB, S).transpose(0, 2, 1).reshape(NB * SSB, 1)

    kernel = functools.partial(_fused_tagger_kernel,
                               T=T, S=S, SB=SB, Hc=Hc, Hw=Hw, Vc=Vc, Vw=Vw)

    out = pl.pallas_call(
        kernel,
        out_shape=jax.ShapeDtypeStruct((NB * SSB, Vp), f32),
        grid_spec=pltpu.PrefetchScalarGridSpec(
            num_scalar_prefetch=0,
            grid=(NB,),
            in_specs=[
                pl.BlockSpec((T * SSB, 1), lambda g: (g, 0)),      # char ids  (per block)
                pl.BlockSpec((SSB, 1), lambda g: (g, 0)),          # word ids  (per block)
                pl.BlockSpec((SSB, 1), lambda g: (g, 0)),          # word lengths
                pl.BlockSpec(slab_c.shape, lambda g: (0, 0)),      # weights: fetched once,
                pl.BlockSpec(slab_w.shape, lambda g: (0, 0)),      # stay VMEM-resident
                pl.BlockSpec(slab_o.shape, lambda g: (0, 0)),      # across the grid
            ],
            out_specs=pl.BlockSpec((SSB, Vp), lambda g: (g, 0)),
        ),
        compiler_params=pltpu.CompilerParams(
            dimension_semantics=("parallel",)),     # v7x: shard sentence blocks over 2 TCs
    )(cids, wids, lens, slab_c, slab_w, slab_o)

    # layout plumbing: rows (block, s, sb) -> (B, S, V)
    out = out.reshape(NB, S, SB, Vp).transpose(0, 2, 1, 3).reshape(B, S, Vp)
    return out[:, :, :V]


# ----------------------------------------------------------------------------
# Pure-JAX reference (mirrors the PyTorch forward, one sentence) for verification.
# ----------------------------------------------------------------------------
def _lstm_scan(xs, w_ih, w_hh, b, H):
    def step(carry, x):
        h, c = carry
        gates = x @ w_ih + h @ w_hh + b[0]
        i_g = jax.nn.sigmoid(gates[0 * H:1 * H])
        f_g = jax.nn.sigmoid(gates[1 * H:2 * H])
        g_g = jnp.tanh(gates[2 * H:3 * H])
        o_g = jax.nn.sigmoid(gates[3 * H:4 * H])
        c_new = f_g * c + i_g * g_g
        h_new = o_g * jnp.tanh(c_new)
        return (h_new, c_new), h_new
    h0 = jnp.zeros((H,), jnp.float32)
    (hT, _), hs = lax.scan(step, (h0, h0), xs)
    return hT, hs


def reference_forward_single(sent_np, words_padded_np, word_lens_np, p):
    Hc = p["char_w_hh"].shape[0]
    Hw = p["word_w_hh"].shape[0]
    embeds = p["word_emb"][sent_np]
    char_finals = []
    for s in range(sent_np.shape[0]):
        L = int(word_lens_np[s])
        ce = p["char_emb"][words_padded_np[s, :L]]
        hT, _ = _lstm_scan(ce, p["char_w_ih"], p["char_w_hh"], p["char_b"], Hc)
        char_finals.append(hT)
    char_h = jnp.stack(char_finals)
    combined = jnp.concatenate([embeds, char_h], axis=1)
    _, hs = _lstm_scan(combined, p["word_w_ih"], p["word_w_hh"], p["word_b"], Hw)
    logits = hs @ p["out_w"] + p["out_b"][0]
    return jax.nn.log_softmax(logits, axis=1)


# ----------------------------------------------------------------------------
if __name__ == "__main__":
    # Hyperparameters (small, consistent with the module's __init__)
    word_embedding_dim = 16
    word_hidden_dim = 32
    char_embedding_dim = 8
    char_hidden_dim = 16
    word_vocab_size = 50
    char_vocab_size = 30
    tag_vocab_size = 10
    num_sentences = 16     # batched inference (2 grid steps of 8 sentences)
    seq_len = 8            # words per sentence
    max_word_len = 6       # padded chars per word

    key = jax.random.PRNGKey(0)
    ks = jax.random.split(key, 16)

    def init(k, shape, scale=0.1):
        return scale * jax.random.normal(k, shape, jnp.float32)

    D_in = word_embedding_dim + char_hidden_dim
    params = {
        "word_emb": init(ks[0], (word_vocab_size, word_embedding_dim)),
        "char_emb": init(ks[1], (char_vocab_size, char_embedding_dim)),
        # char LSTM (PyTorch weight_ih_l0/weight_hh_l0 transposed, biases summed; gates i,f,g,o)
        "char_w_ih": init(ks[2], (char_embedding_dim, 4 * char_hidden_dim)),
        "char_w_hh": init(ks[3], (char_hidden_dim, 4 * char_hidden_dim)),
        "char_b": init(ks[4], (1, 4 * char_hidden_dim)) + init(ks[5], (1, 4 * char_hidden_dim)),
        # word LSTM (input = concat(word_emb, char_h))
        "word_w_ih": init(ks[6], (D_in, 4 * word_hidden_dim)),
        "word_w_hh": init(ks[7], (word_hidden_dim, 4 * word_hidden_dim)),
        "word_b": init(ks[8], (1, 4 * word_hidden_dim)) + init(ks[9], (1, 4 * word_hidden_dim)),
        # hidden2tag linear
        "out_w": init(ks[10], (word_hidden_dim, tag_vocab_size)),
        "out_b": init(ks[11], (1, tag_vocab_size)),
    }

    # Deterministic inputs: a batch of sentences of word ids, per-word char-id
    # sequences (padded to max_word_len) and per-word true lengths.
    sents = jax.random.randint(ks[12], (num_sentences, seq_len), 0,
                               word_vocab_size, jnp.int32)
    words_padded = jax.random.randint(ks[13], (num_sentences, seq_len, max_word_len),
                                      0, char_vocab_size, jnp.int32)
    word_lens = jax.random.randint(ks[14], (num_sentences, seq_len), 1,
                                   max_word_len + 1, jnp.int32)

    fwd = jax.jit(lambda s, w, l: dual_lstm_tagger_forward(s, w, l, params))
    out = jax.block_until_ready(fwd(sents, words_padded, word_lens))
    assert out.shape == (num_sentences, seq_len, tag_vocab_size)

    sents_np = np.asarray(sents)
    words_np = np.asarray(words_padded)
    lens_np = np.asarray(word_lens)
    out_np = np.asarray(out)
    for b in range(num_sentences):
        ref = reference_forward_single(sents_np[b], words_np[b], lens_np[b], params)
        ref = np.asarray(jax.block_until_ready(ref))
        if not np.allclose(out_np[b], ref, atol=1e-4, rtol=1e-4):
            raise AssertionError(f"Pallas kernel output mismatch at sentence {b}")

    print("KERNEL_OK")
</pallas_src>

<mosaic_0001>
module attributes {stable_mosaic.version = 11 : i64} {
  func.func @_fused_tagger_kernel(%arg0: i32, %arg1: memref<384x1xi32, #tpu.memory_space<vmem>>, %arg2: memref<64x1xi32, #tpu.memory_space<vmem>>, %arg3: memref<64x1xi32, #tpu.memory_space<vmem>>, %arg4: memref<48x64xf32, #tpu.memory_space<vmem>>, %arg5: memref<104x128xf32, #tpu.memory_space<vmem>>, %arg6: memref<40x128xf32, #tpu.memory_space<vmem>>, %arg7: memref<64x128xf32, #tpu.memory_space<vmem>>) attributes {dimension_semantics = [#tpu.dimension_semantics<parallel>], iteration_bounds = array<i64: 2>, scalar_prefetch = 0 : i64, scratch_operands = 0 : i64, tpu.core_type = #tpu.core_type<tc>, window_params = [{transform_indices = @transform_0, window_bounds = array<i64: 384, 1>}, {transform_indices = @transform_1, window_bounds = array<i64: 64, 1>}, {transform_indices = @transform_2, window_bounds = array<i64: 64, 1>}, {pipeline_mode = #tpu.pipeline_mode<synchronous>, transform_indices = @transform_3, window_bounds = array<i64: 48, 64>}, {pipeline_mode = #tpu.pipeline_mode<synchronous>, transform_indices = @transform_4, window_bounds = array<i64: 104, 128>}, {pipeline_mode = #tpu.pipeline_mode<synchronous>, transform_indices = @transform_5, window_bounds = array<i64: 40, 128>}, {transform_indices = @transform_6, window_bounds = array<i64: 64, 128>}]} {
    %c0 = arith.constant 0 : index
    %c0_0 = arith.constant 0 : index
    %0 = vector.load %arg4[%c0, %c0_0] : memref<48x64xf32, #tpu.memory_space<vmem>>, vector<32x64xf32>
    %c32 = arith.constant 32 : index
    %c0_1 = arith.constant 0 : index
    %1 = vector.load %arg4[%c32, %c0_1] : memref<48x64xf32, #tpu.memory_space<vmem>>, vector<16x64xf32>
    %c0_2 = arith.constant 0 : index
    %c0_3 = arith.constant 0 : index
    %2 = vector.load %arg5[%c0_2, %c0_3] : memref<104x128xf32, #tpu.memory_space<vmem>>, vector<56x128xf32>
    %c56 = arith.constant 56 : index
    %c0_4 = arith.constant 0 : index
    %3 = vector.load %arg5[%c56, %c0_4] : memref<104x128xf32, #tpu.memory_space<vmem>>, vector<16x128xf32>
    %c72 = arith.constant 72 : index
    %c0_5 = arith.constant 0 : index
    %4 = vector.load %arg5[%c72, %c0_5] : memref<104x128xf32, #tpu.memory_space<vmem>>, vector<32x128xf32>
    %c0_6 = arith.constant 0 : index
    %c0_7 = arith.constant 0 : index
    %5 = vector.load %arg6[%c0_6, %c0_7] : memref<40x128xf32, #tpu.memory_space<vmem>>, vector<32x128xf32>
    %c32_8 = arith.constant 32 : index
    %c0_9 = arith.constant 0 : index
    %6 = vector.load %arg6[%c32_8, %c0_9] : memref<40x128xf32, #tpu.memory_space<vmem>>, vector<1x128xf32>
    %c0_10 = arith.constant 0 : index
    %c0_11 = arith.constant 0 : index
    %7 = vector.load %arg1[%c0_10, %c0_11] : memref<384x1xi32, #tpu.memory_space<vmem>>, vector<384x1xi32>
    %8 = tpu.iota {dimensions = array<i32: 1>} : vector<384x32xi32>
    %9 = vector.broadcast %7 : vector<384x1xi32> to vector<384x32xi32>
    %10 = arith.cmpi eq, %9, %8 : vector<384x32xi32>
    %11 = arith.extui %10 : vector<384x32xi1> to vector<384x32xi32>
    %12 = arith.sitofp %11 : vector<384x32xi32> to vector<384x32xf32>
    %cst = arith.constant dense<0.000000e+00> : vector<384x64xf32>
    %13 = tpu.matmul %12, %0, %cst {dimension_numbers = #tpu.dot_dimension_numbers<[1], [0], [0], [1], [0, 0, 1, 1], [], []>} : vector<384x32xf32>, vector<32x64xf32>, vector<384x64xf32> -> vector<384x64xf32>
    %c0_12 = arith.constant 0 : index
    %c0_13 = arith.constant 0 : index
    %14 = vector.load %arg2[%c0_12, %c0_13] : memref<64x1xi32, #tpu.memory_space<vmem>>, vector<64x1xi32>
    %15 = tpu.iota {dimensions = array<i32: 1>} : vector<64x56xi32>
    %16 = vector.broadcast %14 : vector<64x1xi32> to vector<64x56xi32>
    %17 = arith.cmpi eq, %16, %15 : vector<64x56xi32>
    %18 = arith.extui %17 : vector<64x56xi1> to vector<64x56xi32>
    %19 = arith.sitofp %18 : vector<64x56xi32> to vector<64x56xf32>
    %cst_14 = arith.constant dense<0.000000e+00> : vector<64x128xf32>
    %20 = tpu.matmul %19, %2, %cst_14 {dimension_numbers = #tpu.dot_dimension_numbers<[1], [0], [0], [1], [0, 0, 1, 1], [], []>} : vector<64x56xf32>, vector<56x128xf32>, vector<64x128xf32> -> vector<64x128xf32>
    %c0_15 = arith.constant 0 : index
    %c0_16 = arith.constant 0 : index
    %21 = vector.load %arg3[%c0_15, %c0_16] : memref<64x1xi32, #tpu.memory_space<vmem>>, vector<64x1xi32>
    %22 = vector.shape_cast %21 : vector<64x1xi32> to vector<64x1xi32>
    %23 = vector.broadcast %22 : vector<64x1xi32> to vector<64x16xi32>
    %cst_17 = arith.constant 0.000000e+00 : f32
    %24 = vector.broadcast %cst_17 : f32 to vector<64x16xf32>
    %cst_18 = arith.constant 0.000000e+00 : f32
    %25 = vector.broadcast %cst_18 : f32 to vector<64x16xf32>
    %26 = vector.extract_strided_slice %13 {offsets = [0, 0], sizes = [64, 64], strides = [1, 1]} : vector<384x64xf32> to vector<64x64xf32>
    %cst_19 = arith.constant dense<0.000000e+00> : vector<64x64xf32>
    %27 = tpu.matmul %24, %1, %cst_19 {dimension_numbers = #tpu.dot_dimension_numbers<[1], [0], [0], [1], [0, 0, 1, 1], [], []>} : vector<64x16xf32>, vector<16x64xf32>, vector<64x64xf32> -> vector<64x64xf32>
    %28 = arith.addf %26, %27 : vector<64x64xf32>
    %29 = vector.extract_strided_slice %28 {offsets = [0, 0], sizes = [64, 32], strides = [1, 1]} : vector<64x64xf32> to vector<64x32xf32>
    %30 = arith.negf %29 : vector<64x32xf32>
    %31 = math.exp %30 : vector<64x32xf32>
    %cst_20 = arith.constant 1.000000e+00 : f32
    %32 = vector.broadcast %cst_20 : f32 to vector<64x32xf32>
    %33 = arith.addf %32, %31 : vector<64x32xf32>
    %34 = arith.divf %32, %33 : vector<64x32xf32>
    %35 = vector.extract_strided_slice %28 {offsets = [0, 32], sizes = [64, 16], strides = [1, 1]} : vector<64x64xf32> to vector<64x16xf32>
    %36 = math.tanh %35 : vector<64x16xf32>
    %37 = vector.extract_strided_slice %28 {offsets = [0, 48], sizes = [64, 16], strides = [1, 1]} : vector<64x64xf32> to vector<64x16xf32>
    %38 = arith.negf %37 : vector<64x16xf32>
    %39 = math.exp %38 : vector<64x16xf32>
    %cst_21 = arith.constant 1.000000e+00 : f32
    %40 = vector.broadcast %cst_21 : f32 to vector<64x16xf32>
    %41 = arith.addf %40, %39 : vector<64x16xf32>
    %42 = arith.divf %40, %41 : vector<64x16xf32>
    %43 = vector.extract_strided_slice %34 {offsets = [0, 16], sizes = [64, 16], strides = [1, 1]} : vector<64x32xf32> to vector<64x16xf32>
    %44 = arith.mulf %43, %25 : vector<64x16xf32>
    %45 = vector.extract_strided_slice %34 {offsets = [0, 0], sizes = [64, 16], strides = [1, 1]} : vector<64x32xf32> to vector<64x16xf32>
    %46 = arith.mulf %45, %36 : vector<64x16xf32>
    %47 = arith.addf %44, %46 : vector<64x16xf32>
    %48 = math.tanh %47 : vector<64x16xf32>
    %49 = arith.mulf %42, %48 : vector<64x16xf32>
    %c0_i32 = arith.constant 0 : i32
    %50 = vector.broadcast %c0_i32 : i32 to vector<64x16xi32>
    %51 = arith.cmpi sgt, %23, %50 : vector<64x16xi32>
    %52 = arith.select %51, %49, %24 : vector<64x16xi1>, vector<64x16xf32>
    %53 = arith.select %51, %47, %25 : vector<64x16xi1>, vector<64x16xf32>
    %54 = vector.extract_strided_slice %13 {offsets = [64, 0], sizes = [64, 64], strides = [1, 1]} : vector<384x64xf32> to vector<64x64xf32>
    %cst_22 = arith.constant dense<0.000000e+00> : vector<64x64xf32>
    %55 = tpu.matmul %52, %1, %cst_22 {dimension_numbers = #tpu.dot_dimension_numbers<[1], [0], [0], [1], [0, 0, 1, 1], [], []>} : vector<64x16xf32>, vector<16x64xf32>, vector<64x64xf32> -> vector<64x64xf32>
    %56 = arith.addf %54, %55 : vector<64x64xf32>
    %57 = vector.extract_strided_slice %56 {offsets = [0, 0], sizes = [64, 32], strides = [1, 1]} : vector<64x64xf32> to vector<64x32xf32>
    %58 = arith.negf %57 : vector<64x32xf32>
    %59 = math.exp %58 : vector<64x32xf32>
    %cst_23 = arith.constant 1.000000e+00 : f32
    %60 = vector.broadcast %cst_23 : f32 to vector<64x32xf32>
    %61 = arith.addf %60, %59 : vector<64x32xf32>
    %62 = arith.divf %60, %61 : vector<64x32xf32>
    %63 = vector.extract_strided_slice %56 {offsets = [0, 32], sizes = [64, 16], strides = [1, 1]} : vector<64x64xf32> to vector<64x16xf32>
    %64 = math.tanh %63 : vector<64x16xf32>
    %65 = vector.extract_strided_slice %56 {offsets = [0, 48], sizes = [64, 16], strides = [1, 1]} : vector<64x64xf32> to vector<64x16xf32>
    %66 = arith.negf %65 : vector<64x16xf32>
    %67 = math.exp %66 : vector<64x16xf32>
    %cst_24 = arith.constant 1.000000e+00 : f32
    %68 = vector.broadcast %cst_24 : f32 to vector<64x16xf32>
    %69 = arith.addf %68, %67 : vector<64x16xf32>
    %70 = arith.divf %68, %69 : vector<64x16xf32>
    %71 = vector.extract_strided_slice %62 {offsets = [0, 16], sizes = [64, 16], strides = [1, 1]} : vector<64x32xf32> to vector<64x16xf32>
    %72 = arith.mulf %71, %53 : vector<64x16xf32>
    %73 = vector.extract_strided_slice %62 {offsets = [0, 0], sizes = [64, 16], strides = [1, 1]} : vector<64x32xf32> to vector<64x16xf32>
    %74 = arith.mulf %73, %64 : vector<64x16xf32>
    %75 = arith.addf %72, %74 : vector<64x16xf32>
    %76 = math.tanh %75 : vector<64x16xf32>
    %77 = arith.mulf %70, %76 : vector<64x16xf32>
    %c1_i32 = arith.constant 1 : i32
    %78 = vector.broadcast %c1_i32 : i32 to vector<64x16xi32>
    %79 = arith.cmpi sgt, %23, %78 : vector<64x16xi32>
    %80 = arith.select %79, %77, %52 : vector<64x16xi1>, vector<64x16xf32>
    %81 = arith.select %79, %75, %53 : vector<64x16xi1>, vector<64x16xf32>
    %82 = vector.extract_strided_slice %13 {offsets = [128, 0], sizes = [64, 64], strides = [1, 1]} : vector<384x64xf32> to vector<64x64xf32>
    %cst_25 = arith.constant dense<0.000000e+00> : vector<64x64xf32>
    %83 = tpu.matmul %80, %1, %cst_25 {dimension_numbers = #tpu.dot_dimension_numbers<[1], [0], [0], [1], [0, 0, 1, 1], [], []>} : vector<64x16xf32>, vector<16x64xf32>, vector<64x64xf32> -> vector<64x64xf32>
    %84 = arith.addf %82, %83 : vector<64x64xf32>
    %85 = vector.extract_strided_slice %84 {offsets = [0, 0], sizes = [64, 32], strides = [1, 1]} : vector<64x64xf32> to vector<64x32xf32>
    %86 = arith.negf %85 : vector<64x32xf32>
    %87 = math.exp %86 : vector<64x32xf32>
    %cst_26 = arith.constant 1.000000e+00 : f32
    %88 = vector.broadcast %cst_26 : f32 to vector<64x32xf32>
    %89 = arith.addf %88, %87 : vector<64x32xf32>
    %90 = arith.divf %88, %89 : vector<64x32xf32>
    %91 = vector.extract_strided_slice %84 {offsets = [0, 32], sizes = [64, 16], strides = [1, 1]} : vector<64x64xf32> to vector<64x16xf32>
    %92 = math.tanh %91 : vector<64x16xf32>
    %93 = vector.extract_strided_slice %84 {offsets = [0, 48], sizes = [64, 16], strides = [1, 1]} : vector<64x64xf32> to vector<64x16xf32>
    %94 = arith.negf %93 : vector<64x16xf32>
    %95 = math.exp %94 : vector<64x16xf32>
    %cst_27 = arith.constant 1.000000e+00 : f32
    %96 = vector.broadcast %cst_27 : f32 to vector<64x16xf32>
    %97 = arith.addf %96, %95 : vector<64x16xf32>
    %98 = arith.divf %96, %97 : vector<64x16xf32>
    %99 = vector.extract_strided_slice %90 {offsets = [0, 16], sizes = [64, 16], strides = [1, 1]} : vector<64x32xf32> to vector<64x16xf32>
    %100 = arith.mulf %99, %81 : vector<64x16xf32>
    %101 = vector.extract_strided_slice %90 {offsets = [0, 0], sizes = [64, 16], strides = [1, 1]} : vector<64x32xf32> to vector<64x16xf32>
    %102 = arith.mulf %101, %92 : vector<64x16xf32>
    %103 = arith.addf %100, %102 : vector<64x16xf32>
    %104 = math.tanh %103 : vector<64x16xf32>
    %105 = arith.mulf %98, %104 : vector<64x16xf32>
    %c2_i32 = arith.constant 2 : i32
    %106 = vector.broadcast %c2_i32 : i32 to vector<64x16xi32>
    %107 = arith.cmpi sgt, %23, %106 : vector<64x16xi32>
    %108 = arith.select %107, %105, %80 : vector<64x16xi1>, vector<64x16xf32>
    %109 = arith.select %107, %103, %81 : vector<64x16xi1>, vector<64x16xf32>
    %110 = vector.extract_strided_slice %13 {offsets = [192, 0], sizes = [64, 64], strides = [1, 1]} : vector<384x64xf32> to vector<64x64xf32>
    %cst_28 = arith.constant dense<0.000000e+00> : vector<64x64xf32>
    %111 = tpu.matmul %108, %1, %cst_28 {dimension_numbers = #tpu.dot_dimension_numbers<[1], [0], [0], [1], [0, 0, 1, 1], [], []>} : vector<64x16xf32>, vector<16x64xf32>, vector<64x64xf32> -> vector<64x64xf32>
    %112 = arith.addf %110, %111 : vector<64x64xf32>
    %113 = vector.extract_strided_slice %112 {offsets = [0, 0], sizes = [64, 32], strides = [1, 1]} : vector<64x64xf32> to vector<64x32xf32>
    %114 = arith.negf %113 : vector<64x32xf32>
    %115 = math.exp %114 : vector<64x32xf32>
    %cst_29 = arith.constant 1.000000e+00 : f32
    %116 = vector.broadcast %cst_29 : f32 to vector<64x32xf32>
    %117 = arith.addf %116, %115 : vector<64x32xf32>
    %118 = arith.divf %116, %117 : vector<64x32xf32>
    %119 = vector.extract_strided_slice %112 {offsets = [0, 32], sizes = [64, 16], strides = [1, 1]} : vector<64x64xf32> to vector<64x16xf32>
    %120 = math.tanh %119 : vector<64x16xf32>
    %121 = vector.extract_strided_slice %112 {offsets = [0, 48], sizes = [64, 16], strides = [1, 1]} : vector<64x64xf32> to vector<64x16xf32>
    %122 = arith.negf %121 : vector<64x16xf32>
    %123 = math.exp %122 : vector<64x16xf32>
    %cst_30 = arith.constant 1.000000e+00 : f32
    %124 = vector.broadcast %cst_30 : f32 to vector<64x16xf32>
    %125 = arith.addf %124, %123 : vector<64x16xf32>
    %126 = arith.divf %124, %125 : vector<64x16xf32>
    %127 = vector.extract_strided_slice %118 {offsets = [0, 16], sizes = [64, 16], strides = [1, 1]} : vector<64x32xf32> to vector<64x16xf32>
    %128 = arith.mulf %127, %109 : vector<64x16xf32>
    %129 = vector.extract_strided_slice %118 {offsets = [0, 0], sizes = [64, 16], strides = [1, 1]} : vector<64x32xf32> to vector<64x16xf32>
    %130 = arith.mulf %129, %120 : vector<64x16xf32>
    %131 = arith.addf %128, %130 : vector<64x16xf32>
    %132 = math.tanh %131 : vector<64x16xf32>
    %133 = arith.mulf %126, %132 : vector<64x16xf32>
    %c3_i32 = arith.constant 3 : i32
    %134 = vector.broadcast %c3_i32 : i32 to vector<64x16xi32>
    %135 = arith.cmpi sgt, %23, %134 : vector<64x16xi32>
    %136 = arith.select %135, %133, %108 : vector<64x16xi1>, vector<64x16xf32>
    %137 = arith.select %135, %131, %109 : vector<64x16xi1>, vector<64x16xf32>
    %138 = vector.extract_strided_slice %13 {offsets = [256, 0], sizes = [64, 64], strides = [1, 1]} : vector<384x64xf32> to vector<64x64xf32>
    %cst_31 = arith.constant dense<0.000000e+00> : vector<64x64xf32>
    %139 = tpu.matmul %136, %1, %cst_31 {dimension_numbers = #tpu.dot_dimension_numbers<[1], [0], [0], [1], [0, 0, 1, 1], [], []>} : vector<64x16xf32>, vector<16x64xf32>, vector<64x64xf32> -> vector<64x64xf32>
    %140 = arith.addf %138, %139 : vector<64x64xf32>
    %141 = vector.extract_strided_slice %140 {offsets = [0, 0], sizes = [64, 32], strides = [1, 1]} : vector<64x64xf32> to vector<64x32xf32>
    %142 = arith.negf %141 : vector<64x32xf32>
    %143 = math.exp %142 : vector<64x32xf32>
    %cst_32 = arith.constant 1.000000e+00 : f32
    %144 = vector.broadcast %cst_32 : f32 to vector<64x32xf32>
    %145 = arith.addf %144, %143 : vector<64x32xf32>
    %146 = arith.divf %144, %145 : vector<64x32xf32>
    %147 = vector.extract_strided_slice %140 {offsets = [0, 32], sizes = [64, 16], strides = [1, 1]} : vector<64x64xf32> to vector<64x16xf32>
    %148 = math.tanh %147 : vector<64x16xf32>
    %149 = vector.extract_strided_slice %140 {offsets = [0, 48], sizes = [64, 16], strides = [1, 1]} : vector<64x64xf32> to vector<64x16xf32>
    %150 = arith.negf %149 : vector<64x16xf32>
    %151 = math.exp %150 : vector<64x16xf32>
    %cst_33 = arith.constant 1.000000e+00 : f32
    %152 = vector.broadcast %cst_33 : f32 to vector<64x16xf32>
    %153 = arith.addf %152, %151 : vector<64x16xf32>
    %154 = arith.divf %152, %153 : vector<64x16xf32>
    %155 = vector.extract_strided_slice %146 {offsets = [0, 16], sizes = [64, 16], strides = [1, 1]} : vector<64x32xf32> to vector<64x16xf32>
    %156 = arith.mulf %155, %137 : vector<64x16xf32>
    %157 = vector.extract_strided_slice %146 {offsets = [0, 0], sizes = [64, 16], strides = [1, 1]} : vector<64x32xf32> to vector<64x16xf32>
    %158 = arith.mulf %157, %148 : vector<64x16xf32>
    %159 = arith.addf %156, %158 : vector<64x16xf32>
    %160 = math.tanh %159 : vector<64x16xf32>
    %161 = arith.mulf %154, %160 : vector<64x16xf32>
    %c4_i32 = arith.constant 4 : i32
    %162 = vector.broadcast %c4_i32 : i32 to vector<64x16xi32>
    %163 = arith.cmpi sgt, %23, %162 : vector<64x16xi32>
    %164 = arith.select %163, %161, %136 : vector<64x16xi1>, vector<64x16xf32>
    %165 = arith.select %163, %159, %137 : vector<64x16xi1>, vector<64x16xf32>
    %166 = vector.extract_strided_slice %13 {offsets = [320, 0], sizes = [64, 64], strides = [1, 1]} : vector<384x64xf32> to vector<64x64xf32>
    %cst_34 = arith.constant dense<0.000000e+00> : vector<64x64xf32>
    %167 = tpu.matmul %164, %1, %cst_34 {dimension_numbers = #tpu.dot_dimension_numbers<[1], [0], [0], [1], [0, 0, 1, 1], [], []>} : vector<64x16xf32>, vector<16x64xf32>, vector<64x64xf32> -> vector<64x64xf32>
    %168 = arith.addf %166, %167 : vector<64x64xf32>
    %169 = vector.extract_strided_slice %168 {offsets = [0, 0], sizes = [64, 32], strides = [1, 1]} : vector<64x64xf32> to vector<64x32xf32>
    %170 = arith.negf %169 : vector<64x32xf32>
    %171 = math.exp %170 : vector<64x32xf32>
    %cst_35 = arith.constant 1.000000e+00 : f32
    %172 = vector.broadcast %cst_35 : f32 to vector<64x32xf32>
    %173 = arith.addf %172, %171 : vector<64x32xf32>
    %174 = arith.divf %172, %173 : vector<64x32xf32>
    %175 = vector.extract_strided_slice %168 {offsets = [0, 32], sizes = [64, 16], strides = [1, 1]} : vector<64x64xf32> to vector<64x16xf32>
    %176 = math.tanh %175 : vector<64x16xf32>
    %177 = vector.extract_strided_slice %168 {offsets = [0, 48], sizes = [64, 16], strides = [1, 1]} : vector<64x64xf32> to vector<64x16xf32>
    %178 = arith.negf %177 : vector<64x16xf32>
    %179 = math.exp %178 : vector<64x16xf32>
    %cst_36 = arith.constant 1.000000e+00 : f32
    %180 = vector.broadcast %cst_36 : f32 to vector<64x16xf32>
    %181 = arith.addf %180, %179 : vector<64x16xf32>
    %182 = arith.divf %180, %181 : vector<64x16xf32>
    %183 = vector.extract_strided_slice %174 {offsets = [0, 16], sizes = [64, 16], strides = [1, 1]} : vector<64x32xf32> to vector<64x16xf32>
    %184 = arith.mulf %183, %165 : vector<64x16xf32>
    %185 = vector.extract_strided_slice %174 {offsets = [0, 0], sizes = [64, 16], strides = [1, 1]} : vector<64x32xf32> to vector<64x16xf32>
    %186 = arith.mulf %185, %176 : vector<64x16xf32>
    %187 = arith.addf %184, %186 : vector<64x16xf32>
    %188 = math.tanh %187 : vector<64x16xf32>
    %189 = arith.mulf %182, %188 : vector<64x16xf32>
    %c5_i32 = arith.constant 5 : i32
    %190 = vector.broadcast %c5_i32 : i32 to vector<64x16xi32>
    %191 = arith.cmpi sgt, %23, %190 : vector<64x16xi32>
    %192 = arith.select %191, %189, %164 : vector<64x16xi1>, vector<64x16xf32>
    %cst_37 = arith.constant dense<0.000000e+00> : vector<64x128xf32>
    %193 = tpu.matmul %192, %3, %cst_37 {dimension_numbers = #tpu.dot_dimension_numbers<[1], [0], [0], [1], [0, 0, 1, 1], [], []>} : vector<64x16xf32>, vector<16x128xf32>, vector<64x128xf32> -> vector<64x128xf32>
    %194 = arith.addf %20, %193 : vector<64x128xf32>
    %cst_38 = arith.constant 0.000000e+00 : f32
    %195 = vector.broadcast %cst_38 : f32 to vector<8x32xf32>
    %cst_39 = arith.constant 0.000000e+00 : f32
    %196 = vector.broadcast %cst_39 : f32 to vector<8x32xf32>
    %197 = vector.extract_strided_slice %194 {offsets = [0, 0], sizes = [8, 128], strides = [1, 1]} : vector<64x128xf32> to vector<8x128xf32>
    %cst_40 = arith.constant dense<0.000000e+00> : vector<8x128xf32>
    %198 = tpu.matmul %195, %4, %cst_40 {dimension_numbers = #tpu.dot_dimension_numbers<[1], [0], [0], [1], [0, 0, 1, 1], [], []>} : vector<8x32xf32>, vector<32x128xf32>, vector<8x128xf32> -> vector<8x128xf32>
    %199 = arith.addf %197, %198 : vector<8x128xf32>
    %200 = vector.extract_strided_slice %199 {offsets = [0, 0], sizes = [8, 64], strides = [1, 1]} : vector<8x128xf32> to vector<8x64xf32>
    %201 = arith.negf %200 : vector<8x64xf32>
    %202 = math.exp %201 : vector<8x64xf32>
    %cst_41 = arith.constant 1.000000e+00 : f32
    %203 = vector.broadcast %cst_41 : f32 to vector<8x64xf32>
    %204 = arith.addf %203, %202 : vector<8x64xf32>
    %205 = arith.divf %203, %204 : vector<8x64xf32>
    %206 = vector.extract_strided_slice %199 {offsets = [0, 64], sizes = [8, 32], strides = [1, 1]} : vector<8x128xf32> to vector<8x32xf32>
    %207 = math.tanh %206 : vector<8x32xf32>
    %208 = vector.extract_strided_slice %199 {offsets = [0, 96], sizes = [8, 32], strides = [1, 1]} : vector<8x128xf32> to vector<8x32xf32>
    %209 = arith.negf %208 : vector<8x32xf32>
    %210 = math.exp %209 : vector<8x32xf32>
    %cst_42 = arith.constant 1.000000e+00 : f32
    %211 = vector.broadcast %cst_42 : f32 to vector<8x32xf32>
    %212 = arith.addf %211, %210 : vector<8x32xf32>
    %213 = arith.divf %211, %212 : vector<8x32xf32>
    %214 = vector.extract_strided_slice %205 {offsets = [0, 32], sizes = [8, 32], strides = [1, 1]} : vector<8x64xf32> to vector<8x32xf32>
    %215 = arith.mulf %214, %196 : vector<8x32xf32>
    %216 = vector.extract_strided_slice %205 {offsets = [0, 0], sizes = [8, 32], strides = [1, 1]} : vector<8x64xf32> to vector<8x32xf32>
    %217 = arith.mulf %216, %207 : vector<8x32xf32>
    %218 = arith.addf %215, %217 : vector<8x32xf32>
    %219 = math.tanh %218 : vector<8x32xf32>
    %220 = arith.mulf %213, %219 : vector<8x32xf32>
    %221 = vector.extract_strided_slice %194 {offsets = [8, 0], sizes = [8, 128], strides = [1, 1]} : vector<64x128xf32> to vector<8x128xf32>
    %cst_43 = arith.constant dense<0.000000e+00> : vector<8x128xf32>
    %222 = tpu.matmul %220, %4, %cst_43 {dimension_numbers = #tpu.dot_dimension_numbers<[1], [0], [0], [1], [0, 0, 1, 1], [], []>} : vector<8x32xf32>, vector<32x128xf32>, vector<8x128xf32> -> vector<8x128xf32>
    %223 = arith.addf %221, %222 : vector<8x128xf32>
    %224 = vector.extract_strided_slice %223 {offsets = [0, 0], sizes = [8, 64], strides = [1, 1]} : vector<8x128xf32> to vector<8x64xf32>
    %225 = arith.negf %224 : vector<8x64xf32>
    %226 = math.exp %225 : vector<8x64xf32>
    %cst_44 = arith.constant 1.000000e+00 : f32
    %227 = vector.broadcast %cst_44 : f32 to vector<8x64xf32>
    %228 = arith.addf %227, %226 : vector<8x64xf32>
    %229 = arith.divf %227, %228 : vector<8x64xf32>
    %230 = vector.extract_strided_slice %223 {offsets = [0, 64], sizes = [8, 32], strides = [1, 1]} : vector<8x128xf32> to vector<8x32xf32>
    %231 = math.tanh %230 : vector<8x32xf32>
    %232 = vector.extract_strided_slice %223 {offsets = [0, 96], sizes = [8, 32], strides = [1, 1]} : vector<8x128xf32> to vector<8x32xf32>
    %233 = arith.negf %232 : vector<8x32xf32>
    %234 = math.exp %233 : vector<8x32xf32>
    %cst_45 = arith.constant 1.000000e+00 : f32
    %235 = vector.broadcast %cst_45 : f32 to vector<8x32xf32>
    %236 = arith.addf %235, %234 : vector<8x32xf32>
    %237 = arith.divf %235, %236 : vector<8x32xf32>
    %238 = vector.extract_strided_slice %229 {offsets = [0, 32], sizes = [8, 32], strides = [1, 1]} : vector<8x64xf32> to vector<8x32xf32>
    %239 = arith.mulf %238, %218 : vector<8x32xf32>
    %240 = vector.extract_strided_slice %229 {offsets = [0, 0], sizes = [8, 32], strides = [1, 1]} : vector<8x64xf32> to vector<8x32xf32>
    %241 = arith.mulf %240, %231 : vector<8x32xf32>
    %242 = arith.addf %239, %241 : vector<8x32xf32>
    %243 = math.tanh %242 : vector<8x32xf32>
    %244 = arith.mulf %237, %243 : vector<8x32xf32>
    %245 = vector.extract_strided_slice %194 {offsets = [16, 0], sizes = [8, 128], strides = [1, 1]} : vector<64x128xf32> to vector<8x128xf32>
    %cst_46 = arith.constant dense<0.000000e+00> : vector<8x128xf32>
    %246 = tpu.matmul %244, %4, %cst_46 {dimension_numbers = #tpu.dot_dimension_numbers<[1], [0], [0], [1], [0, 0, 1, 1], [], []>} : vector<8x32xf32>, vector<32x128xf32>, vector<8x128xf32> -> vector<8x128xf32>
    %247 = arith.addf %245, %246 : vector<8x128xf32>
    %248 = vector.extract_strided_slice %247 {offsets = [0, 0], sizes = [8, 64], strides = [1, 1]} : vector<8x128xf32> to vector<8x64xf32>
    %249 = arith.negf %248 : vector<8x64xf32>
    %250 = math.exp %249 : vector<8x64xf32>
    %cst_47 = arith.constant 1.000000e+00 : f32
    %251 = vector.broadcast %cst_47 : f32 to vector<8x64xf32>
    %252 = arith.addf %251, %250 : vector<8x64xf32>
    %253 = arith.divf %251, %252 : vector<8x64xf32>
    %254 = vector.extract_strided_slice %247 {offsets = [0, 64], sizes = [8, 32], strides = [1, 1]} : vector<8x128xf32> to vector<8x32xf32>
    %255 = math.tanh %254 : vector<8x32xf32>
    %256 = vector.extract_strided_slice %247 {offsets = [0, 96], sizes = [8, 32], strides = [1, 1]} : vector<8x128xf32> to vector<8x32xf32>
    %257 = arith.negf %256 : vector<8x32xf32>
    %258 = math.exp %257 : vector<8x32xf32>
    %cst_48 = arith.constant 1.000000e+00 : f32
    %259 = vector.broadcast %cst_48 : f32 to vector<8x32xf32>
    %260 = arith.addf %259, %258 : vector<8x32xf32>
    %261 = arith.divf %259, %260 : vector<8x32xf32>
    %262 = vector.extract_strided_slice %253 {offsets = [0, 32], sizes = [8, 32], strides = [1, 1]} : vector<8x64xf32> to vector<8x32xf32>
    %263 = arith.mulf %262, %242 : vector<8x32xf32>
    %264 = vector.extract_strided_slice %253 {offsets = [0, 0], sizes = [8, 32], strides = [1, 1]} : vector<8x64xf32> to vector<8x32xf32>
    %265 = arith.mulf %264, %255 : vector<8x32xf32>
    %266 = arith.addf %263, %265 : vector<8x32xf32>
    %267 = math.tanh %266 : vector<8x32xf32>
    %268 = arith.mulf %261, %267 : vector<8x32xf32>
    %269 = vector.extract_strided_slice %194 {offsets = [24, 0], sizes = [8, 128], strides = [1, 1]} : vector<64x128xf32> to vector<8x128xf32>
    %cst_49 = arith.constant dense<0.000000e+00> : vector<8x128xf32>
    %270 = tpu.matmul %268, %4, %cst_49 {dimension_numbers = #tpu.dot_dimension_numbers<[1], [0], [0], [1], [0, 0, 1, 1], [], []>} : vector<8x32xf32>, vector<32x128xf32>, vector<8x128xf32> -> vector<8x128xf32>
    %271 = arith.addf %269, %270 : vector<8x128xf32>
    %272 = vector.extract_strided_slice %271 {offsets = [0, 0], sizes = [8, 64], strides = [1, 1]} : vector<8x128xf32> to vector<8x64xf32>
    %273 = arith.negf %272 : vector<8x64xf32>
    %274 = math.exp %273 : vector<8x64xf32>
    %cst_50 = arith.constant 1.000000e+00 : f32
    %275 = vector.broadcast %cst_50 : f32 to vector<8x64xf32>
    %276 = arith.addf %275, %274 : vector<8x64xf32>
    %277 = arith.divf %275, %276 : vector<8x64xf32>
    %278 = vector.extract_strided_slice %271 {offsets = [0, 64], sizes = [8, 32], strides = [1, 1]} : vector<8x128xf32> to vector<8x32xf32>
    %279 = math.tanh %278 : vector<8x32xf32>
    %280 = vector.extract_strided_slice %271 {offsets = [0, 96], sizes = [8, 32], strides = [1, 1]} : vector<8x128xf32> to vector<8x32xf32>
    %281 = arith.negf %280 : vector<8x32xf32>
    %282 = math.exp %281 : vector<8x32xf32>
    %cst_51 = arith.constant 1.000000e+00 : f32
    %283 = vector.broadcast %cst_51 : f32 to vector<8x32xf32>
    %284 = arith.addf %283, %282 : vector<8x32xf32>
    %285 = arith.divf %283, %284 : vector<8x32xf32>
    %286 = vector.extract_strided_slice %277 {offsets = [0, 32], sizes = [8, 32], strides = [1, 1]} : vector<8x64xf32> to vector<8x32xf32>
    %287 = arith.mulf %286, %266 : vector<8x32xf32>
    %288 = vector.extract_strided_slice %277 {offsets = [0, 0], sizes = [8, 32], strides = [1, 1]} : vector<8x64xf32> to vector<8x32xf32>
    %289 = arith.mulf %288, %279 : vector<8x32xf32>
    %290 = arith.addf %287, %289 : vector<8x32xf32>
    %291 = math.tanh %290 : vector<8x32xf32>
    %292 = arith.mulf %285, %291 : vector<8x32xf32>
    %293 = vector.extract_strided_slice %194 {offsets = [32, 0], sizes = [8, 128], strides = [1, 1]} : vector<64x128xf32> to vector<8x128xf32>
    %cst_52 = arith.constant dense<0.000000e+00> : vector<8x128xf32>
    %294 = tpu.matmul %292, %4, %cst_52 {dimension_numbers = #tpu.dot_dimension_numbers<[1], [0], [0], [1], [0, 0, 1, 1], [], []>} : vector<8x32xf32>, vector<32x128xf32>, vector<8x128xf32> -> vector<8x128xf32>
    %295 = arith.addf %293, %294 : vector<8x128xf32>
    %296 = vector.extract_strided_slice %295 {offsets = [0, 0], sizes = [8, 64], strides = [1, 1]} : vector<8x128xf32> to vector<8x64xf32>
    %297 = arith.negf %296 : vector<8x64xf32>
    %298 = math.exp %297 : vector<8x64xf32>
    %cst_53 = arith.constant 1.000000e+00 : f32
    %299 = vector.broadcast %cst_53 : f32 to vector<8x64xf32>
    %300 = arith.addf %299, %298 : vector<8x64xf32>
    %301 = arith.divf %299, %300 : vector<8x64xf32>
    %302 = vector.extract_strided_slice %295 {offsets = [0, 64], sizes = [8, 32], strides = [1, 1]} : vector<8x128xf32> to vector<8x32xf32>
    %303 = math.tanh %302 : vector<8x32xf32>
    %304 = vector.extract_strided_slice %295 {offsets = [0, 96], sizes = [8, 32], strides = [1, 1]} : vector<8x128xf32> to vector<8x32xf32>
    %305 = arith.negf %304 : vector<8x32xf32>
    %306 = math.exp %305 : vector<8x32xf32>
    %cst_54 = arith.constant 1.000000e+00 : f32
    %307 = vector.broadcast %cst_54 : f32 to vector<8x32xf32>
    %308 = arith.addf %307, %306 : vector<8x32xf32>
    %309 = arith.divf %307, %308 : vector<8x32xf32>
    %310 = vector.extract_strided_slice %301 {offsets = [0, 32], sizes = [8, 32], strides = [1, 1]} : vector<8x64xf32> to vector<8x32xf32>
    %311 = arith.mulf %310, %290 : vector<8x32xf32>
    %312 = vector.extract_strided_slice %301 {offsets = [0, 0], sizes = [8, 32], strides = [1, 1]} : vector<8x64xf32> to vector<8x32xf32>
    %313 = arith.mulf %312, %303 : vector<8x32xf32>
    %314 = arith.addf %311, %313 : vector<8x32xf32>
    %315 = math.tanh %314 : vector<8x32xf32>
    %316 = arith.mulf %309, %315 : vector<8x32xf32>
    %317 = vector.extract_strided_slice %194 {offsets = [40, 0], sizes = [8, 128], strides = [1, 1]} : vector<64x128xf32> to vector<8x128xf32>
    %cst_55 = arith.constant dense<0.000000e+00> : vector<8x128xf32>
    %318 = tpu.matmul %316, %4, %cst_55 {dimension_numbers = #tpu.dot_dimension_numbers<[1], [0], [0], [1], [0, 0, 1, 1], [], []>} : vector<8x32xf32>, vector<32x128xf32>, vector<8x128xf32> -> vector<8x128xf32>
    %319 = arith.addf %317, %318 : vector<8x128xf32>
    %320 = vector.extract_strided_slice %319 {offsets = [0, 0], sizes = [8, 64], strides = [1, 1]} : vector<8x128xf32> to vector<8x64xf32>
    %321 = arith.negf %320 : vector<8x64xf32>
    %322 = math.exp %321 : vector<8x64xf32>
    %cst_56 = arith.constant 1.000000e+00 : f32
    %323 = vector.broadcast %cst_56 : f32 to vector<8x64xf32>
    %324 = arith.addf %323, %322 : vector<8x64xf32>
    %325 = arith.divf %323, %324 : vector<8x64xf32>
    %326 = vector.extract_strided_slice %319 {offsets = [0, 64], sizes = [8, 32], strides = [1, 1]} : vector<8x128xf32> to vector<8x32xf32>
    %327 = math.tanh %326 : vector<8x32xf32>
    %328 = vector.extract_strided_slice %319 {offsets = [0, 96], sizes = [8, 32], strides = [1, 1]} : vector<8x128xf32> to vector<8x32xf32>
    %329 = arith.negf %328 : vector<8x32xf32>
    %330 = math.exp %329 : vector<8x32xf32>
    %cst_57 = arith.constant 1.000000e+00 : f32
    %331 = vector.broadcast %cst_57 : f32 to vector<8x32xf32>
    %332 = arith.addf %331, %330 : vector<8x32xf32>
    %333 = arith.divf %331, %332 : vector<8x32xf32>
    %334 = vector.extract_strided_slice %325 {offsets = [0, 32], sizes = [8, 32], strides = [1, 1]} : vector<8x64xf32> to vector<8x32xf32>
    %335 = arith.mulf %334, %314 : vector<8x32xf32>
    %336 = vector.extract_strided_slice %325 {offsets = [0, 0], sizes = [8, 32], strides = [1, 1]} : vector<8x64xf32> to vector<8x32xf32>
    %337 = arith.mulf %336, %327 : vector<8x32xf32>
    %338 = arith.addf %335, %337 : vector<8x32xf32>
    %339 = math.tanh %338 : vector<8x32xf32>
    %340 = arith.mulf %333, %339 : vector<8x32xf32>
    %341 = vector.extract_strided_slice %194 {offsets = [48, 0], sizes = [8, 128], strides = [1, 1]} : vector<64x128xf32> to vector<8x128xf32>
    %cst_58 = arith.constant dense<0.000000e+00> : vector<8x128xf32>
    %342 = tpu.matmul %340, %4, %cst_58 {dimension_numbers = #tpu.dot_dimension_numbers<[1], [0], [0], [1], [0, 0, 1, 1], [], []>} : vector<8x32xf32>, vector<32x128xf32>, vector<8x128xf32> -> vector<8x128xf32>
    %343 = arith.addf %341, %342 : vector<8x128xf32>
    %344 = vector.extract_strided_slice %343 {offsets = [0, 0], sizes = [8, 64], strides = [1, 1]} : vector<8x128xf32> to vector<8x64xf32>
    %345 = arith.negf %344 : vector<8x64xf32>
    %346 = math.exp %345 : vector<8x64xf32>
    %cst_59 = arith.constant 1.000000e+00 : f32
    %347 = vector.broadcast %cst_59 : f32 to vector<8x64xf32>
    %348 = arith.addf %347, %346 : vector<8x64xf32>
    %349 = arith.divf %347, %348 : vector<8x64xf32>
    %350 = vector.extract_strided_slice %343 {offsets = [0, 64], sizes = [8, 32], strides = [1, 1]} : vector<8x128xf32> to vector<8x32xf32>
    %351 = math.tanh %350 : vector<8x32xf32>
    %352 = vector.extract_strided_slice %343 {offsets = [0, 96], sizes = [8, 32], strides = [1, 1]} : vector<8x128xf32> to vector<8x32xf32>
    %353 = arith.negf %352 : vector<8x32xf32>
    %354 = math.exp %353 : vector<8x32xf32>
    %cst_60 = arith.constant 1.000000e+00 : f32
    %355 = vector.broadcast %cst_60 : f32 to vector<8x32xf32>
    %356 = arith.addf %355, %354 : vector<8x32xf32>
    %357 = arith.divf %355, %356 : vector<8x32xf32>
    %358 = vector.extract_strided_slice %349 {offsets = [0, 32], sizes = [8, 32], strides = [1, 1]} : vector<8x64xf32> to vector<8x32xf32>
    %359 = arith.mulf %358, %338 : vector<8x32xf32>
    %360 = vector.extract_strided_slice %349 {offsets = [0, 0], sizes = [8, 32], strides = [1, 1]} : vector<8x64xf32> to vector<8x32xf32>
    %361 = arith.mulf %360, %351 : vector<8x32xf32>
    %362 = arith.addf %359, %361 : vector<8x32xf32>
    %363 = math.tanh %362 : vector<8x32xf32>
    %364 = arith.mulf %357, %363 : vector<8x32xf32>
    %365 = vector.extract_strided_slice %194 {offsets = [56, 0], sizes = [8, 128], strides = [1, 1]} : vector<64x128xf32> to vector<8x128xf32>
    %cst_61 = arith.constant dense<0.000000e+00> : vector<8x128xf32>
    %366 = tpu.matmul %364, %4, %cst_61 {dimension_numbers = #tpu.dot_dimension_numbers<[1], [0], [0], [1], [0, 0, 1, 1], [], []>} : vector<8x32xf32>, vector<32x128xf32>, vector<8x128xf32> -> vector<8x128xf32>
    %367 = arith.addf %365, %366 : vector<8x128xf32>
    %368 = vector.extract_strided_slice %367 {offsets = [0, 0], sizes = [8, 64], strides = [1, 1]} : vector<8x128xf32> to vector<8x64xf32>
    %369 = arith.negf %368 : vector<8x64xf32>
    %370 = math.exp %369 : vector<8x64xf32>
    %cst_62 = arith.constant 1.000000e+00 : f32
    %371 = vector.broadcast %cst_62 : f32 to vector<8x64xf32>
    %372 = arith.addf %371, %370 : vector<8x64xf32>
    %373 = arith.divf %371, %372 : vector<8x64xf32>
    %374 = vector.extract_strided_slice %367 {offsets = [0, 64], sizes = [8, 32], strides = [1, 1]} : vector<8x128xf32> to vector<8x32xf32>
    %375 = math.tanh %374 : vector<8x32xf32>
    %376 = vector.extract_strided_slice %367 {offsets = [0, 96], sizes = [8, 32], strides = [1, 1]} : vector<8x128xf32> to vector<8x32xf32>
    %377 = arith.negf %376 : vector<8x32xf32>
    %378 = math.exp %377 : vector<8x32xf32>
    %cst_63 = arith.constant 1.000000e+00 : f32
    %379 = vector.broadcast %cst_63 : f32 to vector<8x32xf32>
    %380 = arith.addf %379, %378 : vector<8x32xf32>
    %381 = arith.divf %379, %380 : vector<8x32xf32>
    %382 = vector.extract_strided_slice %373 {offsets = [0, 32], sizes = [8, 32], strides = [1, 1]} : vector<8x64xf32> to vector<8x32xf32>
    %383 = arith.mulf %382, %362 : vector<8x32xf32>
    %384 = vector.extract_strided_slice %373 {offsets = [0, 0], sizes = [8, 32], strides = [1, 1]} : vector<8x64xf32> to vector<8x32xf32>
    %385 = arith.mulf %384, %375 : vector<8x32xf32>
    %386 = arith.addf %383, %385 : vector<8x32xf32>
    %387 = math.tanh %386 : vector<8x32xf32>
    %388 = arith.mulf %381, %387 : vector<8x32xf32>
    %389 = tpu.concatenate %220, %244, %268, %292, %316, %340, %364, %388 in 0 : vector<8x32xf32>, vector<8x32xf32>, vector<8x32xf32>, vector<8x32xf32>, vector<8x32xf32>, vector<8x32xf32>, vector<8x32xf32>, vector<8x32xf32> -> vector<64x32xf32>
    %cst_64 = arith.constant dense<0.000000e+00> : vector<64x128xf32>
    %390 = tpu.matmul %389, %5, %cst_64 {dimension_numbers = #tpu.dot_dimension_numbers<[1], [0], [0], [1], [0, 0, 1, 1], [], []>} : vector<64x32xf32>, vector<32x128xf32>, vector<64x128xf32> -> vector<64x128xf32>
    %391 = vector.broadcast %6 : vector<1x128xf32> to vector<64x128xf32>
    %392 = arith.addf %390, %391 : vector<64x128xf32>
    %cst_65 = arith.constant dense<0xFF800000> : vector<64xf32>
    %393 = vector.multi_reduction <maximumf>, %392, %cst_65 [1] : vector<64x128xf32> to vector<64xf32>
    %394 = vector.shape_cast %393 : vector<64xf32> to vector<64x1xf32>
    %395 = vector.broadcast %394 : vector<64x1xf32> to vector<64x128xf32>
    %396 = arith.subf %392, %395 : vector<64x128xf32>
    %397 = math.exp %396 : vector<64x128xf32>
    %cst_66 = arith.constant dense<0.000000e+00> : vector<64xf32>
    %398 = vector.multi_reduction <add>, %397, %cst_66 [1] : vector<64x128xf32> to vector<64xf32>
    %399 = vector.shape_cast %398 : vector<64xf32> to vector<64x1xf32>
    %400 = math.log %399 : vector<64x1xf32>
    %401 = vector.broadcast %400 : vector<64x1xf32> to vector<64x128xf32>
    %402 = arith.subf %396, %401 : vector<64x128xf32>
    %c0_67 = arith.constant 0 : index
    %c0_68 = arith.constant 0 : index
    %403 = vector.load %arg7[%c0_67, %c0_68] : memref<64x128xf32, #tpu.memory_space<vmem>>, vector<64x128xf32>
    tpu.vector_store %arg7[%c0_67, %c0_68], %402 {strides = array<i32>} : memref<64x128xf32, #tpu.memory_space<vmem>>, vector<64x128xf32>,
    return
  }
  func.func @transform_0(%arg0: i32) -> (i32, i32) {
    %c0_i32 = arith.constant 0 : i32
    %c0_i32_0 = arith.constant 0 : i32
    return %arg0, %c0_i32 : i32, i32
  }
  func.func @transform_1(%arg0: i32) -> (i32, i32) {
    %c0_i32 = arith.constant 0 : i32
    %c0_i32_0 = arith.constant 0 : i32
    return %arg0, %c0_i32 : i32, i32
  }
  func.func @transform_2(%arg0: i32) -> (i32, i32) {
    %c0_i32 = arith.constant 0 : i32
    %c0_i32_0 = arith.constant 0 : i32
    return %arg0, %c0_i32 : i32, i32
  }
  func.func @transform_3(%arg0: i32) -> (i32, i32) {
    %c0_i32 = arith.constant 0 : i32
    %c0_i32_0 = arith.constant 0 : i32
    %c0_i32_1 = arith.constant 0 : i32
    return %c0_i32, %c0_i32_0 : i32, i32
  }
  func.func @transform_4(%arg0: i32) -> (i32, i32) {
    %c0_i32 = arith.constant 0 : i32
    %c0_i32_0 = arith.constant 0 : i32
    %c0_i32_1 = arith.constant 0 : i32
    return %c0_i32, %c0_i32_0 : i32, i32
  }
  func.func @transform_5(%arg0: i32) -> (i32, i32) {
    %c0_i32 = arith.constant 0 : i32
    %c0_i32_0 = arith.constant 0 : i32
    %c0_i32_1 = arith.constant 0 : i32
    return %c0_i32, %c0_i32_0 : i32, i32
  }
  func.func @transform_6(%arg0: i32) -> (i32, i32) {
    %c0_i32 = arith.constant 0 : i32
    %c0_i32_0 = arith.constant 0 : i32
    return %arg0, %c0_i32 : i32, i32
  }
}

</mosaic_0001>

<llo_original>
// kernel: _lambda_.1
$region0: #{_lambda_.1}
  #allocation0 [shape = 'u32[]', space=smem, size = 0x4, offset = 0x4, fixed_abs, tag = 'smem constant byte address 0x4 - core index']
  #allocation1 [shape = 'u32[144,128]{1,0:T(1,128)}', space=vmem, size = 0x12000, scoped, tag = 'internal scratch']
  %s0 = inlined_call_operand.vmem [shape: s32[768,1], index: 0, kind: input, shape index: {}]
  %s1 = inlined_call_operand.vmem [shape: s32[128,1], index: 1, kind: input, shape index: {}]
  %s2 = inlined_call_operand.vmem [shape: s32[128,1], index: 2, kind: input, shape index: {}]
  %s3 = inlined_call_operand.vmem [shape: f32[48,64], index: 3, kind: input, shape index: {}]
  %s4 = inlined_call_operand.vmem [shape: f32[104,128], index: 4, kind: input, shape index: {}]
  %s5 = inlined_call_operand.vmem [shape: f32[40,128], index: 5, kind: input, shape index: {}]
  %s6 = inlined_call_operand.vmem [shape: f32[128,128], index: 6, kind: output, shape index: {}]
  %s7 = sld [smem:[#allocation0]]
  $region57: #{_lambda_.1} parent=0
    _
  %s9 = ssub.s32 1, %s7
  %s10 = scalar_select 0, %s9, %s7
  loop: start=0, step=1, limit=4
  $region2: #{_lambda_.1} parent=0 // loop_pre_header
    _
  $region3: #{_lambda_.1} parent=0 // loop_header
    %s12 = sphi 0, %s16
    %p13 = scmp.ge.s32.totalorder %s12, 4
    %s22 = sphi 0, %s24
    %s25 = sphi 0, %s22
    %s26 = sphi 0, %s25
    %s42 = sphi 0, %s26
    %s48 = sphi 0, %s50
    %s51 = sphi 0, %s48
    %s52 = sphi 0, %s51
    %s68 = sphi 0, %s52
    %s74 = sphi 0, %s76
    %s77 = sphi 0, %s74
    %s78 = sphi 0, %s77
    %s94 = sphi 0, %s78
    %s98 = sphi 0, %s98
    %s100 = sphi 0, %s98
    %s101 = sphi 0, %s100
    %s115 = sphi 0, %s101
    %s119 = sphi 0, %s119
    %s121 = sphi 0, %s119
    %s122 = sphi 0, %s121
    %s136 = sphi 0, %s122
    %s140 = sphi 0, %s140
    %s142 = sphi 0, %s140
    %s143 = sphi 0, %s142
    %s157 = sphi 0, %s143
    %s163 = sphi 0, %s165
    %s166 = sphi 0, %s163
    %s167 = sphi 0, %s166
    %s183 = sphi 0, %s167
  $region4: #{_lambda_.1} parent=0 // loop_header_branch
    %15 = sbr.rel (%p13) target = $region8
  $region5: #{_lambda_.1} parent=0 // loop_body
    %s17 = ssub.s32 %s12, 1
    %s18 = ssub.s32 %s12, 2
    %s19 = sadd.s32 %s12, 1
    %s20 = ssub.s32 %s12, %s19
    %p21 = scmp.eq.s32.totalorder %s20, 0
    %s23 = sadd.s32 %s22, 1
    %s24 = scalar_select %p21, %s22, %s23
    %p27 = pneg %p21
    %p28 = scmp.eq.s32.totalorder %s12, 1
    %p29 = por %p27, %p28
    %p30 = scmp.ne.s32.totalorder %s22, %s25
    %p31 = scmp.eq.s32.totalorder %s12, 0
    %p32 = por %p30, %p31
    %p33 = scmp.ne.s32.totalorder %s22, %s25
    %p34 = scmp.eq.s32.totalorder %s17, 1
    %p35 = por %p33, %p34
    %p36 = scmp.ne.s32.totalorder %s25, %s26
    %p37 = scmp.eq.s32.totalorder %s17, 0
    %p38 = por %p36, %p37
    %p39 = scmp.ne.s32.totalorder %s25, %s26
    %p40 = scmp.eq.s32.totalorder %s18, 1
    %p41 = por %p39, %p40
    %p43 = scmp.ne.s32.totalorder %s26, %s42
    %p44 = scmp.eq.s32.totalorder %s18, 0
    %p45 = por %p43, %p44
    %s46 = ssub.s32 %s12, %s19
    %p47 = scmp.eq.s32.totalorder %s46, 0
    %s49 = sadd.s32 %s48, 1
    %s50 = scalar_select %p47, %s48, %s49
    %p53 = pneg %p47
    %p54 = scmp.eq.s32.totalorder %s12, 1
    %p55 = por %p53, %p54
    %p56 = scmp.ne.s32.totalorder %s48, %s51
    %p57 = scmp.eq.s32.totalorder %s12, 0
    %p58 = por %p56, %p57
    %p59 = scmp.ne.s32.totalorder %s48, %s51
    %p60 = scmp.eq.s32.totalorder %s17, 1
    %p61 = por %p59, %p60
    %p62 = scmp.ne.s32.totalorder %s51, %s52
    %p63 = scmp.eq.s32.totalorder %s17, 0
    %p64 = por %p62, %p63
    %p65 = scmp.ne.s32.totalorder %s51, %s52
    %p66 = scmp.eq.s32.totalorder %s18, 1
    %p67 = por %p65, %p66
    %p69 = scmp.ne.s32.totalorder %s52, %s68
    %p70 = scmp.eq.s32.totalorder %s18, 0
    %p71 = por %p69, %p70
    %s72 = ssub.s32 %s12, %s19
    %p73 = scmp.eq.s32.totalorder %s72, 0
    %s75 = sadd.s32 %s74, 1
    %s76 = scalar_select %p73, %s74, %s75
    %p79 = pneg %p73
    %p80 = scmp.eq.s32.totalorder %s12, 1
    %p81 = por %p79, %p80
    %p82 = scmp.ne.s32.totalorder %s74, %s77
    %p83 = scmp.eq.s32.totalorder %s12, 0
    %p84 = por %p82, %p83
    %p85 = scmp.ne.s32.totalorder %s74, %s77
    %p86 = scmp.eq.s32.totalorder %s17, 1
    %p87 = por %p85, %p86
    %p88 = scmp.ne.s32.totalorder %s77, %s78
    %p89 = scmp.eq.s32.totalorder %s17, 0
    %p90 = por %p88, %p89
    %p91 = scmp.ne.s32.totalorder %s77, %s78
    %p92 = scmp.eq.s32.totalorder %s18, 1
    %p93 = por %p91, %p92
    %p95 = scmp.ne.s32.totalorder %s78, %s94
    %p96 = scmp.eq.s32.totalorder %s18, 0
    %p97 = por %p95, %p96
    %s99 = sadd.s32 %s98, 1
    %p102 = scmp.eq.s32.totalorder %s12, 1
    %p103 = scmp.ne.s32.totalorder %s98, %s100
    %p104 = scmp.eq.s32.totalorder %s12, 0
    %p105 = por %p103, %p104
    %p106 = scmp.ne.s32.totalorder %s98, %s100
    %p107 = scmp.eq.s32.totalorder %s17, 1
    %p108 = por %p106, %p107
    %p109 = scmp.ne.s32.totalorder %s100, %s101
    %p110 = scmp.eq.s32.totalorder %s17, 0
    %p111 = por %p109, %p110
    %p112 = scmp.ne.s32.totalorder %s100, %s101
    %p113 = scmp.eq.s32.totalorder %s18, 1
    %p114 = por %p112, %p113
    %p116 = scmp.ne.s32.totalorder %s101, %s115
    %p117 = scmp.eq.s32.totalorder %s18, 0
    %p118 = por %p116, %p117
    %s120 = sadd.s32 %s119, 1
    %p123 = scmp.eq.s32.totalorder %s12, 1
    %p124 = scmp.ne.s32.totalorder %s119, %s121
    %p125 = scmp.eq.s32.totalorder %s12, 0
    %p126 = por %p124, %p125
    %p127 = scmp.ne.s32.totalorder %s119, %s121
    %p128 = scmp.eq.s32.totalorder %s17, 1
    %p129 = por %p127, %p128
    %p130 = scmp.ne.s32.totalorder %s121, %s122
    %p131 = scmp.eq.s32.totalorder %s17, 0
    %p132 = por %p130, %p131
    %p133 = scmp.ne.s32.totalorder %s121, %s122
    %p134 = scmp.eq.s32.totalorder %s18, 1
    %p135 = por %p133, %p134
    %p137 = scmp.ne.s32.totalorder %s122, %s136
    %p138 = scmp.eq.s32.totalorder %s18, 0
    %p139 = por %p137, %p138
    %s141 = sadd.s32 %s140, 1
    %p144 = scmp.eq.s32.totalorder %s12, 1
    %p145 = scmp.ne.s32.totalorder %s140, %s142
    %p146 = scmp.eq.s32.totalorder %s12, 0
    %p147 = por %p145, %p146
    %p148 = scmp.ne.s32.totalorder %s140, %s142
    %p149 = scmp.eq.s32.totalorder %s17, 1
    %p150 = por %p148, %p149
    %p151 = scmp.ne.s32.totalorder %s142, %s143
    %p152 = scmp.eq.s32.totalorder %s17, 0
    %p153 = por %p151, %p152
    %p154 = scmp.ne.s32.totalorder %s142, %s143
    %p155 = scmp.eq.s32.totalorder %s18, 1
    %p156 = por %p154, %p155
    %p158 = scmp.ne.s32.totalorder %s143, %s157
    %p159 = scmp.eq.s32.totalorder %s18, 0
    %p160 = por %p158, %p159
    %s161 = ssub.s32 %s12, %s19
    %p162 = scmp.eq.s32.totalorder %s161, 0
    %s164 = sadd.s32 %s163, 1
    %s165 = scalar_select %p162, %s163, %s164
    %p168 = pneg %p162
    %p169 = scmp.eq.s32.totalorder %s12, 1
    %p170 = por %p168, %p169
    %p171 = scmp.ne.s32.totalorder %s163, %s166
    %p172 = scmp.eq.s32.totalorder %s12, 0
    %p173 = por %p171, %p172
    %p174 = scmp.ne.s32.totalorder %s163, %s166
    %p175 = scmp.eq.s32.totalorder %s17, 1
    %p176 = por %p174, %p175
    %p177 = scmp.ne.s32.totalorder %s166, %s167
    %p178 = scmp.eq.s32.totalorder %s17, 0
    %p179 = por %p177, %p178
    %p180 = scmp.ne.s32.totalorder %s166, %s167
    %p181 = scmp.eq.s32.totalorder %s18, 1
    %p182 = por %p180, %p181
    %p184 = scmp.ne.s32.totalorder %s167, %s183
    %p185 = scmp.eq.s32.totalorder %s18, 0
    %p186 = por %p184, %p185
    %p187 = scmp.le.s32.totalorder 1, %s12
    %p188 = scmp.lt.s32.totalorder %s12, 3
    %p189 = pnand %p187, %p188
    %p190 = pneg %p189
    // Predicated region
    $region9: #{_lambda_.1} parent=5 // pred_check
      _
    $region10: #{_lambda_.1} parent=5 // pred_check_branch
      %192 = sbr.rel (%p189) target = $region12
    $region11: #{_lambda_.1} parent=5 // pred_region
      %s193 = ssub.s32 %s12, 1
      // Predicated region
      $region13: #{_lambda_.1} parent=11 // pred_check
        %p194 = pneg %p111
      $region14: #{_lambda_.1} parent=11 // pred_check_branch
        %196 = sbr.rel (%p194) target = $region16
      $region15: #{_lambda_.1} parent=11 // pred_region
        _
      $region16: #{_lambda_.1} parent=11 // pred_fallthru
        _
      // Predicated region
      $region17: #{_lambda_.1} parent=11 // pred_check
        %p197 = pneg %p132
      $region18: #{_lambda_.1} parent=11 // pred_check_branch
        %199 = sbr.rel (%p197) target = $region20
      $region19: #{_lambda_.1} parent=11 // pred_region
        _
      $region20: #{_lambda_.1} parent=11 // pred_fallthru
        _
      // Predicated region
      $region21: #{_lambda_.1} parent=11 // pred_check
        %p200 = pneg %p153
      $region22: #{_lambda_.1} parent=11 // pred_check_branch
        %202 = sbr.rel (%p200) target = $region24
      $region23: #{_lambda_.1} parent=11 // pred_region
        _
      $region24: #{_lambda_.1} parent=11 // pred_fallthru
        _
    $region12: #{_lambda_.1} parent=5 // pred_fallthru
      _
    %p203 = scmp.lt.s32.totalorder %s12, 2
    // Predicated region
    $region25: #{_lambda_.1} parent=5 // pred_check
      %p204 = pneg %p203
    $region26: #{_lambda_.1} parent=5 // pred_check_branch
      %206 = sbr.rel (%p204) target = $region28
    $region27: #{_lambda_.1} parent=5 // pred_region
      // Predicated region
      $region29: #{_lambda_.1} parent=27 // pred_check
        %p207 = pneg %p32
      $region30: #{_lambda_.1} parent=27 // pred_check_branch
        %209 = sbr.rel (%p207) target = $region32
      $region31: #{_lambda_.1} parent=27 // pred_region
        %s210 = smul.u32 48, %s12
        %p211 = scmp.lt.s32.totalorder %s210, 95
        %s212 = scalar_select %p211, %s210, 95
        %s213 = smul.addr %s212, 8
        %s214 = scalar_lea.vmem %s0, %s213
        %s215 = smul.u32 48, %s12
      $region32: #{_lambda_.1} parent=27 // pred_fallthru
        _
      // Predicated region
      $region33: #{_lambda_.1} parent=27 // pred_check
        %p216 = pneg %p58
      $region34: #{_lambda_.1} parent=27 // pred_check_branch
        %218 = sbr.rel (%p216) target = $region36
      $region35: #{_lambda_.1} parent=27 // pred_region
        %s219 = smul.u32 8, %s12
        %p220 = scmp.lt.s32.totalorder %s219, 15
        %s221 = scalar_select %p220, %s219, 15
        %s222 = smul.addr %s221, 8
        %s223 = scalar_lea.vmem %s1, %s222
        %s224 = smul.u32 8, %s12
      $region36: #{_lambda_.1} parent=27 // pred_fallthru
        _
      // Predicated region
      $region37: #{_lambda_.1} parent=27 // pred_check
        %p225 = pneg %p84
      $region38: #{_lambda_.1} parent=27 // pred_check_branch
        %227 = sbr.rel (%p225) target = $region40
      $region39: #{_lambda_.1} parent=27 // pred_region
        %s228 = smul.u32 8, %s12
        %p229 = scmp.lt.s32.totalorder %s228, 15
        %s230 = scalar_select %p229, %s228, 15
        %s231 = smul.addr %s230, 8
        %s232 = scalar_lea.vmem %s2, %s231
        %s233 = smul.u32 8, %s12
      $region40: #{_lambda_.1} parent=27 // pred_fallthru
        _
    $region28: #{_lambda_.1} parent=5 // pred_fallthru
      _
    %p234 = scmp.le.s32.totalorder 1, %s12
    %p235 = scmp.lt.s32.totalorder %s12, 3
    %p236 = pnand %p234, %p235
    %p237 = pneg %p236
    // Predicated region
    $region41: #{_lambda_.1} parent=5 // pred_check
      _
    $region42: #{_lambda_.1} parent=5 // pred_check_branch
      %239 = sbr.rel (%p236) target = $region44
    $region43: #{_lambda_.1} parent=5 // pred_region
      %s240 = ssub.s32 %s12, 1
      %s241 = smul.u32 48, %s17
      %p242 = scmp.lt.s32.totalorder %s241, 95
      %s243 = scalar_select %p242, %s241, 95
      %s244 = smul.addr %s243, 8
      %s245 = scalar_lea.vmem %s0, %s244
      %p246 = pneg %p38
      %p247 = pneg %p35
      %s248 = smul.u32 8, %s17
      %p249 = scmp.lt.s32.totalorder %s248, 15
      %s250 = scalar_select %p249, %s248, 15
      %s251 = smul.addr %s250, 8
      %s252 = scalar_lea.vmem %s1, %s251
      %p253 = pneg %p64
      %p254 = pneg %p61
      %s255 = smul.u32 8, %s17
      %p256 = scmp.lt.s32.totalorder %s255, 15
      %s257 = scalar_select %p256, %s255, 15
      %s258 = smul.addr %s257, 8
      %s259 = scalar_lea.vmem %s2, %s258
      %p260 = pneg %p90
      %p261 = pneg %p87
      %p262 = pneg %p111
      %p263 = pneg %p108
      %p264 = pneg %p132
      %p265 = pneg %p129
      %p266 = pneg %p153
      %p267 = pneg %p150
      %p268 = pneg %p179
      %p269 = pneg %p176
      %s270 = smul.u32 8, %s17
      %p271 = scmp.lt.s32.totalorder %s270, 15
      %s272 = scalar_select %p271, %s270, 15
      %s273 = smul.addr %s272, 8
      %s274 = scalar_lea.vmem %s6, %s273
      %s275 = smul.u32 48, %s17
      %p276 = scmp.lt.s32.totalorder %s275, 95
      %s277 = scalar_select %p276, %s275, 95
      %s278 = smul.addr %s277, 8
      %s279 = scalar_lea.vmem %s0, %s278
      %s280 = smul.u32 48, %s17
      %s281 = smul.u32 8, %s17
      %p282 = scmp.lt.s32.totalorder %s281, 15
      %s283 = scalar_select %p282, %s281, 15
      %s284 = smul.addr %s283, 8
      %s285 = scalar_lea.vmem %s1, %s284
      %s286 = smul.u32 8, %s17
      %s287 = smul.u32 8, %s17
      %p288 = scmp.lt.s32.totalorder %s287, 15
      %s289 = scalar_select %p288, %s287, 15
      %s290 = smul.addr %s289, 8
      %s291 = scalar_lea.vmem %s2, %s290
      %s292 = smul.u32 8, %s17
      %s293 = smul.u32 8, %s17
      %p294 = scmp.lt.s32.totalorder %s293, 15
      %s295 = scalar_select %p294, %s293, 15
      %s296 = smul.addr %s295, 8
      %s297 = scalar_lea.vmem %s6, %s296
      %s298 = smul.u32 8, %s17
      %v299 = vld [vmem:[%s3] sm:$0xff]
      %v300 = vld [vmem:[%s3 + $0x8] sm:$0xff]
      %v301 = vld [vmem:[%s3 + $0x10] sm:$0xff]
      %v302 = vld [vmem:[%s3 + $0x18] sm:$0xff]
      %v303 = vld [vmem:[%s3 + $0x20] sm:$0xff]
      %v304 = vld [vmem:[%s3 + $0x28] sm:$0xff]
      %v305 = vld [vmem:[%s4] sm:$0xff]
      %v306 = vld [vmem:[%s4 + $0x8] sm:$0xff]
      %v307 = vld [vmem:[%s4 + $0x10] sm:$0xff]
      %v308 = vld [vmem:[%s4 + $0x18] sm:$0xff]
      %v309 = vld [vmem:[%s4 + $0x20] sm:$0xff]
      %v310 = vld [vmem:[%s4 + $0x28] sm:$0xff]
      %v311 = vld [vmem:[%s4 + $0x30] sm:$0xff]
      %v312 = vld [vmem:[%s4 + $0x38] sm:$0xff]
      %v313 = vld [vmem:[%s4 + $0x40] sm:$0xff]
      %v314 = vld [vmem:[%s4 + $0x48] sm:$0xff]
      %v315 = vld [vmem:[%s4 + $0x50] sm:$0xff]
      %v316 = vld [vmem:[%s4 + $0x58] sm:$0xff]
      %v317 = vld [vmem:[%s4 + $0x60] sm:$0xff]
      %v318 = vld [vmem:[%s5] sm:$0xff]
      %v319 = vld [vmem:[%s5 + $0x8] sm:$0xff]
      %v320 = vld [vmem:[%s5 + $0x10] sm:$0xff]
      %v321 = vld [vmem:[%s5 + $0x18] sm:$0xff]
      %v322 = vld [vmem:[%s5 + $0x20] sm:$0x1]
      %v323 = vld [vmem:[%s279] sm:$0xff]
      %v324 = vld [vmem:[%s279 + $0x8] sm:$0xff]
      %v325 = vld [vmem:[%s279 + $0x10] sm:$0xff]
      %v326 = vld [vmem:[%s279 + $0x18] sm:$0xff]
      %v327 = vld [vmem:[%s279 + $0x20] sm:$0xff]
      %v328 = vld [vmem:[%s279 + $0x28] sm:$0xff]
      %v329 = vld [vmem:[%s279 + $0x30] sm:$0xff]
      %v330 = vld [vmem:[%s279 + $0x38] sm:$0xff]
      %v331 = vld [vmem:[%s279 + $0x40] sm:$0xff]
      %v332 = vld [vmem:[%s279 + $0x48] sm:$0xff]
      %v333 = vld [vmem:[%s279 + $0x50] sm:$0xff]
      %v334 = vld [vmem:[%s279 + $0x58] sm:$0xff]
      %v335 = vld [vmem:[%s279 + $0x60] sm:$0xff]
      %v336 = vld [vmem:[%s279 + $0x68] sm:$0xff]
      %v337 = vld [vmem:[%s279 + $0x70] sm:$0xff]
      %v338 = vld [vmem:[%s279 + $0x78] sm:$0xff]
      %v339 = vld [vmem:[%s279 + $0x80] sm:$0xff]
      %v340 = vld [vmem:[%s279 + $0x88] sm:$0xff]
      %v341 = vld [vmem:[%s279 + $0x90] sm:$0xff]
      %v342 = vld [vmem:[%s279 + $0x98] sm:$0xff]
      %v343 = vld [vmem:[%s279 + $0xa0] sm:$0xff]
      %v344 = vld [vmem:[%s279 + $0xa8] sm:$0xff]
      %v345 = vld [vmem:[%s279 + $0xb0] sm:$0xff]
      %v346 = vld [vmem:[%s279 + $0xb8] sm:$0xff]
      %v347 = vld [vmem:[%s279 + $0xc0] sm:$0xff]
      %v348 = vld [vmem:[%s279 + $0xc8] sm:$0xff]
      %v349 = vld [vmem:[%s279 + $0xd0] sm:$0xff]
      %v350 = vld [vmem:[%s279 + $0xd8] sm:$0xff]
      %v351 = vld [vmem:[%s279 + $0xe0] sm:$0xff]
      %v352 = vld [vmem:[%s279 + $0xe8] sm:$0xff]
      %v353 = vld [vmem:[%s279 + $0xf0] sm:$0xff]
      %v354 = vld [vmem:[%s279 + $0xf8] sm:$0xff]
      %v355 = vld [vmem:[%s279 + $0x100] sm:$0xff]
      %v356 = vld [vmem:[%s279 + $0x108] sm:$0xff]
      %v357 = vld [vmem:[%s279 + $0x110] sm:$0xff]
      %v358 = vld [vmem:[%s279 + $0x118] sm:$0xff]
      %v359 = vld [vmem:[%s279 + $0x120] sm:$0xff]
      %v360 = vld [vmem:[%s279 + $0x128] sm:$0xff]
      %v361 = vld [vmem:[%s279 + $0x130] sm:$0xff]
      %v362 = vld [vmem:[%s279 + $0x138] sm:$0xff]
      %v363 = vld [vmem:[%s279 + $0x140] sm:$0xff]
      %v364 = vld [vmem:[%s279 + $0x148] sm:$0xff]
      %v365 = vld [vmem:[%s279 + $0x150] sm:$0xff]
      %v366 = vld [vmem:[%s279 + $0x158] sm:$0xff]
      %v367 = vld [vmem:[%s279 + $0x160] sm:$0xff]
      %v368 = vld [vmem:[%s279 + $0x168] sm:$0xff]
      %v369 = vld [vmem:[%s279 + $0x170] sm:$0xff]
      %v370 = vld [vmem:[%s279 + $0x178] sm:$0xff]
      %v371 = vlaneseq
      %v372 = vand.u32 %v371, 127
      %373 = vset.pattern.permute.xlu0 0
      %374 = vperm.xlu0 %373, %v323
      %v375 = vpop.permute.xlu0 %374
      %376 = vset.pattern.permute.xlu0 0
      %377 = vperm.xlu0 %376, %v324
      %v378 = vpop.permute.xlu0 %377
      %379 = vset.pattern.permute.xlu0 0
      %380 = vperm.xlu0 %379, %v325
      %v381 = vpop.permute.xlu0 %380
      %382 = vset.pattern.permute.xlu0 0
      %383 = vperm.xlu0 %382, %v326
      %v384 = vpop.permute.xlu0 %383
      %385 = vset.pattern.permute.xlu0 0
      %386 = vperm.xlu0 %385, %v327
      %v387 = vpop.permute.xlu0 %386
      %388 = vset.pattern.permute.xlu0 0
      %389 = vperm.xlu0 %388, %v328
      %v390 = vpop.permute.xlu0 %389
      %391 = vset.pattern.permute.xlu0 0
      %392 = vperm.xlu0 %391, %v329
      %v393 = vpop.permute.xlu0 %392
      %394 = vset.pattern.permute.xlu0 0
      %395 = vperm.xlu0 %394, %v330
      %v396 = vpop.permute.xlu0 %395
      %397 = vset.pattern.permute.xlu0 0
      %398 = vperm.xlu0 %397, %v331
      %v399 = vpop.permute.xlu0 %398
      %400 = vset.pattern.permute.xlu0 0
      %401 = vperm.xlu0 %400, %v332
      %v402 = vpop.permute.xlu0 %401
      %403 = vset.pattern.permute.xlu0 0
      %404 = vperm.xlu0 %403, %v333
      %v405 = vpop.permute.xlu0 %404
      %406 = vset.pattern.permute.xlu0 0
      %407 = vperm.xlu0 %406, %v334
      %v408 = vpop.permute.xlu0 %407
      %409 = vset.pattern.permute.xlu0 0
      %410 = vperm.xlu0 %409, %v335
      %v411 = vpop.permute.xlu0 %410
      %412 = vset.pattern.permute.xlu0 0
      %413 = vperm.xlu0 %412, %v336
      %v414 = vpop.permute.xlu0 %413
      %415 = vset.pattern.permute.xlu0 0
      %416 = vperm.xlu0 %415, %v337
      %v417 = vpop.permute.xlu0 %416
      %418 = vset.pattern.permute.xlu0 0
      %419 = vperm.xlu0 %418, %v338
      %v420 = vpop.permute.xlu0 %419
      %421 = vset.pattern.permute.xlu0 0
      %422 = vperm.xlu0 %421, %v339
      %v423 = vpop.permute.xlu0 %422
      %424 = vset.pattern.permute.xlu0 0
      %425 = vperm.xlu0 %424, %v340
      %v426 = vpop.permute.xlu0 %425
      %427 = vset.pattern.permute.xlu0 0
      %428 = vperm.xlu0 %427, %v341
      %v429 = vpop.permute.xlu0 %428
      %430 = vset.pattern.permute.xlu0 0
      %431 = vperm.xlu0 %430, %v342
      %v432 = vpop.permute.xlu0 %431
      %433 = vset.pattern.permute.xlu0 0
      %434 = vperm.xlu0 %433, %v343
      %v435 = vpop.permute.xlu0 %434
      %436 = vset.pattern.permute.xlu0 0
      %437 = vperm.xlu0 %436, %v344
      %v438 = vpop.permute.xlu0 %437
      %439 = vset.pattern.permute.xlu0 0
      %440 = vperm.xlu0 %439, %v345
      %v441 = vpop.permute.xlu0 %440
      %442 = vset.pattern.permute.xlu0 0
      %443 = vperm.xlu0 %442, %v346
      %v444 = vpop.permute.xlu0 %443
      %445 = vset.pattern.permute.xlu0 0
      %446 = vperm.xlu0 %445, %v347
      %v447 = vpop.permute.xlu0 %446
      %448 = vset.pattern.permute.xlu0 0
      %449 = vperm.xlu0 %448, %v348
      %v450 = vpop.permute.xlu0 %449
      %451 = vset.pattern.permute.xlu0 0
      %452 = vperm.xlu0 %451, %v349
      %v453 = vpop.permute.xlu0 %452
      %454 = vset.pattern.permute.xlu0 0
      %455 = vperm.xlu0 %454, %v350
      %v456 = vpop.permute.xlu0 %455
      %457 = vset.pattern.permute.xlu0 0
      %458 = vperm.xlu0 %457, %v351
      %v459 = vpop.permute.xlu0 %458
      %460 = vset.pattern.permute.xlu0 0
      %461 = vperm.xlu0 %460, %v352
      %v462 = vpop.permute.xlu0 %461
      %463 = vset.pattern.permute.xlu0 0
      %464 = vperm.xlu0 %463, %v353
      %v465 = vpop.permute.xlu0 %464
      %466 = vset.pattern.permute.xlu0 0
      %467 = vperm.xlu0 %466, %v354
      %v468 = vpop.permute.xlu0 %467
      %469 = vset.pattern.permute.xlu0 0
      %470 = vperm.xlu0 %469, %v355
      %v471 = vpop.permute.xlu0 %470
      %472 = vset.pattern.permute.xlu0 0
      %473 = vperm.xlu0 %472, %v356
      %v474 = vpop.permute.xlu0 %473
      %475 = vset.pattern.permute.xlu0 0
      %476 = vperm.xlu0 %475, %v357
      %v477 = vpop.permute.xlu0 %476
      %478 = vset.pattern.permute.xlu0 0
      %479 = vperm.xlu0 %478, %v358
      %v480 = vpop.permute.xlu0 %479
      %481 = vset.pattern.permute.xlu0 0
      %482 = vperm.xlu0 %481, %v359
      %v483 = vpop.permute.xlu0 %482
      %484 = vset.pattern.permute.xlu0 0
      %485 = vperm.xlu0 %484, %v360
      %v486 = vpop.permute.xlu0 %485
      %487 = vset.pattern.permute.xlu0 0
      %488 = vperm.xlu0 %487, %v361
      %v489 = vpop.permute.xlu0 %488
      %490 = vset.pattern.permute.xlu0 0
      %491 = vperm.xlu0 %490, %v362
      %v492 = vpop.permute.xlu0 %491
      %493 = vset.pattern.permute.xlu0 0
      %494 = vperm.xlu0 %493, %v363
      %v495 = vpop.permute.xlu0 %494
      %496 = vset.pattern.permute.xlu0 0
      %497 = vperm.xlu0 %496, %v364
      %v498 = vpop.permute.xlu0 %497
      %499 = vset.pattern.permute.xlu0 0
      %500 = vperm.xlu0 %499, %v365
      %v501 = vpop.permute.xlu0 %500
      %502 = vset.pattern.permute.xlu0 0
      %503 = vperm.xlu0 %502, %v366
      %v504 = vpop.permute.xlu0 %503
      %505 = vset.pattern.permute.xlu0 0
      %506 = vperm.xlu0 %505, %v367
      %v507 = vpop.permute.xlu0 %506
      %508 = vset.pattern.permute.xlu0 0
      %509 = vperm.xlu0 %508, %v368
      %v510 = vpop.permute.xlu0 %509
      %511 = vset.pattern.permute.xlu0 0
      %512 = vperm.xlu0 %511, %v369
      %v513 = vpop.permute.xlu0 %512
      %514 = vset.pattern.permute.xlu0 0
      %515 = vperm.xlu0 %514, %v370
      %v516 = vpop.permute.xlu0 %515
      %vm517 = vcmp.eq.s32.totalorder %v375, %v372
      %vm518 = vcmp.eq.s32.totalorder %v378, %v372
      %vm519 = vcmp.eq.s32.totalorder %v381, %v372
      %vm520 = vcmp.eq.s32.totalorder %v384, %v372
      %vm521 = vcmp.eq.s32.totalorder %v387, %v372
      %vm522 = vcmp.eq.s32.totalorder %v390, %v372
      %vm523 = vcmp.eq.s32.totalorder %v393, %v372
      %vm524 = vcmp.eq.s32.totalorder %v396, %v372
      %vm525 = vcmp.eq.s32.totalorder %v399, %v372
      %vm526 = vcmp.eq.s32.totalorder %v402, %v372
      %vm527 = vcmp.eq.s32.totalorder %v405, %v372
      %vm528 = vcmp.eq.s32.totalorder %v408, %v372
      %vm529 = vcmp.eq.s32.totalorder %v411, %v372
      %vm530 = vcmp.eq.s32.totalorder %v414, %v372
      %vm531 = vcmp.eq.s32.totalorder %v417, %v372
      %vm532 = vcmp.eq.s32.totalorder %v420, %v372
      %vm533 = vcmp.eq.s32.totalorder %v423, %v372
      %vm534 = vcmp.eq.s32.totalorder %v426, %v372
      %vm535 = vcmp.eq.s32.totalorder %v429, %v372
      %vm536 = vcmp.eq.s32.totalorder %v432, %v372
      %vm537 = vcmp.eq.s32.totalorder %v435, %v372
      %vm538 = vcmp.eq.s32.totalorder %v438, %v372
      %vm539 = vcmp.eq.s32.totalorder %v441, %v372
      %vm540 = vcmp.eq.s32.totalorder %v444, %v372
      %vm541 = vcmp.eq.s32.totalorder %v447, %v372
      %vm542 = vcmp.eq.s32.totalorder %v450, %v372
      %vm543 = vcmp.eq.s32.totalorder %v453, %v372
      %vm544 = vcmp.eq.s32.totalorder %v456, %v372
      %vm545 = vcmp.eq.s32.totalorder %v459, %v372
      %vm546 = vcmp.eq.s32.totalorder %v462, %v372
      %vm547 = vcmp.eq.s32.totalorder %v465, %v372
      %vm548 = vcmp.eq.s32.totalorder %v468, %v372
      %vm549 = vcmp.eq.s32.totalorder %v471, %v372
      %vm550 = vcmp.eq.s32.totalorder %v474, %v372
      %vm551 = vcmp.eq.s32.totalorder %v477, %v372
      %vm552 = vcmp.eq.s32.totalorder %v480, %v372
      %vm553 = vcmp.eq.s32.totalorder %v483, %v372
      %vm554 = vcmp.eq.s32.totalorder %v486, %v372
      %vm555 = vcmp.eq.s32.totalorder %v489, %v372
      %vm556 = vcmp.eq.s32.totalorder %v492, %v372
      %vm557 = vcmp.eq.s32.totalorder %v495, %v372
      %vm558 = vcmp.eq.s32.totalorder %v498, %v372
      %vm559 = vcmp.eq.s32.totalorder %v501, %v372
      %vm560 = vcmp.eq.s32.totalorder %v504, %v372
      %vm561 = vcmp.eq.s32.totalorder %v507, %v372
      %vm562 = vcmp.eq.s32.totalorder %v510, %v372
      %vm563 = vcmp.eq.s32.totalorder %v513, %v372
      %vm564 = vcmp.eq.s32.totalorder %v516, %v372
      %v565 = vsel %vm517, 1, 0
      %v566 = vsel %vm518, 1, 0
      %v567 = vsel %vm519, 1, 0
      %v568 = vsel %vm520, 1, 0
      %v569 = vsel %vm521, 1, 0
      %v570 = vsel %vm522, 1, 0
      %v571 = vsel %vm523, 1, 0
      %v572 = vsel %vm524, 1, 0
      %v573 = vsel %vm525, 1, 0
      %v574 = vsel %vm526, 1, 0
      %v575 = vsel %vm527, 1, 0
      %v576 = vsel %vm528, 1, 0
      %v577 = vsel %vm529, 1, 0
      %v578 = vsel %vm530, 1, 0
      %v579 = vsel %vm531, 1, 0
      %v580 = vsel %vm532, 1, 0
      %v581 = vsel %vm533, 1, 0
      %v582 = vsel %vm534, 1, 0
      %v583 = vsel %vm535, 1, 0
      %v584 = vsel %vm536, 1, 0
      %v585 = vsel %vm537, 1, 0
      %v586 = vsel %vm538, 1, 0
      %v587 = vsel %vm539, 1, 0
      %v588 = vsel %vm540, 1, 0
      %v589 = vsel %vm541, 1, 0
      %v590 = vsel %vm542, 1, 0
      %v591 = vsel %vm543, 1, 0
      %v592 = vsel %vm544, 1, 0
      %v593 = vsel %vm545, 1, 0
      %v594 = vsel %vm546, 1, 0
      %v595 = vsel %vm547, 1, 0
      %v596 = vsel %vm548, 1, 0
      %v597 = vsel %vm549, 1, 0
      %v598 = vsel %vm550, 1, 0
      %v599 = vsel %vm551, 1, 0
      %v600 = vsel %vm552, 1, 0
      %v601 = vsel %vm553, 1, 0
      %v602 = vsel %vm554, 1, 0
      %v603 = vsel %vm555, 1, 0
      %v604 = vsel %vm556, 1, 0
      %v605 = vsel %vm557, 1, 0
      %v606 = vsel %vm558, 1, 0
      %v607 = vsel %vm559, 1, 0
      %v608 = vsel %vm560, 1, 0
      %v609 = vsel %vm561, 1, 0
      %v610 = vsel %vm562, 1, 0
      %v611 = vsel %vm563, 1, 0
      %v612 = vsel %vm564, 1, 0
      %v613 = vcvt.s32.f32 %v565
      %v614 = vcvt.s32.f32 %v566
      %v615 = vcvt.s32.f32 %v567
      %v616 = vcvt.s32.f32 %v568
      %v617 = vcvt.s32.f32 %v569
      %v618 = vcvt.s32.f32 %v570
      %v619 = vcvt.s32.f32 %v571
      %v620 = vcvt.s32.f32 %v572
      %v621 = vcvt.s32.f32 %v573
      %v622 = vcvt.s32.f32 %v574
      %v623 = vcvt.s32.f32 %v575
      %v624 = vcvt.s32.f32 %v576
      %v625 = vcvt.s32.f32 %v577
      %v626 = vcvt.s32.f32 %v578
      %v627 = vcvt.s32.f32 %v579
      %v628 = vcvt.s32.f32 %v580
      %v629 = vcvt.s32.f32 %v581
      %v630 = vcvt.s32.f32 %v582
      %v631 = vcvt.s32.f32 %v583
      %v632 = vcvt.s32.f32 %v584
      %v633 = vcvt.s32.f32 %v585
      %v634 = vcvt.s32.f32 %v586
      %v635 = vcvt.s32.f32 %v587
      %v636 = vcvt.s32.f32 %v588
      %v637 = vcvt.s32.f32 %v589
      %v638 = vcvt.s32.f32 %v590
      %v639 = vcvt.s32.f32 %v591
      %v640 = vcvt.s32.f32 %v592
      %v641 = vcvt.s32.f32 %v593
      %v642 = vcvt.s32.f32 %v594
      %v643 = vcvt.s32.f32 %v595
      %v644 = vcvt.s32.f32 %v596
      %v645 = vcvt.s32.f32 %v597
      %v646 = vcvt.s32.f32 %v598
      %v647 = vcvt.s32.f32 %v599
      %v648 = vcvt.s32.f32 %v600
      %v649 = vcvt.s32.f32 %v601
      %v650 = vcvt.s32.f32 %v602
      %v651 = vcvt.s32.f32 %v603
      %v652 = vcvt.s32.f32 %v604
      %v653 = vcvt.s32.f32 %v605
      %v654 = vcvt.s32.f32 %v606
      %v655 = vcvt.s32.f32 %v607
      %v656 = vcvt.s32.f32 %v608
      %v657 = vcvt.s32.f32 %v609
      %v658 = vcvt.s32.f32 %v610
      %v659 = vcvt.s32.f32 %v611
      %v660 = vcvt.s32.f32 %v612
      %vm661 = vcmask 261120
      %v663 = vsel %vm661, %v613, 0
      %v666 = vsel %vm661, %v614, 0
      %v669 = vsel %vm661, %v615, 0
      %v672 = vsel %vm661, %v616, 0
      %v675 = vsel %vm661, %v617, 0
      %v678 = vsel %vm661, %v618, 0
      %v681 = vsel %vm661, %v619, 0
      %v684 = vsel %vm661, %v620, 0
      %v687 = vsel %vm661, %v621, 0
      %v690 = vsel %vm661, %v622, 0
      %v693 = vsel %vm661, %v623, 0
      %v696 = vsel %vm661, %v624, 0
      %v699 = vsel %vm661, %v625, 0
      %v702 = vsel %vm661, %v626, 0
      %v705 = vsel %vm661, %v627, 0
      %v708 = vsel %vm661, %v628, 0
      %v711 = vsel %vm661, %v629, 0
      %v714 = vsel %vm661, %v630, 0
      %v717 = vsel %vm661, %v631, 0
      %v720 = vsel %vm661, %v632, 0
      %v723 = vsel %vm661, %v633, 0
      %v726 = vsel %vm661, %v634, 0
      %v729 = vsel %vm661, %v635, 0
      %v732 = vsel %vm661, %v636, 0
      %v735 = vsel %vm661, %v637, 0
      %v738 = vsel %vm661, %v638, 0
      %v741 = vsel %vm661, %v639, 0
      %v744 = vsel %vm661, %v640, 0
      %v747 = vsel %vm661, %v641, 0
      %v750 = vsel %vm661, %v642, 0
      %v753 = vsel %vm661, %v643, 0
      %v756 = vsel %vm661, %v644, 0
      %v759 = vsel %vm661, %v645, 0
      %v762 = vsel %vm661, %v646, 0
      %v765 = vsel %vm661, %v647, 0
      %v768 = vsel %vm661, %v648, 0
      %v771 = vsel %vm661, %v649, 0
      %v774 = vsel %vm661, %v650, 0
      %v777 = vsel %vm661, %v651, 0
      %v780 = vsel %vm661, %v652, 0
      %v783 = vsel %vm661, %v653, 0
      %v786 = vsel %vm661, %v654, 0
      %v789 = vsel %vm661, %v655, 0
      %v792 = vsel %vm661, %v656, 0
      %v795 = vsel %vm661, %v657, 0
      %v798 = vsel %vm661, %v658, 0
      %v801 = vsel %vm661, %v659, 0
      %v804 = vsel %vm661, %v660, 0
      %806 = vmatprep.subr.mxu0 0.0
      %807 = vmatpush1.msra.mxu0 0.0
      %808 = vmatprep.subr.mxu0 0.0
      %809 = vmatpush1.msra.mxu0 0.0
      %810 = vmatprep.subr.mxu0 0.0
      %811 = vmatpush1.msra.mxu0 0.0
      %812 = vmatprep.subr.mxu0 0.0
      %813 = vmatpush1.msra.mxu0 0.0
      %814 = vmatprep.subr.mxu0 0.0
      %815 = vmatpush1.msra.mxu0 0.0
      %816 = vmatprep.subr.mxu0 0.0
      %817 = vmatpush1.msra.mxu0 0.0
      %818 = vmatprep.subr.mxu0 0.0
      %819 = vmatpush1.msra.mxu0 0.0
      %820 = vmatprep.subr.mxu0 0.0
      %821 = vmatpush1.msra.mxu0 0.0
      %822 = vmatprep.subr.mxu0 0.0
      %823 = vmatpush1.msra.mxu0 0.0
      %824 = vmatprep.subr.mxu0 0.0
      %825 = vmatpush1.msra.mxu0 0.0
      %826 = vmatprep.subr.mxu0 0.0
      %827 = vmatpush1.msra.mxu0 0.0
      %828 = vmatprep.subr.mxu0 0.0
      %829 = vmatpush1.msra.mxu0 0.0
      %830 = vmatprep.subr.mxu0 0.0
      %831 = vmatpush1.msra.mxu0 %v302
      %832 = vmatprep.subr.mxu0 0.0
      %833 = vmatpush1.msra.mxu0 %v301
      %834 = vmatprep.subr.mxu0 0.0
      %835 = vmatpush1.msra.mxu0 %v300
      %836 = vmatprep.subr.mxu0 0.0
      %837 = vmatpush1.msra.mxu0 %v299
      %838 = vmatprep.subr.mxu0 0.0
      %839 = vmatpush2.msra.mxu0 0.0
      %840 = vmatprep.subr.mxu0 0.0
      %841 = vmatpush2.msra.mxu0 0.0
      %842 = vmatprep.subr.mxu0 0.0
      %843 = vmatpush2.msra.mxu0 0.0
      %844 = vmatprep.subr.mxu0 0.0
      %845 = vmatpush2.msra.mxu0 0.0
      %846 = vmatprep.subr.mxu0 0.0
      %847 = vmatpush2.msra.mxu0 0.0
      %848 = vmatprep.subr.mxu0 0.0
      %849 = vmatpush2.msra.mxu0 0.0
      %850 = vmatprep.subr.mxu0 0.0
      %851 = vmatpush2.msra.mxu0 0.0
      %852 = vmatprep.subr.mxu0 0.0
      %853 = vmatpush2.msra.mxu0 0.0
      %854 = vmatprep.subr.mxu0 0.0
      %855 = vmatpush2.msra.mxu0 0.0
      %856 = vmatprep.subr.mxu0 0.0
      %857 = vmatpush2.msra.mxu0 0.0
      %858 = vmatprep.subr.mxu0 0.0
      %859 = vmatpush2.msra.mxu0 0.0
      %860 = vmatprep.subr.mxu0 0.0
      %861 = vmatpush2.msra.mxu0 0.0
      %862 = vmatprep.subr.mxu0 0.0
      %863 = vmatpush2.msra.mxu0 0.0
      %864 = vmatprep.subr.mxu0 0.0
      %865 = vmatpush2.msra.mxu0 0.0
      %866 = vmatprep.subr.mxu0 0.0
      %867 = vmatpush2.msra.mxu0 0.0
      %868 = vmatprep.subr.mxu0 0.0
      %869 = vmatpush2.msra.mxu0 0.0
      %870 = vmatprep.mubr.f32.mxu0 0.0
      %871 = vmatmul.mubr.f32.gmra.mxu0 %v663
      %v872 = vpop.f32.mrf.mxu0
      %v873 = vadd.f32 0.0, %v872
      %v874 = vpop.f32.mrf.mxu0
      %875 = vmatprep.mubr.f32.mxu0 0.0
      %876 = vmatmul.mubr.f32.gmra.mxu0 %v666
      %v877 = vpop.f32.mrf.mxu0
      %v878 = vadd.f32 0.0, %v877
      %v879 = vpop.f32.mrf.mxu0
      %880 = vmatprep.mubr.f32.mxu0 0.0
      %881 = vmatmul.mubr.f32.gmra.mxu0 %v669
      %v882 = vpop.f32.mrf.mxu0
      %v883 = vadd.f32 0.0, %v882
      %v884 = vpop.f32.mrf.mxu0
      %885 = vmatprep.mubr.f32.mxu0 0.0
      %886 = vmatmul.mubr.f32.gmra.mxu0 %v672
      %v887 = vpop.f32.mrf.mxu0
      %v888 = vadd.f32 0.0, %v887
      %v889 = vpop.f32.mrf.mxu0
      %890 = vmatprep.mubr.f32.mxu0 0.0
      %891 = vmatmul.mubr.f32.gmra.mxu0 %v675
      %v892 = vpop.f32.mrf.mxu0
      %v893 = vadd.f32 0.0, %v892
      %v894 = vpop.f32.mrf.mxu0
      %895 = vmatprep.mubr.f32.mxu0 0.0
      %896 = vmatmul.mubr.f32.gmra.mxu0 %v678
      %v897 = vpop.f32.mrf.mxu0
      %v898 = vadd.f32 0.0, %v897
      %v899 = vpop.f32.mrf.mxu0
      %900 = vmatprep.mubr.f32.mxu0 0.0
      %901 = vmatmul.mubr.f32.gmra.mxu0 %v681
      %v902 = vpop.f32.mrf.mxu0
      %v903 = vadd.f32 0.0, %v902
      %v904 = vpop.f32.mrf.mxu0
      %905 = vmatprep.mubr.f32.mxu0 0.0
      %906 = vmatmul.mubr.f32.gmra.mxu0 %v684
      %v907 = vpop.f32.mrf.mxu0
      %v908 = vadd.f32 0.0, %v907
      %v909 = vpop.f32.mrf.mxu0
      %910 = vmatprep.mubr.f32.mxu0 0.0
      %911 = vmatmul.mubr.f32.gmra.mxu0 %v687
      %v912 = vpop.f32.mrf.mxu0
      %v913 = vadd.f32 0.0, %v912
      %v914 = vpop.f32.mrf.mxu0
      %915 = vmatprep.mubr.f32.mxu0 0.0
      %916 = vmatmul.mubr.f32.gmra.mxu0 %v690
      %v917 = vpop.f32.mrf.mxu0
      %v918 = vadd.f32 0.0, %v917
      %v919 = vpop.f32.mrf.mxu0
      %920 = vmatprep.mubr.f32.mxu0 0.0
      %921 = vmatmul.mubr.f32.gmra.mxu0 %v693
      %v922 = vpop.f32.mrf.mxu0
      %v923 = vadd.f32 0.0, %v922
      %v924 = vpop.f32.mrf.mxu0
      %925 = vmatprep.mubr.f32.mxu0 0.0
      %926 = vmatmul.mubr.f32.gmra.mxu0 %v696
      %v927 = vpop.f32.mrf.mxu0
      %v928 = vadd.f32 0.0, %v927
      %v929 = vpop.f32.mrf.mxu0
      %930 = vmatprep.mubr.f32.mxu0 0.0
      %931 = vmatmul.mubr.f32.gmra.mxu0 %v699
      %v932 = vpop.f32.mrf.mxu0
      %v933 = vadd.f32 0.0, %v932
      %v934 = vpop.f32.mrf.mxu0
      %935 = vmatprep.mubr.f32.mxu0 0.0
      %936 = vmatmul.mubr.f32.gmra.mxu0 %v702
      %v937 = vpop.f32.mrf.mxu0
      %v938 = vadd.f32 0.0, %v937
      %v939 = vpop.f32.mrf.mxu0
      %940 = vmatprep.mubr.f32.mxu0 0.0
      %941 = vmatmul.mubr.f32.gmra.mxu0 %v705
      %v942 = vpop.f32.mrf.mxu0
      %v943 = vadd.f32 0.0, %v942
      %v944 = vpop.f32.mrf.mxu0
      %945 = vmatprep.mubr.f32.mxu0 0.0
      %946 = vmatmul.mubr.f32.gmra.mxu0 %v708
      %v947 = vpop.f32.mrf.mxu0
      %v948 = vadd.f32 0.0, %v947
      %v949 = vpop.f32.mrf.mxu0
      %950 = vmatprep.mubr.f32.mxu0 0.0
      %951 = vmatmul.mubr.f32.gmra.mxu0 %v711
      %v952 = vpop.f32.mrf.mxu0
      %v953 = vadd.f32 0.0, %v952
      %v954 = vpop.f32.mrf.mxu0
      %955 = vmatprep.mubr.f32.mxu0 0.0
      %956 = vmatmul.mubr.f32.gmra.mxu0 %v714
      %v957 = vpop.f32.mrf.mxu0
      %v958 = vadd.f32 0.0, %v957
      %v959 = vpop.f32.mrf.mxu0
      %960 = vmatprep.mubr.f32.mxu0 0.0
      %961 = vmatmul.mubr.f32.gmra.mxu0 %v717
      %v962 = vpop.f32.mrf.mxu0
      %v963 = vadd.f32 0.0, %v962
      %v964 = vpop.f32.mrf.mxu0
      %965 = vmatprep.mubr.f32.mxu0 0.0
      %966 = vmatmul.mubr.f32.gmra.mxu0 %v720
      %v967 = vpop.f32.mrf.mxu0
      %v968 = vadd.f32 0.0, %v967
      %v969 = vpop.f32.mrf.mxu0
      %970 = vmatprep.mubr.f32.mxu0 0.0
      %971 = vmatmul.mubr.f32.gmra.mxu0 %v723
      %v972 = vpop.f32.mrf.mxu0
      %v973 = vadd.f32 0.0, %v972
      %v974 = vpop.f32.mrf.mxu0
      %975 = vmatprep.mubr.f32.mxu0 0.0
      %976 = vmatmul.mubr.f32.gmra.mxu0 %v726
      %v977 = vpop.f32.mrf.mxu0
      %v978 = vadd.f32 0.0, %v977
      %v979 = vpop.f32.mrf.mxu0
      %980 = vmatprep.mubr.f32.mxu0 0.0
      %981 = vmatmul.mubr.f32.gmra.mxu0 %v729
      %v982 = vpop.f32.mrf.mxu0
      %v983 = vadd.f32 0.0, %v982
      %v984 = vpop.f32.mrf.mxu0
      %985 = vmatprep.mubr.f32.mxu0 0.0
      %986 = vmatmul.mubr.f32.gmra.mxu0 %v732
      %v987 = vpop.f32.mrf.mxu0
      %v988 = vadd.f32 0.0, %v987
      %v989 = vpop.f32.mrf.mxu0
      %990 = vmatprep.mubr.f32.mxu0 0.0
      %991 = vmatmul.mubr.f32.gmra.mxu0 %v735
      %v992 = vpop.f32.mrf.mxu0
      %v993 = vadd.f32 0.0, %v992
      %v994 = vpop.f32.mrf.mxu0
      %995 = vmatprep.mubr.f32.mxu0 0.0
      %996 = vmatmul.mubr.f32.gmra.mxu0 %v738
      %v997 = vpop.f32.mrf.mxu0
      %v998 = vadd.f32 0.0, %v997
      %v999 = vpop.f32.mrf.mxu0
      %1000 = vmatprep.mubr.f32.mxu0 0.0
      %1001 = vmatmul.mubr.f32.gmra.mxu0 %v741
      %v1002 = vpop.f32.mrf.mxu0
      %v1003 = vadd.f32 0.0, %v1002
      %v1004 = vpop.f32.mrf.mxu0
      %1005 = vmatprep.mubr.f32.mxu0 0.0
      %1006 = vmatmul.mubr.f32.gmra.mxu0 %v744
      %v1007 = vpop.f32.mrf.mxu0
      %v1008 = vadd.f32 0.0, %v1007
      %v1009 = vpop.f32.mrf.mxu0
      %1010 = vmatprep.mubr.f32.mxu0 0.0
      %1011 = vmatmul.mubr.f32.gmra.mxu0 %v747
      %v1012 = vpop.f32.mrf.mxu0
      %v1013 = vadd.f32 0.0, %v1012
      %v1014 = vpop.f32.mrf.mxu0
      %1015 = vmatprep.mubr.f32.mxu0 0.0
      %1016 = vmatmul.mubr.f32.gmra.mxu0 %v750
      %v1017 = vpop.f32.mrf.mxu0
      %v1018 = vadd.f32 0.0, %v1017
      %v1019 = vpop.f32.mrf.mxu0
      %1020 = vmatprep.mubr.f32.mxu0 0.0
      %1021 = vmatmul.mubr.f32.gmra.mxu0 %v753
      %v1022 = vpop.f32.mrf.mxu0
      %v1023 = vadd.f32 0.0, %v1022
      %v1024 = vpop.f32.mrf.mxu0
      %1025 = vmatprep.mubr.f32.mxu0 0.0
      %1026 = vmatmul.mubr.f32.gmra.mxu0 %v756
      %v1027 = vpop.f32.mrf.mxu0
      %v1028 = vadd.f32 0.0, %v1027
      %v1029 = vpop.f32.mrf.mxu0
      %1030 = vmatprep.mubr.f32.mxu0 0.0
      %1031 = vmatmul.mubr.f32.gmra.mxu0 %v759
      %v1032 = vpop.f32.mrf.mxu0
      %v1033 = vadd.f32 0.0, %v1032
      %v1034 = vpop.f32.mrf.mxu0
      %1035 = vmatprep.mubr.f32.mxu0 0.0
      %1036 = vmatmul.mubr.f32.gmra.mxu0 %v762
      %v1037 = vpop.f32.mrf.mxu0
      %v1038 = vadd.f32 0.0, %v1037
      %v1039 = vpop.f32.mrf.mxu0
      %1040 = vmatprep.mubr.f32.mxu0 0.0
      %1041 = vmatmul.mubr.f32.gmra.mxu0 %v765
      %v1042 = vpop.f32.mrf.mxu0
      %v1043 = vadd.f32 0.0, %v1042
      %v1044 = vpop.f32.mrf.mxu0
      %1045 = vmatprep.mubr.f32.mxu0 0.0
      %1046 = vmatmul.mubr.f32.gmra.mxu0 %v768
      %v1047 = vpop.f32.mrf.mxu0
      %v1048 = vadd.f32 0.0, %v1047
      %v1049 = vpop.f32.mrf.mxu0
      %1050 = vmatprep.mubr.f32.mxu0 0.0
      %1051 = vmatmul.mubr.f32.gmra.mxu0 %v771
      %v1052 = vpop.f32.mrf.mxu0
      %v1053 = vadd.f32 0.0, %v1052
      %v1054 = vpop.f32.mrf.mxu0
      %1055 = vmatprep.mubr.f32.mxu0 0.0
      %1056 = vmatmul.mubr.f32.gmra.mxu0 %v774
      %v1057 = vpop.f32.mrf.mxu0
      %v1058 = vadd.f32 0.0, %v1057
      %v1059 = vpop.f32.mrf.mxu0
      %1060 = vmatprep.mubr.f32.mxu0 0.0
      %1061 = vmatmul.mubr.f32.gmra.mxu0 %v777
      %v1062 = vpop.f32.mrf.mxu0
      %v1063 = vadd.f32 0.0, %v1062
      %v1064 = vpop.f32.mrf.mxu0
      %1065 = vmatprep.mubr.f32.mxu0 0.0
      %1066 = vmatmul.mubr.f32.gmra.mxu0 %v780
      %v1067 = vpop.f32.mrf.mxu0
      %v1068 = vadd.f32 0.0, %v1067
      %v1069 = vpop.f32.mrf.mxu0
      %1070 = vmatprep.mubr.f32.mxu0 0.0
      %1071 = vmatmul.mubr.f32.gmra.mxu0 %v783
      %v1072 = vpop.f32.mrf.mxu0
      %v1073 = vadd.f32 0.0, %v1072
      %v1074 = vpop.f32.mrf.mxu0
      %1075 = vmatprep.mubr.f32.mxu0 0.0
      %1076 = vmatmul.mubr.f32.gmra.mxu0 %v786
      %v1077 = vpop.f32.mrf.mxu0
      %v1078 = vadd.f32 0.0, %v1077
      %v1079 = vpop.f32.mrf.mxu0
      %1080 = vmatprep.mubr.f32.mxu0 0.0
      %1081 = vmatmul.mubr.f32.gmra.mxu0 %v789
      %v1082 = vpop.f32.mrf.mxu0
      %v1083 = vadd.f32 0.0, %v1082
      %v1084 = vpop.f32.mrf.mxu0
      %1085 = vmatprep.mubr.f32.mxu0 0.0
      %1086 = vmatmul.mubr.f32.gmra.mxu0 %v792
      %v1087 = vpop.f32.mrf.mxu0
      %v1088 = vadd.f32 0.0, %v1087
      %v1089 = vpop.f32.mrf.mxu0
      %1090 = vmatprep.mubr.f32.mxu0 0.0
      %1091 = vmatmul.mubr.f32.gmra.mxu0 %v795
      %v1092 = vpop.f32.mrf.mxu0
      %v1093 = vadd.f32 0.0, %v1092
      %v1094 = vpop.f32.mrf.mxu0
      %1095 = vmatprep.mubr.f32.mxu0 0.0
      %1096 = vmatmul.mubr.f32.gmra.mxu0 %v798
      %v1097 = vpop.f32.mrf.mxu0
      %v1098 = vadd.f32 0.0, %v1097
      %v1099 = vpop.f32.mrf.mxu0
      %1100 = vmatprep.mubr.f32.mxu0 0.0
      %1101 = vmatmul.mubr.f32.gmra.mxu0 %v801
      %v1102 = vpop.f32.mrf.mxu0
      %v1103 = vadd.f32 0.0, %v1102
      %v1104 = vpop.f32.mrf.mxu0
      %1105 = vmatprep.mubr.f32.mxu0 0.0
      %1106 = vmatmul.mubr.f32.gmra.mxu0 %v804
      %v1107 = vpop.f32.mrf.mxu0
      %v1108 = vadd.f32 0.0, %v1107
      %v1109 = vpop.f32.mrf.mxu0
      %1110 = vdwg.mxu0
      %v1111 = vld [vmem:[%s285] sm:$0xff]
      %v1112 = vld [vmem:[%s285 + $0x8] sm:$0xff]
      %v1113 = vld [vmem:[%s285 + $0x10] sm:$0xff]
      %v1114 = vld [vmem:[%s285 + $0x18] sm:$0xff]
      %v1115 = vld [vmem:[%s285 + $0x20] sm:$0xff]
      %v1116 = vld [vmem:[%s285 + $0x28] sm:$0xff]
      %v1117 = vld [vmem:[%s285 + $0x30] sm:$0xff]
      %v1118 = vld [vmem:[%s285 + $0x38] sm:$0xff]
      %1119 = vset.pattern.permute.xlu0 0
      %1120 = vperm.xlu0 %1119, %v1111
      %v1121 = vpop.permute.xlu0 %1120
      %1122 = vset.pattern.permute.xlu0 0
      %1123 = vperm.xlu0 %1122, %v1112
      %v1124 = vpop.permute.xlu0 %1123
      %1125 = vset.pattern.permute.xlu0 0
      %1126 = vperm.xlu0 %1125, %v1113
      %v1127 = vpop.permute.xlu0 %1126
      %1128 = vset.pattern.permute.xlu0 0
      %1129 = vperm.xlu0 %1128, %v1114
      %v1130 = vpop.permute.xlu0 %1129
      %1131 = vset.pattern.permute.xlu0 0
      %1132 = vperm.xlu0 %1131, %v1115
      %v1133 = vpop.permute.xlu0 %1132
      %1134 = vset.pattern.permute.xlu0 0
      %1135 = vperm.xlu0 %1134, %v1116
      %v1136 = vpop.permute.xlu0 %1135
      %1137 = vset.pattern.permute.xlu0 0
      %1138 = vperm.xlu0 %1137, %v1117
      %v1139 = vpop.permute.xlu0 %1138
      %1140 = vset.pattern.permute.xlu0 0
      %1141 = vperm.xlu0 %1140, %v1118
      %v1142 = vpop.permute.xlu0 %1141
      %vm1143 = vcmp.eq.s32.totalorder %v1121, %v372
      %vm1144 = vcmp.eq.s32.totalorder %v1124, %v372
      %vm1145 = vcmp.eq.s32.totalorder %v1127, %v372
      %vm1146 = vcmp.eq.s32.totalorder %v1130, %v372
      %vm1147 = vcmp.eq.s32.totalorder %v1133, %v372
      %vm1148 = vcmp.eq.s32.totalorder %v1136, %v372
      %vm1149 = vcmp.eq.s32.totalorder %v1139, %v372
      %vm1150 = vcmp.eq.s32.totalorder %v1142, %v372
      %v1151 = vsel %vm1143, 1, 0
      %v1152 = vsel %vm1144, 1, 0
      %v1153 = vsel %vm1145, 1, 0
      %v1154 = vsel %vm1146, 1, 0
      %v1155 = vsel %vm1147, 1, 0
      %v1156 = vsel %vm1148, 1, 0
      %v1157 = vsel %vm1149, 1, 0
      %v1158 = vsel %vm1150, 1, 0
      %v1159 = vcvt.s32.f32 %v1151
      %v1160 = vcvt.s32.f32 %v1152
      %v1161 = vcvt.s32.f32 %v1153
      %v1162 = vcvt.s32.f32 %v1154
      %v1163 = vcvt.s32.f32 %v1155
      %v1164 = vcvt.s32.f32 %v1156
      %v1165 = vcvt.s32.f32 %v1157
      %v1166 = vcvt.s32.f32 %v1158
      %v1167 = vld [vmem:[%s291] sm:$0xff]
      %v1168 = vld [vmem:[%s291 + $0x8] sm:$0xff]
      %v1169 = vld [vmem:[%s291 + $0x10] sm:$0xff]
      %v1170 = vld [vmem:[%s291 + $0x18] sm:$0xff]
      %v1171 = vld [vmem:[%s291 + $0x20] sm:$0xff]
      %v1172 = vld [vmem:[%s291 + $0x28] sm:$0xff]
      %v1173 = vld [vmem:[%s291 + $0x30] sm:$0xff]
      %v1174 = vld [vmem:[%s291 + $0x38] sm:$0xff]
      %1175 = vset.pattern.permute.xlu0 0
      %1176 = vperm.xlu0 %1175, %v1167
      %v1177 = vpop.permute.xlu0 %1176
      %1178 = vset.pattern.permute.xlu0 0
      %1179 = vperm.xlu0 %1178, %v1168
      %v1180 = vpop.permute.xlu0 %1179
      %1181 = vset.pattern.permute.xlu0 0
      %1182 = vperm.xlu0 %1181, %v1169
      %v1183 = vpop.permute.xlu0 %1182
      %1184 = vset.pattern.permute.xlu0 0
      %1185 = vperm.xlu0 %1184, %v1170
      %v1186 = vpop.permute.xlu0 %1185
      %1187 = vset.pattern.permute.xlu0 0
      %1188 = vperm.xlu0 %1187, %v1171
      %v1189 = vpop.permute.xlu0 %1188
      %1190 = vset.pattern.permute.xlu0 0
      %1191 = vperm.xlu0 %1190, %v1172
      %v1192 = vpop.permute.xlu0 %1191
      %1193 = vset.pattern.permute.xlu0 0
      %1194 = vperm.xlu0 %1193, %v1173
      %v1195 = vpop.permute.xlu0 %1194
      %1196 = vset.pattern.permute.xlu0 0
      %1197 = vperm.xlu0 %1196, %v1174
      %v1198 = vpop.permute.xlu0 %1197
      %vm1199 = vcmask 130048
      %v1201 = vsel %vm1199, 0.0, 0
      %1203 = vmatprep.subr.mxu0 0.0
      %1204 = vmatpush1.msra.mxu0 0.0
      %1205 = vmatprep.subr.mxu0 0.0
      %1206 = vmatpush1.msra.mxu0 0.0
      %1207 = vmatprep.subr.mxu0 0.0
      %1208 = vmatpush1.msra.mxu0 0.0
      %1209 = vmatprep.subr.mxu0 0.0
      %1210 = vmatpush1.msra.mxu0 0.0
      %1211 = vmatprep.subr.mxu0 0.0
      %1212 = vmatpush1.msra.mxu0 0.0
      %1213 = vmatprep.subr.mxu0 0.0
      %1214 = vmatpush1.msra.mxu0 0.0
      %1215 = vmatprep.subr.mxu0 0.0
      %1216 = vmatpush1.msra.mxu0 0.0
      %1217 = vmatprep.subr.mxu0 0.0
      %1218 = vmatpush1.msra.mxu0 0.0
      %1219 = vmatprep.subr.mxu0 0.0
      %1220 = vmatpush1.msra.mxu0 0.0
      %1221 = vmatprep.subr.mxu0 0.0
      %1222 = vmatpush1.msra.mxu0 0.0
      %1223 = vmatprep.subr.mxu0 0.0
      %1224 = vmatpush1.msra.mxu0 0.0
      %1225 = vmatprep.subr.mxu0 0.0
      %1226 = vmatpush1.msra.mxu0 0.0
      %1227 = vmatprep.subr.mxu0 0.0
      %1228 = vmatpush1.msra.mxu0 0.0
      %1229 = vmatprep.subr.mxu0 0.0
      %1230 = vmatpush1.msra.mxu0 0.0
      %1231 = vmatprep.subr.mxu0 0.0
      %1232 = vmatpush1.msra.mxu0 %v304
      %1233 = vmatprep.subr.mxu0 0.0
      %1234 = vmatpush1.msra.mxu0 %v303
      %1235 = vmatprep.subr.mxu0 0.0
      %1236 = vmatpush2.msra.mxu0 0.0
      %1237 = vmatprep.subr.mxu0 0.0
      %1238 = vmatpush2.msra.mxu0 0.0
      %1239 = vmatprep.subr.mxu0 0.0
      %1240 = vmatpush2.msra.mxu0 0.0
      %1241 = vmatprep.subr.mxu0 0.0
      %1242 = vmatpush2.msra.mxu0 0.0
      %1243 = vmatprep.subr.mxu0 0.0
      %1244 = vmatpush2.msra.mxu0 0.0
      %1245 = vmatprep.subr.mxu0 0.0
      %1246 = vmatpush2.msra.mxu0 0.0
      %1247 = vmatprep.subr.mxu0 0.0
      %1248 = vmatpush2.msra.mxu0 0.0
      %1249 = vmatprep.subr.mxu0 0.0
      %1250 = vmatpush2.msra.mxu0 0.0
      %1251 = vmatprep.subr.mxu0 0.0
      %1252 = vmatpush2.msra.mxu0 0.0
      %1253 = vmatprep.subr.mxu0 0.0
      %1254 = vmatpush2.msra.mxu0 0.0
      %1255 = vmatprep.subr.mxu0 0.0
      %1256 = vmatpush2.msra.mxu0 0.0
      %1257 = vmatprep.subr.mxu0 0.0
      %1258 = vmatpush2.msra.mxu0 0.0
      %1259 = vmatprep.subr.mxu0 0.0
      %1260 = vmatpush2.msra.mxu0 0.0
      %1261 = vmatprep.subr.mxu0 0.0
      %1262 = vmatpush2.msra.mxu0 0.0
      %1263 = vmatprep.subr.mxu0 0.0
      %1264 = vmatpush2.msra.mxu0 0.0
      %1265 = vmatprep.subr.mxu0 0.0
      %1266 = vmatpush2.msra.mxu0 0.0
      %1267 = vmatprep.mubr.f32.mxu0 0.0
      %1268 = vmatmul.mubr.f32.gmra.mxu0 %v1201
      %v1269 = vpop.f32.mrf.mxu0
      %v1270 = vadd.f32 0.0, %v1269
      %v1271 = vpop.f32.mrf.mxu0
      %1272 = vmatprep.mubr.f32.mxu0 0.0
      %1273 = vmatmul.mubr.f32.gmra.mxu0 %v1201
      %v1274 = vpop.f32.mrf.mxu0
      %v1275 = vadd.f32 0.0, %v1274
      %v1276 = vpop.f32.mrf.mxu0
      %1277 = vmatprep.mubr.f32.mxu0 0.0
      %1278 = vmatmul.mubr.f32.gmra.mxu0 %v1201
      %v1279 = vpop.f32.mrf.mxu0
      %v1280 = vadd.f32 0.0, %v1279
      %v1281 = vpop.f32.mrf.mxu0
      %1282 = vmatprep.mubr.f32.mxu0 0.0
      %1283 = vmatmul.mubr.f32.gmra.mxu0 %v1201
      %v1284 = vpop.f32.mrf.mxu0
      %v1285 = vadd.f32 0.0, %v1284
      %v1286 = vpop.f32.mrf.mxu0
      %1287 = vmatprep.mubr.f32.mxu0 0.0
      %1288 = vmatmul.mubr.f32.gmra.mxu0 %v1201
      %v1289 = vpop.f32.mrf.mxu0
      %v1290 = vadd.f32 0.0, %v1289
      %v1291 = vpop.f32.mrf.mxu0
      %1292 = vmatprep.mubr.f32.mxu0 0.0
      %1293 = vmatmul.mubr.f32.gmra.mxu0 %v1201
      %v1294 = vpop.f32.mrf.mxu0
      %v1295 = vadd.f32 0.0, %v1294
      %v1296 = vpop.f32.mrf.mxu0
      %1297 = vmatprep.mubr.f32.mxu0 0.0
      %1298 = vmatmul.mubr.f32.gmra.mxu0 %v1201
      %v1299 = vpop.f32.mrf.mxu0
      %v1300 = vadd.f32 0.0, %v1299
      %v1301 = vpop.f32.mrf.mxu0
      %1302 = vmatprep.mubr.f32.mxu0 0.0
      %1303 = vmatmul.mubr.f32.gmra.mxu0 %v1201
      %v1304 = vpop.f32.mrf.mxu0
      %v1305 = vadd.f32 0.0, %v1304
      %v1306 = vpop.f32.mrf.mxu0
      %1307 = vdwg.mxu0
      %v1308 = vadd.f32 %v873, %v1270
      %v1309 = vadd.f32 %v878, %v1275
      %v1310 = vadd.f32 %v883, %v1280
      %v1311 = vadd.f32 %v888, %v1285
      %v1312 = vadd.f32 %v893, %v1290
      %v1313 = vadd.f32 %v898, %v1295
      %v1314 = vadd.f32 %v903, %v1300
      %v1315 = vadd.f32 %v908, %v1305
      %v1316 = vxor.u32 %v1308, 2147483648
      %v1317 = vxor.u32 %v1309, 2147483648
      %v1318 = vxor.u32 %v1310, 2147483648
      %v1319 = vxor.u32 %v1311, 2147483648
      %v1320 = vxor.u32 %v1312, 2147483648
      %v1321 = vxor.u32 %v1313, 2147483648
      %v1322 = vxor.u32 %v1314, 2147483648
      %v1323 = vxor.u32 %v1315, 2147483648
      %v1324 = vmul.f32 %v1316, 1.442695
      %v1325 = vpow.pop %v1324
      %v1326 = vmul.f32 %v1317, 1.442695
      %v1327 = vpow.pop %v1326
      %v1328 = vmul.f32 %v1318, 1.442695
      %v1329 = vpow.pop %v1328
      %v1330 = vmul.f32 %v1319, 1.442695
      %v1331 = vpow.pop %v1330
      %v1332 = vmul.f32 %v1320, 1.442695
      %v1333 = vpow.pop %v1332
      %v1334 = vmul.f32 %v1321, 1.442695
      %v1335 = vpow.pop %v1334
      %v1336 = vmul.f32 %v1322, 1.442695
      %v1337 = vpow.pop %v1336
      %v1338 = vmul.f32 %v1323, 1.442695
      %v1339 = vpow.pop %v1338
      %v1340 = vadd.f32 %v1325, 1.0
      %v1341 = vadd.f32 %v1327, 1.0
      %v1342 = vadd.f32 %v1329, 1.0
      %v1343 = vadd.f32 %v1331, 1.0
      %v1344 = vadd.f32 %v1333, 1.0
      %v1345 = vadd.f32 %v1335, 1.0
      %v1346 = vadd.f32 %v1337, 1.0
      %v1347 = vadd.f32 %v1339, 1.0
      %v1348 = vrcp.pop %v1340
      %v1349 = vmul.f32 1.0, %v1348
      %v1350 = vrcp.pop %v1341
      %v1351 = vmul.f32 1.0, %v1350
      %v1352 = vrcp.pop %v1342
      %v1353 = vmul.f32 1.0, %v1352
      %v1354 = vrcp.pop %v1343
      %v1355 = vmul.f32 1.0, %v1354
      %v1356 = vrcp.pop %v1344
      %v1357 = vmul.f32 1.0, %v1356
      %v1358 = vrcp.pop %v1345
      %v1359 = vmul.f32 1.0, %v1358
      %v1360 = vrcp.pop %v1346
      %v1361 = vmul.f32 1.0, %v1360
      %v1362 = vrcp.pop %v1347
      %v1363 = vmul.f32 1.0, %v1362
      %v1364 = vtanh.pop %v1308
      %v1365 = vtanh.pop %v1309
      %v1366 = vtanh.pop %v1310
      %v1367 = vtanh.pop %v1311
      %v1368 = vtanh.pop %v1312
      %v1369 = vtanh.pop %v1313
      %v1370 = vtanh.pop %v1314
      %v1371 = vtanh.pop %v1315
      %v1372 = vmul.f32 %v1349, 0.0
      %v1373 = vmul.f32 %v1351, 0.0
      %v1374 = vmul.f32 %v1353, 0.0
      %v1375 = vmul.f32 %v1355, 0.0
      %v1376 = vmul.f32 %v1357, 0.0
      %v1377 = vmul.f32 %v1359, 0.0
      %v1378 = vmul.f32 %v1361, 0.0
      %v1379 = vmul.f32 %v1363, 0.0
      %1388 = vrot.lane.b32.xlu0 %v1364, 96
      %v1389 = vpop.permute.xlu0 %1388
      %1390 = vrot.lane.b32.xlu0 %v1365, 96
      %v1391 = vpop.permute.xlu0 %1390
      %1392 = vrot.lane.b32.xlu0 %v1366, 96
      %v1393 = vpop.permute.xlu0 %1392
      %1394 = vrot.lane.b32.xlu0 %v1367, 96
      %v1395 = vpop.permute.xlu0 %1394
      %1396 = vrot.lane.b32.xlu0 %v1368, 96
      %v1397 = vpop.permute.xlu0 %1396
      %1398 = vrot.lane.b32.xlu0 %v1369, 96
      %v1399 = vpop.permute.xlu0 %1398
      %1400 = vrot.lane.b32.xlu0 %v1370, 96
      %v1401 = vpop.permute.xlu0 %1400
      %1402 = vrot.lane.b32.xlu0 %v1371, 96
      %v1403 = vpop.permute.xlu0 %1402
      %v1412 = vmul.f32 %v1349, %v1389
      %v1413 = vmul.f32 %v1351, %v1391
      %v1414 = vmul.f32 %v1353, %v1393
      %v1415 = vmul.f32 %v1355, %v1395
      %v1416 = vmul.f32 %v1357, %v1397
      %v1417 = vmul.f32 %v1359, %v1399
      %v1418 = vmul.f32 %v1361, %v1401
      %v1419 = vmul.f32 %v1363, %v1403
      %1428 = vrot.lane.b32.xlu0 %v1412, 16
      %v1429 = vpop.permute.xlu0 %1428
      %1430 = vrot.lane.b32.xlu0 %v1413, 16
      %v1431 = vpop.permute.xlu0 %1430
      %1432 = vrot.lane.b32.xlu0 %v1414, 16
      %v1433 = vpop.permute.xlu0 %1432
      %1434 = vrot.lane.b32.xlu0 %v1415, 16
      %v1435 = vpop.permute.xlu0 %1434
      %1436 = vrot.lane.b32.xlu0 %v1416, 16
      %v1437 = vpop.permute.xlu0 %1436
      %1438 = vrot.lane.b32.xlu0 %v1417, 16
      %v1439 = vpop.permute.xlu0 %1438
      %1440 = vrot.lane.b32.xlu0 %v1418, 16
      %v1441 = vpop.permute.xlu0 %1440
      %1442 = vrot.lane.b32.xlu0 %v1419, 16
      %v1443 = vpop.permute.xlu0 %1442
      %v1452 = vadd.f32 %v1372, %v1429
      %v1453 = vadd.f32 %v1373, %v1431
      %v1454 = vadd.f32 %v1374, %v1433
      %v1455 = vadd.f32 %v1375, %v1435
      %v1456 = vadd.f32 %v1376, %v1437
      %v1457 = vadd.f32 %v1377, %v1439
      %v1458 = vadd.f32 %v1378, %v1441
      %v1459 = vadd.f32 %v1379, %v1443
      %v1460 = vtanh.pop %v1452
      %v1461 = vtanh.pop %v1453
      %v1462 = vtanh.pop %v1454
      %v1463 = vtanh.pop %v1455
      %v1464 = vtanh.pop %v1456
      %v1465 = vtanh.pop %v1457
      %v1466 = vtanh.pop %v1458
      %v1467 = vtanh.pop %v1459
      %1476 = vrot.lane.b32.xlu0 %v1460, 32
      %v1477 = vpop.permute.xlu0 %1476
      %1478 = vrot.lane.b32.xlu0 %v1461, 32
      %v1479 = vpop.permute.xlu0 %1478
      %1480 = vrot.lane.b32.xlu0 %v1462, 32
      %v1481 = vpop.permute.xlu0 %1480
      %1482 = vrot.lane.b32.xlu0 %v1463, 32
      %v1483 = vpop.permute.xlu0 %1482
      %1484 = vrot.lane.b32.xlu0 %v1464, 32
      %v1485 = vpop.permute.xlu0 %1484
      %1486 = vrot.lane.b32.xlu0 %v1465, 32
      %v1487 = vpop.permute.xlu0 %1486
      %1488 = vrot.lane.b32.xlu0 %v1466, 32
      %v1489 = vpop.permute.xlu0 %1488
      %1490 = vrot.lane.b32.xlu0 %v1467, 32
      %v1491 = vpop.permute.xlu0 %1490
      %v1500 = vmul.f32 %v1349, %v1477
      %v1501 = vmul.f32 %v1351, %v1479
      %v1502 = vmul.f32 %v1353, %v1481
      %v1503 = vmul.f32 %v1355, %v1483
      %v1504 = vmul.f32 %v1357, %v1485
      %v1505 = vmul.f32 %v1359, %v1487
      %v1506 = vmul.f32 %v1361, %v1489
      %v1507 = vmul.f32 %v1363, %v1491
      %vm1508 = vcmp.gt.s32.totalorder %v1177, 0
      %vm1509 = vcmp.gt.s32.totalorder %v1180, 0
      %vm1510 = vcmp.gt.s32.totalorder %v1183, 0
      %vm1511 = vcmp.gt.s32.totalorder %v1186, 0
      %vm1512 = vcmp.gt.s32.totalorder %v1189, 0
      %vm1513 = vcmp.gt.s32.totalorder %v1192, 0
      %vm1514 = vcmp.gt.s32.totalorder %v1195, 0
      %vm1515 = vcmp.gt.s32.totalorder %v1198, 0
      %v1516 = vsel %vm1508, %v1500, 0.0
      %v1517 = vsel %vm1509, %v1501, 0.0
      %v1518 = vsel %vm1510, %v1502, 0.0
      %v1519 = vsel %vm1511, %v1503, 0.0
      %v1520 = vsel %vm1512, %v1504, 0.0
      %v1521 = vsel %vm1513, %v1505, 0.0
      %v1522 = vsel %vm1514, %v1506, 0.0
      %v1523 = vsel %vm1515, %v1507, 0.0
      %v1524 = vsel %vm1508, %v1452, 0.0
      %v1525 = vsel %vm1509, %v1453, 0.0
      %v1526 = vsel %vm1510, %v1454, 0.0
      %v1527 = vsel %vm1511, %v1455, 0.0
      %v1528 = vsel %vm1512, %v1456, 0.0
      %v1529 = vsel %vm1513, %v1457, 0.0
      %v1530 = vsel %vm1514, %v1458, 0.0
      %v1531 = vsel %vm1515, %v1459, 0.0
      %1540 = vrot.lane.b32.xlu0 %v1516, 80
      %v1541 = vpop.permute.xlu0 %1540
      %1542 = vrot.lane.b32.xlu0 %v1517, 80
      %v1543 = vpop.permute.xlu0 %1542
      %1544 = vrot.lane.b32.xlu0 %v1518, 80
      %v1545 = vpop.permute.xlu0 %1544
      %1546 = vrot.lane.b32.xlu0 %v1519, 80
      %v1547 = vpop.permute.xlu0 %1546
      %1548 = vrot.lane.b32.xlu0 %v1520, 80
      %v1549 = vpop.permute.xlu0 %1548
      %1550 = vrot.lane.b32.xlu0 %v1521, 80
      %v1551 = vpop.permute.xlu0 %1550
      %1552 = vrot.lane.b32.xlu0 %v1522, 80
      %v1553 = vpop.permute.xlu0 %1552
      %1554 = vrot.lane.b32.xlu0 %v1523, 80
      %v1555 = vpop.permute.xlu0 %1554
      %v1556 = vsel %vm1199, %v1541, 0
      %v1558 = vsel %vm1199, %v1543, 0
      %v1560 = vsel %vm1199, %v1545, 0
      %v1562 = vsel %vm1199, %v1547, 0
      %v1564 = vsel %vm1199, %v1549, 0
      %v1566 = vsel %vm1199, %v1551, 0
      %v1568 = vsel %vm1199, %v1553, 0
      %v1570 = vsel %vm1199, %v1555, 0
      %1572 = vmatprep.subr.mxu0 0.0
      %1573 = vmatpush1.msra.mxu0 0.0
      %1574 = vmatprep.subr.mxu0 0.0
      %1575 = vmatpush1.msra.mxu0 0.0
      %1576 = vmatprep.subr.mxu0 0.0
      %1577 = vmatpush1.msra.mxu0 0.0
      %1578 = vmatprep.subr.mxu0 0.0
      %1579 = vmatpush1.msra.mxu0 0.0
      %1580 = vmatprep.subr.mxu0 0.0
      %1581 = vmatpush1.msra.mxu0 0.0
      %1582 = vmatprep.subr.mxu0 0.0
      %1583 = vmatpush1.msra.mxu0 0.0
      %1584 = vmatprep.subr.mxu0 0.0
      %1585 = vmatpush1.msra.mxu0 0.0
      %1586 = vmatprep.subr.mxu0 0.0
      %1587 = vmatpush1.msra.mxu0 0.0
      %1588 = vmatprep.subr.mxu0 0.0
      %1589 = vmatpush1.msra.mxu0 0.0
      %1590 = vmatprep.subr.mxu0 0.0
      %1591 = vmatpush1.msra.mxu0 0.0
      %1592 = vmatprep.subr.mxu0 0.0
      %1593 = vmatpush1.msra.mxu0 0.0
      %1594 = vmatprep.subr.mxu0 0.0
      %1595 = vmatpush1.msra.mxu0 0.0
      %1596 = vmatprep.subr.mxu0 0.0
      %1597 = vmatpush1.msra.mxu0 0.0
      %1598 = vmatprep.subr.mxu0 0.0
      %1599 = vmatpush1.msra.mxu0 0.0
      %1600 = vmatprep.subr.mxu0 0.0
      %1601 = vmatpush1.msra.mxu0 %v304
      %1602 = vmatprep.subr.mxu0 0.0
      %1603 = vmatpush1.msra.mxu0 %v303
      %1604 = vmatprep.subr.mxu0 0.0
      %1605 = vmatpush2.msra.mxu0 0.0
      %1606 = vmatprep.subr.mxu0 0.0
      %1607 = vmatpush2.msra.mxu0 0.0
      %1608 = vmatprep.subr.mxu0 0.0
      %1609 = vmatpush2.msra.mxu0 0.0
      %1610 = vmatprep.subr.mxu0 0.0
      %1611 = vmatpush2.msra.mxu0 0.0
      %1612 = vmatprep.subr.mxu0 0.0
      %1613 = vmatpush2.msra.mxu0 0.0
      %1614 = vmatprep.subr.mxu0 0.0
      %1615 = vmatpush2.msra.mxu0 0.0
      %1616 = vmatprep.subr.mxu0 0.0
      %1617 = vmatpush2.msra.mxu0 0.0
      %1618 = vmatprep.subr.mxu0 0.0
      %1619 = vmatpush2.msra.mxu0 0.0
      %1620 = vmatprep.subr.mxu0 0.0
      %1621 = vmatpush2.msra.mxu0 0.0
      %1622 = vmatprep.subr.mxu0 0.0
      %1623 = vmatpush2.msra.mxu0 0.0
      %1624 = vmatprep.subr.mxu0 0.0
      %1625 = vmatpush2.msra.mxu0 0.0
      %1626 = vmatprep.subr.mxu0 0.0
      %1627 = vmatpush2.msra.mxu0 0.0
      %1628 = vmatprep.subr.mxu0 0.0
      %1629 = vmatpush2.msra.mxu0 0.0
      %1630 = vmatprep.subr.mxu0 0.0
      %1631 = vmatpush2.msra.mxu0 0.0
      %1632 = vmatprep.subr.mxu0 0.0
      %1633 = vmatpush2.msra.mxu0 0.0
      %1634 = vmatprep.subr.mxu0 0.0
      %1635 = vmatpush2.msra.mxu0 0.0
      %1636 = vmatprep.mubr.f32.mxu0 0.0
      %1637 = vmatmul.mubr.f32.gmra.mxu0 %v1556
      %v1638 = vpop.f32.mrf.mxu0
      %v1639 = vadd.f32 0.0, %v1638
      %v1640 = vpop.f32.mrf.mxu0
      %1641 = vmatprep.mubr.f32.mxu0 0.0
      %1642 = vmatmul.mubr.f32.gmra.mxu0 %v1558
      %v1643 = vpop.f32.mrf.mxu0
      %v1644 = vadd.f32 0.0, %v1643
      %v1645 = vpop.f32.mrf.mxu0
      %1646 = vmatprep.mubr.f32.mxu0 0.0
      %1647 = vmatmul.mubr.f32.gmra.mxu0 %v1560
      %v1648 = vpop.f32.mrf.mxu0
      %v1649 = vadd.f32 0.0, %v1648
      %v1650 = vpop.f32.mrf.mxu0
      %1651 = vmatprep.mubr.f32.mxu0 0.0
      %1652 = vmatmul.mubr.f32.gmra.mxu0 %v1562
      %v1653 = vpop.f32.mrf.mxu0
      %v1654 = vadd.f32 0.0, %v1653
      %v1655 = vpop.f32.mrf.mxu0
      %1656 = vmatprep.mubr.f32.mxu0 0.0
      %1657 = vmatmul.mubr.f32.gmra.mxu0 %v1564
      %v1658 = vpop.f32.mrf.mxu0
      %v1659 = vadd.f32 0.0, %v1658
      %v1660 = vpop.f32.mrf.mxu0
      %1661 = vmatprep.mubr.f32.mxu0 0.0
      %1662 = vmatmul.mubr.f32.gmra.mxu0 %v1566
      %v1663 = vpop.f32.mrf.mxu0
      %v1664 = vadd.f32 0.0, %v1663
      %v1665 = vpop.f32.mrf.mxu0
      %1666 = vmatprep.mubr.f32.mxu0 0.0
      %1667 = vmatmul.mubr.f32.gmra.mxu0 %v1568
      %v1668 = vpop.f32.mrf.mxu0
      %v1669 = vadd.f32 0.0, %v1668
      %v1670 = vpop.f32.mrf.mxu0
      %1671 = vmatprep.mubr.f32.mxu0 0.0
      %1672 = vmatmul.mubr.f32.gmra.mxu0 %v1570
      %v1673 = vpop.f32.mrf.mxu0
      %v1674 = vadd.f32 0.0, %v1673
      %v1675 = vpop.f32.mrf.mxu0
      %1676 = vdwg.mxu0
      %v1677 = vadd.f32 %v913, %v1639
      %v1678 = vadd.f32 %v918, %v1644
      %v1679 = vadd.f32 %v923, %v1649
      %v1680 = vadd.f32 %v928, %v1654
      %v1681 = vadd.f32 %v933, %v1659
      %v1682 = vadd.f32 %v938, %v1664
      %v1683 = vadd.f32 %v943, %v1669
      %v1684 = vadd.f32 %v948, %v1674
      %v1685 = vxor.u32 %v1677, 2147483648
      %v1686 = vxor.u32 %v1678, 2147483648
      %v1687 = vxor.u32 %v1679, 2147483648
      %v1688 = vxor.u32 %v1680, 2147483648
      %v1689 = vxor.u32 %v1681, 2147483648
      %v1690 = vxor.u32 %v1682, 2147483648
      %v1691 = vxor.u32 %v1683, 2147483648
      %v1692 = vxor.u32 %v1684, 2147483648
      %v1693 = vmul.f32 %v1685, 1.442695
      %v1694 = vpow.pop %v1693
      %v1695 = vmul.f32 %v1686, 1.442695
      %v1696 = vpow.pop %v1695
      %v1697 = vmul.f32 %v1687, 1.442695
      %v1698 = vpow.pop %v1697
      %v1699 = vmul.f32 %v1688, 1.442695
      %v1700 = vpow.pop %v1699
      %v1701 = vmul.f32 %v1689, 1.442695
      %v1702 = vpow.pop %v1701
      %v1703 = vmul.f32 %v1690, 1.442695
      %v1704 = vpow.pop %v1703
      %v1705 = vmul.f32 %v1691, 1.442695
      %v1706 = vpow.pop %v1705
      %v1707 = vmul.f32 %v1692, 1.442695
      %v1708 = vpow.pop %v1707
      %v1709 = vadd.f32 %v1694, 1.0
      %v1710 = vadd.f32 %v1696, 1.0
      %v1711 = vadd.f32 %v1698, 1.0
      %v1712 = vadd.f32 %v1700, 1.0
      %v1713 = vadd.f32 %v1702, 1.0
      %v1714 = vadd.f32 %v1704, 1.0
      %v1715 = vadd.f32 %v1706, 1.0
      %v1716 = vadd.f32 %v1708, 1.0
      %v1717 = vrcp.pop %v1709
      %v1718 = vmul.f32 1.0, %v1717
      %v1719 = vrcp.pop %v1710
      %v1720 = vmul.f32 1.0, %v1719
      %v1721 = vrcp.pop %v1711
      %v1722 = vmul.f32 1.0, %v1721
      %v1723 = vrcp.pop %v1712
      %v1724 = vmul.f32 1.0, %v1723
      %v1725 = vrcp.pop %v1713
      %v1726 = vmul.f32 1.0, %v1725
      %v1727 = vrcp.pop %v1714
      %v1728 = vmul.f32 1.0, %v1727
      %v1729 = vrcp.pop %v1715
      %v1730 = vmul.f32 1.0, %v1729
      %v1731 = vrcp.pop %v1716
      %v1732 = vmul.f32 1.0, %v1731
      %v1733 = vtanh.pop %v1677
      %v1734 = vtanh.pop %v1678
      %v1735 = vtanh.pop %v1679
      %v1736 = vtanh.pop %v1680
      %v1737 = vtanh.pop %v1681
      %v1738 = vtanh.pop %v1682
      %v1739 = vtanh.pop %v1683
      %v1740 = vtanh.pop %v1684
      %v1741 = vmul.f32 %v1718, %v1524
      %v1742 = vmul.f32 %v1720, %v1525
      %v1743 = vmul.f32 %v1722, %v1526
      %v1744 = vmul.f32 %v1724, %v1527
      %v1745 = vmul.f32 %v1726, %v1528
      %v1746 = vmul.f32 %v1728, %v1529
      %v1747 = vmul.f32 %v1730, %v1530
      %v1748 = vmul.f32 %v1732, %v1531
      %1757 = vrot.lane.b32.xlu0 %v1733, 96
      %v1758 = vpop.permute.xlu0 %1757
      %1759 = vrot.lane.b32.xlu0 %v1734, 96
      %v1760 = vpop.permute.xlu0 %1759
      %1761 = vrot.lane.b32.xlu0 %v1735, 96
      %v1762 = vpop.permute.xlu0 %1761
      %1763 = vrot.lane.b32.xlu0 %v1736, 96
      %v1764 = vpop.permute.xlu0 %1763
      %1765 = vrot.lane.b32.xlu0 %v1737, 96
      %v1766 = vpop.permute.xlu0 %1765
      %1767 = vrot.lane.b32.xlu0 %v1738, 96
      %v1768 = vpop.permute.xlu0 %1767
      %1769 = vrot.lane.b32.xlu0 %v1739, 96
      %v1770 = vpop.permute.xlu0 %1769
      %1771 = vrot.lane.b32.xlu0 %v1740, 96
      %v1772 = vpop.permute.xlu0 %1771
      %v1781 = vmul.f32 %v1718, %v1758
      %v1782 = vmul.f32 %v1720, %v1760
      %v1783 = vmul.f32 %v1722, %v1762
      %v1784 = vmul.f32 %v1724, %v1764
      %v1785 = vmul.f32 %v1726, %v1766
      %v1786 = vmul.f32 %v1728, %v1768
      %v1787 = vmul.f32 %v1730, %v1770
      %v1788 = vmul.f32 %v1732, %v1772
      %1797 = vrot.lane.b32.xlu0 %v1781, 16
      %v1798 = vpop.permute.xlu0 %1797
      %1799 = vrot.lane.b32.xlu0 %v1782, 16
      %v1800 = vpop.permute.xlu0 %1799
      %1801 = vrot.lane.b32.xlu0 %v1783, 16
      %v1802 = vpop.permute.xlu0 %1801
      %1803 = vrot.lane.b32.xlu0 %v1784, 16
      %v1804 = vpop.permute.xlu0 %1803
      %1805 = vrot.lane.b32.xlu0 %v1785, 16
      %v1806 = vpop.permute.xlu0 %1805
      %1807 = vrot.lane.b32.xlu0 %v1786, 16
      %v1808 = vpop.permute.xlu0 %1807
      %1809 = vrot.lane.b32.xlu0 %v1787, 16
      %v1810 = vpop.permute.xlu0 %1809
      %1811 = vrot.lane.b32.xlu0 %v1788, 16
      %v1812 = vpop.permute.xlu0 %1811
      %v1821 = vadd.f32 %v1741, %v1798
      %v1822 = vadd.f32 %v1742, %v1800
      %v1823 = vadd.f32 %v1743, %v1802
      %v1824 = vadd.f32 %v1744, %v1804
      %v1825 = vadd.f32 %v1745, %v1806
      %v1826 = vadd.f32 %v1746, %v1808
      %v1827 = vadd.f32 %v1747, %v1810
      %v1828 = vadd.f32 %v1748, %v1812
      %v1829 = vtanh.pop %v1821
      %v1830 = vtanh.pop %v1822
      %v1831 = vtanh.pop %v1823
      %v1832 = vtanh.pop %v1824
      %v1833 = vtanh.pop %v1825
      %v1834 = vtanh.pop %v1826
      %v1835 = vtanh.pop %v1827
      %v1836 = vtanh.pop %v1828
      %1845 = vrot.lane.b32.xlu0 %v1829, 32
      %v1846 = vpop.permute.xlu0 %1845
      %1847 = vrot.lane.b32.xlu0 %v1830, 32
      %v1848 = vpop.permute.xlu0 %1847
      %1849 = vrot.lane.b32.xlu0 %v1831, 32
      %v1850 = vpop.permute.xlu0 %1849
      %1851 = vrot.lane.b32.xlu0 %v1832, 32
      %v1852 = vpop.permute.xlu0 %1851
      %1853 = vrot.lane.b32.xlu0 %v1833, 32
      %v1854 = vpop.permute.xlu0 %1853
      %1855 = vrot.lane.b32.xlu0 %v1834, 32
      %v1856 = vpop.permute.xlu0 %1855
      %1857 = vrot.lane.b32.xlu0 %v1835, 32
      %v1858 = vpop.permute.xlu0 %1857
      %1859 = vrot.lane.b32.xlu0 %v1836, 32
      %v1860 = vpop.permute.xlu0 %1859
      %v1869 = vmul.f32 %v1718, %v1846
      %v1870 = vmul.f32 %v1720, %v1848
      %v1871 = vmul.f32 %v1722, %v1850
      %v1872 = vmul.f32 %v1724, %v1852
      %v1873 = vmul.f32 %v1726, %v1854
      %v1874 = vmul.f32 %v1728, %v1856
      %v1875 = vmul.f32 %v1730, %v1858
      %v1876 = vmul.f32 %v1732, %v1860
      %vm1877 = vcmp.gt.s32.totalorder %v1177, 1
      %vm1878 = vcmp.gt.s32.totalorder %v1180, 1
      %vm1879 = vcmp.gt.s32.totalorder %v1183, 1
      %vm1880 = vcmp.gt.s32.totalorder %v1186, 1
      %vm1881 = vcmp.gt.s32.totalorder %v1189, 1
      %vm1882 = vcmp.gt.s32.totalorder %v1192, 1
      %vm1883 = vcmp.gt.s32.totalorder %v1195, 1
      %vm1884 = vcmp.gt.s32.totalorder %v1198, 1
      %v1885 = vsel %vm1877, %v1869, %v1516
      %v1886 = vsel %vm1878, %v1870, %v1517
      %v1887 = vsel %vm1879, %v1871, %v1518
      %v1888 = vsel %vm1880, %v1872, %v1519
      %v1889 = vsel %vm1881, %v1873, %v1520
      %v1890 = vsel %vm1882, %v1874, %v1521
      %v1891 = vsel %vm1883, %v1875, %v1522
      %v1892 = vsel %vm1884, %v1876, %v1523
      %v1893 = vsel %vm1877, %v1821, %v1524
      %v1894 = vsel %vm1878, %v1822, %v1525
      %v1895 = vsel %vm1879, %v1823, %v1526
      %v1896 = vsel %vm1880, %v1824, %v1527
      %v1897 = vsel %vm1881, %v1825, %v1528
      %v1898 = vsel %vm1882, %v1826, %v1529
      %v1899 = vsel %vm1883, %v1827, %v1530
      %v1900 = vsel %vm1884, %v1828, %v1531
      %1909 = vrot.lane.b32.xlu0 %v1885, 80
      %v1910 = vpop.permute.xlu0 %1909
      %1911 = vrot.lane.b32.xlu0 %v1886, 80
      %v1912 = vpop.permute.xlu0 %1911
      %1913 = vrot.lane.b32.xlu0 %v1887, 80
      %v1914 = vpop.permute.xlu0 %1913
      %1915 = vrot.lane.b32.xlu0 %v1888, 80
      %v1916 = vpop.permute.xlu0 %1915
      %1917 = vrot.lane.b32.xlu0 %v1889, 80
      %v1918 = vpop.permute.xlu0 %1917
      %1919 = vrot.lane.b32.xlu0 %v1890, 80
      %v1920 = vpop.permute.xlu0 %1919
      %1921 = vrot.lane.b32.xlu0 %v1891, 80
      %v1922 = vpop.permute.xlu0 %1921
      %1923 = vrot.lane.b32.xlu0 %v1892, 80
      %v1924 = vpop.permute.xlu0 %1923
      %v1925 = vsel %vm1199, %v1910, 0
      %v1927 = vsel %vm1199, %v1912, 0
      %v1929 = vsel %vm1199, %v1914, 0
      %v1931 = vsel %vm1199, %v1916, 0
      %v1933 = vsel %vm1199, %v1918, 0
      %v1935 = vsel %vm1199, %v1920, 0
      %v1937 = vsel %vm1199, %v1922, 0
      %v1939 = vsel %vm1199, %v1924, 0
      %1941 = vmatprep.subr.mxu0 0.0
      %1942 = vmatpush1.msra.mxu0 0.0
      %1943 = vmatprep.subr.mxu0 0.0
      %1944 = vmatpush1.msra.mxu0 0.0
      %1945 = vmatprep.subr.mxu0 0.0
      %1946 = vmatpush1.msra.mxu0 0.0
      %1947 = vmatprep.subr.mxu0 0.0
      %1948 = vmatpush1.msra.mxu0 0.0
      %1949 = vmatprep.subr.mxu0 0.0
      %1950 = vmatpush1.msra.mxu0 0.0
      %1951 = vmatprep.subr.mxu0 0.0
      %1952 = vmatpush1.msra.mxu0 0.0
      %1953 = vmatprep.subr.mxu0 0.0
      %1954 = vmatpush1.msra.mxu0 0.0
      %1955 = vmatprep.subr.mxu0 0.0
      %1956 = vmatpush1.msra.mxu0 0.0
      %1957 = vmatprep.subr.mxu0 0.0
      %1958 = vmatpush1.msra.mxu0 0.0
      %1959 = vmatprep.subr.mxu0 0.0
      %1960 = vmatpush1.msra.mxu0 0.0
      %1961 = vmatprep.subr.mxu0 0.0
      %1962 = vmatpush1.msra.mxu0 0.0
      %1963 = vmatprep.subr.mxu0 0.0
      %1964 = vmatpush1.msra.mxu0 0.0
      %1965 = vmatprep.subr.mxu0 0.0
      %1966 = vmatpush1.msra.mxu0 0.0
      %1967 = vmatprep.subr.mxu0 0.0
      %1968 = vmatpush1.msra.mxu0 0.0
      %1969 = vmatprep.subr.mxu0 0.0
      %1970 = vmatpush1.msra.mxu0 %v304
      %1971 = vmatprep.subr.mxu0 0.0
      %1972 = vmatpush1.msra.mxu0 %v303
      %1973 = vmatprep.subr.mxu0 0.0
      %1974 = vmatpush2.msra.mxu0 0.0
      %1975 = vmatprep.subr.mxu0 0.0
      %1976 = vmatpush2.msra.mxu0 0.0
      %1977 = vmatprep.subr.mxu0 0.0
      %1978 = vmatpush2.msra.mxu0 0.0
      %1979 = vmatprep.subr.mxu0 0.0
      %1980 = vmatpush2.msra.mxu0 0.0
      %1981 = vmatprep.subr.mxu0 0.0
      %1982 = vmatpush2.msra.mxu0 0.0
      %1983 = vmatprep.subr.mxu0 0.0
      %1984 = vmatpush2.msra.mxu0 0.0
      %1985 = vmatprep.subr.mxu0 0.0
      %1986 = vmatpush2.msra.mxu0 0.0
      %1987 = vmatprep.subr.mxu0 0.0
      %1988 = vmatpush2.msra.mxu0 0.0
      %1989 = vmatprep.subr.mxu0 0.0
      %1990 = vmatpush2.msra.mxu0 0.0
      %1991 = vmatprep.subr.mxu0 0.0
      %1992 = vmatpush2.msra.mxu0 0.0
      %1993 = vmatprep.subr.mxu0 0.0
      %1994 = vmatpush2.msra.mxu0 0.0
      %1995 = vmatprep.subr.mxu0 0.0
      %1996 = vmatpush2.msra.mxu0 0.0
      %1997 = vmatprep.subr.mxu0 0.0
      %1998 = vmatpush2.msra.mxu0 0.0
      %1999 = vmatprep.subr.mxu0 0.0
      %2000 = vmatpush2.msra.mxu0 0.0
      %2001 = vmatprep.subr.mxu0 0.0
      %2002 = vmatpush2.msra.mxu0 0.0
      %2003 = vmatprep.subr.mxu0 0.0
      %2004 = vmatpush2.msra.mxu0 0.0
      %2005 = vmatprep.mubr.f32.mxu0 0.0
      %2006 = vmatmul.mubr.f32.gmra.mxu0 %v1925
      %v2007 = vpop.f32.mrf.mxu0
      %v2008 = vadd.f32 0.0, %v2007
      %v2009 = vpop.f32.mrf.mxu0
      %2010 = vmatprep.mubr.f32.mxu0 0.0
      %2011 = vmatmul.mubr.f32.gmra.mxu0 %v1927
      %v2012 = vpop.f32.mrf.mxu0
      %v2013 = vadd.f32 0.0, %v2012
      %v2014 = vpop.f32.mrf.mxu0
      %2015 = vmatprep.mubr.f32.mxu0 0.0
      %2016 = vmatmul.mubr.f32.gmra.mxu0 %v1929
      %v2017 = vpop.f32.mrf.mxu0
      %v2018 = vadd.f32 0.0, %v2017
      %v2019 = vpop.f32.mrf.mxu0
      %2020 = vmatprep.mubr.f32.mxu0 0.0
      %2021 = vmatmul.mubr.f32.gmra.mxu0 %v1931
      %v2022 = vpop.f32.mrf.mxu0
      %v2023 = vadd.f32 0.0, %v2022
      %v2024 = vpop.f32.mrf.mxu0
      %2025 = vmatprep.mubr.f32.mxu0 0.0
      %2026 = vmatmul.mubr.f32.gmra.mxu0 %v1933
      %v2027 = vpop.f32.mrf.mxu0
      %v2028 = vadd.f32 0.0, %v2027
      %v2029 = vpop.f32.mrf.mxu0
      %2030 = vmatprep.mubr.f32.mxu0 0.0
      %2031 = vmatmul.mubr.f32.gmra.mxu0 %v1935
      %v2032 = vpop.f32.mrf.mxu0
      %v2033 = vadd.f32 0.0, %v2032
      %v2034 = vpop.f32.mrf.mxu0
      %2035 = vmatprep.mubr.f32.mxu0 0.0
      %2036 = vmatmul.mubr.f32.gmra.mxu0 %v1937
      %v2037 = vpop.f32.mrf.mxu0
      %v2038 = vadd.f32 0.0, %v2037
      %v2039 = vpop.f32.mrf.mxu0
      %2040 = vmatprep.mubr.f32.mxu0 0.0
      %2041 = vmatmul.mubr.f32.gmra.mxu0 %v1939
      %v2042 = vpop.f32.mrf.mxu0
      %v2043 = vadd.f32 0.0, %v2042
      %v2044 = vpop.f32.mrf.mxu0
      %2045 = vdwg.mxu0
      %v2046 = vadd.f32 %v953, %v2008
      %v2047 = vadd.f32 %v958, %v2013
      %v2048 = vadd.f32 %v963, %v2018
      %v2049 = vadd.f32 %v968, %v2023
      %v2050 = vadd.f32 %v973, %v2028
      %v2051 = vadd.f32 %v978, %v2033
      %v2052 = vadd.f32 %v983, %v2038
      %v2053 = vadd.f32 %v988, %v2043
      %v2054 = vxor.u32 %v2046, 2147483648
      %v2055 = vxor.u32 %v2047, 2147483648
      %v2056 = vxor.u32 %v2048, 2147483648
      %v2057 = vxor.u32 %v2049, 2147483648
      %v2058 = vxor.u32 %v2050, 2147483648
      %v2059 = vxor.u32 %v2051, 2147483648
      %v2060 = vxor.u32 %v2052, 2147483648
      %v2061 = vxor.u32 %v2053, 2147483648
      %v2062 = vmul.f32 %v2054, 1.442695
      %v2063 = vpow.pop %v2062
      %v2064 = vmul.f32 %v2055, 1.442695
      %v2065 = vpow.pop %v2064
      %v2066 = vmul.f32 %v2056, 1.442695
      %v2067 = vpow.pop %v2066
      %v2068 = vmul.f32 %v2057, 1.442695
      %v2069 = vpow.pop %v2068
      %v2070 = vmul.f32 %v2058, 1.442695
      %v2071 = vpow.pop %v2070
      %v2072 = vmul.f32 %v2059, 1.442695
      %v2073 = vpow.pop %v2072
      %v2074 = vmul.f32 %v2060, 1.442695
      %v2075 = vpow.pop %v2074
      %v2076 = vmul.f32 %v2061, 1.442695
      %v2077 = vpow.pop %v2076
      %v2078 = vadd.f32 %v2063, 1.0
      %v2079 = vadd.f32 %v2065, 1.0
      %v2080 = vadd.f32 %v2067, 1.0
      %v2081 = vadd.f32 %v2069, 1.0
      %v2082 = vadd.f32 %v2071, 1.0
      %v2083 = vadd.f32 %v2073, 1.0
      %v2084 = vadd.f32 %v2075, 1.0
      %v2085 = vadd.f32 %v2077, 1.0
      %v2086 = vrcp.pop %v2078
      %v2087 = vmul.f32 1.0, %v2086
      %v2088 = vrcp.pop %v2079
      %v2089 = vmul.f32 1.0, %v2088
      %v2090 = vrcp.pop %v2080
      %v2091 = vmul.f32 1.0, %v2090
      %v2092 = vrcp.pop %v2081
      %v2093 = vmul.f32 1.0, %v2092
      %v2094 = vrcp.pop %v2082
      %v2095 = vmul.f32 1.0, %v2094
      %v2096 = vrcp.pop %v2083
      %v2097 = vmul.f32 1.0, %v2096
      %v2098 = vrcp.pop %v2084
      %v2099 = vmul.f32 1.0, %v2098
      %v2100 = vrcp.pop %v2085
      %v2101 = vmul.f32 1.0, %v2100
      %v2102 = vtanh.pop %v2046
      %v2103 = vtanh.pop %v2047
      %v2104 = vtanh.pop %v2048
      %v2105 = vtanh.pop %v2049
      %v2106 = vtanh.pop %v2050
      %v2107 = vtanh.pop %v2051
      %v2108 = vtanh.pop %v2052
      %v2109 = vtanh.pop %v2053
      %v2110 = vmul.f32 %v2087, %v1893
      %v2111 = vmul.f32 %v2089, %v1894
      %v2112 = vmul.f32 %v2091, %v1895
      %v2113 = vmul.f32 %v2093, %v1896
      %v2114 = vmul.f32 %v2095, %v1897
      %v2115 = vmul.f32 %v2097, %v1898
      %v2116 = vmul.f32 %v2099, %v1899
      %v2117 = vmul.f32 %v2101, %v1900
      %2126 = vrot.lane.b32.xlu0 %v2102, 96
      %v2127 = vpop.permute.xlu0 %2126
      %2128 = vrot.lane.b32.xlu0 %v2103, 96
      %v2129 = vpop.permute.xlu0 %2128
      %2130 = vrot.lane.b32.xlu0 %v2104, 96
      %v2131 = vpop.permute.xlu0 %2130
      %2132 = vrot.lane.b32.xlu0 %v2105, 96
      %v2133 = vpop.permute.xlu0 %2132
      %2134 = vrot.lane.b32.xlu0 %v2106, 96
      %v2135 = vpop.permute.xlu0 %2134
      %2136 = vrot.lane.b32.xlu0 %v2107, 96
      %v2137 = vpop.permute.xlu0 %2136
      %2138 = vrot.lane.b32.xlu0 %v2108, 96
      %v2139 = vpop.permute.xlu0 %2138
      %2140 = vrot.lane.b32.xlu0 %v2109, 96
      %v2141 = vpop.permute.xlu0 %2140
      %v2150 = vmul.f32 %v2087, %v2127
      %v2151 = vmul.f32 %v2089, %v2129
      %v2152 = vmul.f32 %v2091, %v2131
      %v2153 = vmul.f32 %v2093, %v2133
      %v2154 = vmul.f32 %v2095, %v2135
      %v2155 = vmul.f32 %v2097, %v2137
      %v2156 = vmul.f32 %v2099, %v2139
      %v2157 = vmul.f32 %v2101, %v2141
      %2166 = vrot.lane.b32.xlu0 %v2150, 16
      %v2167 = vpop.permute.xlu0 %2166
      %2168 = vrot.lane.b32.xlu0 %v2151, 16
      %v2169 = vpop.permute.xlu0 %2168
      %2170 = vrot.lane.b32.xlu0 %v2152, 16
      %v2171 = vpop.permute.xlu0 %2170
      %2172 = vrot.lane.b32.xlu0 %v2153, 16
      %v2173 = vpop.permute.xlu0 %2172
      %2174 = vrot.lane.b32.xlu0 %v2154, 16
      %v2175 = vpop.permute.xlu0 %2174
      %2176 = vrot.lane.b32.xlu0 %v2155, 16
      %v2177 = vpop.permute.xlu0 %2176
      %2178 = vrot.lane.b32.xlu0 %v2156, 16
      %v2179 = vpop.permute.xlu0 %2178
      %2180 = vrot.lane.b32.xlu0 %v2157, 16
      %v2181 = vpop.permute.xlu0 %2180
      %v2190 = vadd.f32 %v2110, %v2167
      %v2191 = vadd.f32 %v2111, %v2169
      %v2192 = vadd.f32 %v2112, %v2171
      %v2193 = vadd.f32 %v2113, %v2173
      %v2194 = vadd.f32 %v2114, %v2175
      %v2195 = vadd.f32 %v2115, %v2177
      %v2196 = vadd.f32 %v2116, %v2179
      %v2197 = vadd.f32 %v2117, %v2181
      %v2198 = vtanh.pop %v2190
      %v2199 = vtanh.pop %v2191
      %v2200 = vtanh.pop %v2192
      %v2201 = vtanh.pop %v2193
      %v2202 = vtanh.pop %v2194
      %v2203 = vtanh.pop %v2195
      %v2204 = vtanh.pop %v2196
      %v2205 = vtanh.pop %v2197
      %2214 = vrot.lane.b32.xlu0 %v2198, 32
      %v2215 = vpop.permute.xlu0 %2214
      %2216 = vrot.lane.b32.xlu0 %v2199, 32
      %v2217 = vpop.permute.xlu0 %2216
      %2218 = vrot.lane.b32.xlu0 %v2200, 32
      %v2219 = vpop.permute.xlu0 %2218
      %2220 = vrot.lane.b32.xlu0 %v2201, 32
      %v2221 = vpop.permute.xlu0 %2220
      %2222 = vrot.lane.b32.xlu0 %v2202, 32
      %v2223 = vpop.permute.xlu0 %2222
      %2224 = vrot.lane.b32.xlu0 %v2203, 32
      %v2225 = vpop.permute.xlu0 %2224
      %2226 = vrot.lane.b32.xlu0 %v2204, 32
      %v2227 = vpop.permute.xlu0 %2226
      %2228 = vrot.lane.b32.xlu0 %v2205, 32
      %v2229 = vpop.permute.xlu0 %2228
      %v2238 = vmul.f32 %v2087, %v2215
      %v2239 = vmul.f32 %v2089, %v2217
      %v2240 = vmul.f32 %v2091, %v2219
      %v2241 = vmul.f32 %v2093, %v2221
      %v2242 = vmul.f32 %v2095, %v2223
      %v2243 = vmul.f32 %v2097, %v2225
      %v2244 = vmul.f32 %v2099, %v2227
      %v2245 = vmul.f32 %v2101, %v2229
      %vm2246 = vcmp.gt.s32.totalorder %v1177, 2
      %vm2247 = vcmp.gt.s32.totalorder %v1180, 2
      %vm2248 = vcmp.gt.s32.totalorder %v1183, 2
      %vm2249 = vcmp.gt.s32.totalorder %v1186, 2
      %vm2250 = vcmp.gt.s32.totalorder %v1189, 2
      %vm2251 = vcmp.gt.s32.totalorder %v1192, 2
      %vm2252 = vcmp.gt.s32.totalorder %v1195, 2
      %vm2253 = vcmp.gt.s32.totalorder %v1198, 2
      %v2254 = vsel %vm2246, %v2238, %v1885
      %v2255 = vsel %vm2247, %v2239, %v1886
      %v2256 = vsel %vm2248, %v2240, %v1887
      %v2257 = vsel %vm2249, %v2241, %v1888
      %v2258 = vsel %vm2250, %v2242, %v1889
      %v2259 = vsel %vm2251, %v2243, %v1890
      %v2260 = vsel %vm2252, %v2244, %v1891
      %v2261 = vsel %vm2253, %v2245, %v1892
      %v2262 = vsel %vm2246, %v2190, %v1893
      %v2263 = vsel %vm2247, %v2191, %v1894
      %v2264 = vsel %vm2248, %v2192, %v1895
      %v2265 = vsel %vm2249, %v2193, %v1896
      %v2266 = vsel %vm2250, %v2194, %v1897
      %v2267 = vsel %vm2251, %v2195, %v1898
      %v2268 = vsel %vm2252, %v2196, %v1899
      %v2269 = vsel %vm2253, %v2197, %v1900
      %2278 = vrot.lane.b32.xlu0 %v2254, 80
      %v2279 = vpop.permute.xlu0 %2278
      %2280 = vrot.lane.b32.xlu0 %v2255, 80
      %v2281 = vpop.permute.xlu0 %2280
      %2282 = vrot.lane.b32.xlu0 %v2256, 80
      %v2283 = vpop.permute.xlu0 %2282
      %2284 = vrot.lane.b32.xlu0 %v2257, 80
      %v2285 = vpop.permute.xlu0 %2284
      %2286 = vrot.lane.b32.xlu0 %v2258, 80
      %v2287 = vpop.permute.xlu0 %2286
      %2288 = vrot.lane.b32.xlu0 %v2259, 80
      %v2289 = vpop.permute.xlu0 %2288
      %2290 = vrot.lane.b32.xlu0 %v2260, 80
      %v2291 = vpop.permute.xlu0 %2290
      %2292 = vrot.lane.b32.xlu0 %v2261, 80
      %v2293 = vpop.permute.xlu0 %2292
      %v2294 = vsel %vm1199, %v2279, 0
      %v2296 = vsel %vm1199, %v2281, 0
      %v2298 = vsel %vm1199, %v2283, 0
      %v2300 = vsel %vm1199, %v2285, 0
      %v2302 = vsel %vm1199, %v2287, 0
      %v2304 = vsel %vm1199, %v2289, 0
      %v2306 = vsel %vm1199, %v2291, 0
      %v2308 = vsel %vm1199, %v2293, 0
      %2310 = vmatprep.subr.mxu0 0.0
      %2311 = vmatpush1.msra.mxu0 0.0
      %2312 = vmatprep.subr.mxu0 0.0
      %2313 = vmatpush1.msra.mxu0 0.0
      %2314 = vmatprep.subr.mxu0 0.0
      %2315 = vmatpush1.msra.mxu0 0.0
      %2316 = vmatprep.subr.mxu0 0.0
      %2317 = vmatpush1.msra.mxu0 0.0
      %2318 = vmatprep.subr.mxu0 0.0
      %2319 = vmatpush1.msra.mxu0 0.0
      %2320 = vmatprep.subr.mxu0 0.0
      %2321 = vmatpush1.msra.mxu0 0.0
      %2322 = vmatprep.subr.mxu0 0.0
      %2323 = vmatpush1.msra.mxu0 0.0
      %2324 = vmatprep.subr.mxu0 0.0
      %2325 = vmatpush1.msra.mxu0 0.0
      %2326 = vmatprep.subr.mxu0 0.0
      %2327 = vmatpush1.msra.mxu0 0.0
      %2328 = vmatprep.subr.mxu0 0.0
      %2329 = vmatpush1.msra.mxu0 0.0
      %2330 = vmatprep.subr.mxu0 0.0
      %2331 = vmatpush1.msra.mxu0 0.0
      %2332 = vmatprep.subr.mxu0 0.0
      %2333 = vmatpush1.msra.mxu0 0.0
      %2334 = vmatprep.subr.mxu0 0.0
      %2335 = vmatpush1.msra.mxu0 0.0
      %2336 = vmatprep.subr.mxu0 0.0
      %2337 = vmatpush1.msra.mxu0 0.0
      %2338 = vmatprep.subr.mxu0 0.0
      %2339 = vmatpush1.msra.mxu0 %v304
      %2340 = vmatprep.subr.mxu0 0.0
      %2341 = vmatpush1.msra.mxu0 %v303
      %2342 = vmatprep.subr.mxu0 0.0
      %2343 = vmatpush2.msra.mxu0 0.0
      %2344 = vmatprep.subr.mxu0 0.0
      %2345 = vmatpush2.msra.mxu0 0.0
      %2346 = vmatprep.subr.mxu0 0.0
      %2347 = vmatpush2.msra.mxu0 0.0
      %2348 = vmatprep.subr.mxu0 0.0
      %2349 = vmatpush2.msra.mxu0 0.0
      %2350 = vmatprep.subr.mxu0 0.0
      %2351 = vmatpush2.msra.mxu0 0.0
      %2352 = vmatprep.subr.mxu0 0.0
      %2353 = vmatpush2.msra.mxu0 0.0
      %2354 = vmatprep.subr.mxu0 0.0
      %2355 = vmatpush2.msra.mxu0 0.0
      %2356 = vmatprep.subr.mxu0 0.0
      %2357 = vmatpush2.msra.mxu0 0.0
      %2358 = vmatprep.subr.mxu0 0.0
      %2359 = vmatpush2.msra.mxu0 0.0
      %2360 = vmatprep.subr.mxu0 0.0
      %2361 = vmatpush2.msra.mxu0 0.0
      %2362 = vmatprep.subr.mxu0 0.0
      %2363 = vmatpush2.msra.mxu0 0.0
      %2364 = vmatprep.subr.mxu0 0.0
      %2365 = vmatpush2.msra.mxu0 0.0
      %2366 = vmatprep.subr.mxu0 0.0
      %2367 = vmatpush2.msra.mxu0 0.0
      %2368 = vmatprep.subr.mxu0 0.0
      %2369 = vmatpush2.msra.mxu0 0.0
      %2370 = vmatprep.subr.mxu0 0.0
      %2371 = vmatpush2.msra.mxu0 0.0
      %2372 = vmatprep.subr.mxu0 0.0
      %2373 = vmatpush2.msra.mxu0 0.0
      %2374 = vmatprep.mubr.f32.mxu0 0.0
      %2375 = vmatmul.mubr.f32.gmra.mxu0 %v2294
      %v2376 = vpop.f32.mrf.mxu0
      %v2377 = vadd.f32 0.0, %v2376
      %v2378 = vpop.f32.mrf.mxu0
      %2379 = vmatprep.mubr.f32.mxu0 0.0
      %2380 = vmatmul.mubr.f32.gmra.mxu0 %v2296
      %v2381 = vpop.f32.mrf.mxu0
      %v2382 = vadd.f32 0.0, %v2381
      %v2383 = vpop.f32.mrf.mxu0
      %2384 = vmatprep.mubr.f32.mxu0 0.0
      %2385 = vmatmul.mubr.f32.gmra.mxu0 %v2298
      %v2386 = vpop.f32.mrf.mxu0
      %v2387 = vadd.f32 0.0, %v2386
      %v2388 = vpop.f32.mrf.mxu0
      %2389 = vmatprep.mubr.f32.mxu0 0.0
      %2390 = vmatmul.mubr.f32.gmra.mxu0 %v2300
      %v2391 = vpop.f32.mrf.mxu0
      %v2392 = vadd.f32 0.0, %v2391
      %v2393 = vpop.f32.mrf.mxu0
      %2394 = vmatprep.mubr.f32.mxu0 0.0
      %2395 = vmatmul.mubr.f32.gmra.mxu0 %v2302
      %v2396 = vpop.f32.mrf.mxu0
      %v2397 = vadd.f32 0.0, %v2396
      %v2398 = vpop.f32.mrf.mxu0
      %2399 = vmatprep.mubr.f32.mxu0 0.0
      %2400 = vmatmul.mubr.f32.gmra.mxu0 %v2304
      %v2401 = vpop.f32.mrf.mxu0
      %v2402 = vadd.f32 0.0, %v2401
      %v2403 = vpop.f32.mrf.mxu0
      %2404 = vmatprep.mubr.f32.mxu0 0.0
      %2405 = vmatmul.mubr.f32.gmra.mxu0 %v2306
      %v2406 = vpop.f32.mrf.mxu0
      %v2407 = vadd.f32 0.0, %v2406
      %v2408 = vpop.f32.mrf.mxu0
      %2409 = vmatprep.mubr.f32.mxu0 0.0
      %2410 = vmatmul.mubr.f32.gmra.mxu0 %v2308
      %v2411 = vpop.f32.mrf.mxu0
      %v2412 = vadd.f32 0.0, %v2411
      %v2413 = vpop.f32.mrf.mxu0
      %2414 = vdwg.mxu0
      %v2415 = vadd.f32 %v993, %v2377
      %v2416 = vadd.f32 %v998, %v2382
      %v2417 = vadd.f32 %v1003, %v2387
      %v2418 = vadd.f32 %v1008, %v2392
      %v2419 = vadd.f32 %v1013, %v2397
      %v2420 = vadd.f32 %v1018, %v2402
      %v2421 = vadd.f32 %v1023, %v2407
      %v2422 = vadd.f32 %v1028, %v2412
      %v2423 = vxor.u32 %v2415, 2147483648
      %v2424 = vxor.u32 %v2416, 2147483648
      %v2425 = vxor.u32 %v2417, 2147483648
      %v2426 = vxor.u32 %v2418, 2147483648
      %v2427 = vxor.u32 %v2419, 2147483648
      %v2428 = vxor.u32 %v2420, 2147483648
      %v2429 = vxor.u32 %v2421, 2147483648
      %v2430 = vxor.u32 %v2422, 2147483648
      %v2431 = vmul.f32 %v2423, 1.442695
      %v2432 = vpow.pop %v2431
      %v2433 = vmul.f32 %v2424, 1.442695
      %v2434 = vpow.pop %v2433
      %v2435 = vmul.f32 %v2425, 1.442695
      %v2436 = vpow.pop %v2435
      %v2437 = vmul.f32 %v2426, 1.442695
      %v2438 = vpow.pop %v2437
      %v2439 = vmul.f32 %v2427, 1.442695
      %v2440 = vpow.pop %v2439
      %v2441 = vmul.f32 %v2428, 1.442695
      %v2442 = vpow.pop %v2441
      %v2443 = vmul.f32 %v2429, 1.442695
      %v2444 = vpow.pop %v2443
      %v2445 = vmul.f32 %v2430, 1.442695
      %v2446 = vpow.pop %v2445
      %v2447 = vadd.f32 %v2432, 1.0
      %v2448 = vadd.f32 %v2434, 1.0
      %v2449 = vadd.f32 %v2436, 1.0
      %v2450 = vadd.f32 %v2438, 1.0
      %v2451 = vadd.f32 %v2440, 1.0
      %v2452 = vadd.f32 %v2442, 1.0
      %v2453 = vadd.f32 %v2444, 1.0
      %v2454 = vadd.f32 %v2446, 1.0
      %v2455 = vrcp.pop %v2447
      %v2456 = vmul.f32 1.0, %v2455
      %v2457 = vrcp.pop %v2448
      %v2458 = vmul.f32 1.0, %v2457
      %v2459 = vrcp.pop %v2449
      %v2460 = vmul.f32 1.0, %v2459
      %v2461 = vrcp.pop %v2450
      %v2462 = vmul.f32 1.0, %v2461
      %v2463 = vrcp.pop %v2451
      %v2464 = vmul.f32 1.0, %v2463
      %v2465 = vrcp.pop %v2452
      %v2466 = vmul.f32 1.0, %v2465
      %v2467 = vrcp.pop %v2453
      %v2468 = vmul.f32 1.0, %v2467
      %v2469 = vrcp.pop %v2454
      %v2470 = vmul.f32 1.0, %v2469
      %v2471 = vtanh.pop %v2415
      %v2472 = vtanh.pop %v2416
      %v2473 = vtanh.pop %v2417
      %v2474 = vtanh.pop %v2418
      %v2475 = vtanh.pop %v2419
      %v2476 = vtanh.pop %v2420
      %v2477 = vtanh.pop %v2421
      %v2478 = vtanh.pop %v2422
      %v2479 = vmul.f32 %v2456, %v2262
      %v2480 = vmul.f32 %v2458, %v2263
      %v2481 = vmul.f32 %v2460, %v2264
      %v2482 = vmul.f32 %v2462, %v2265
      %v2483 = vmul.f32 %v2464, %v2266
      %v2484 = vmul.f32 %v2466, %v2267
      %v2485 = vmul.f32 %v2468, %v2268
      %v2486 = vmul.f32 %v2470, %v2269
      %2495 = vrot.lane.b32.xlu0 %v2471, 96
      %v2496 = vpop.permute.xlu0 %2495
      %2497 = vrot.lane.b32.xlu0 %v2472, 96
      %v2498 = vpop.permute.xlu0 %2497
      %2499 = vrot.lane.b32.xlu0 %v2473, 96
      %v2500 = vpop.permute.xlu0 %2499
      %2501 = vrot.lane.b32.xlu0 %v2474, 96
      %v2502 = vpop.permute.xlu0 %2501
      %2503 = vrot.lane.b32.xlu0 %v2475, 96
      %v2504 = vpop.permute.xlu0 %2503
      %2505 = vrot.lane.b32.xlu0 %v2476, 96
      %v2506 = vpop.permute.xlu0 %2505
      %2507 = vrot.lane.b32.xlu0 %v2477, 96
      %v2508 = vpop.permute.xlu0 %2507
      %2509 = vrot.lane.b32.xlu0 %v2478, 96
      %v2510 = vpop.permute.xlu0 %2509
      %v2519 = vmul.f32 %v2456, %v2496
      %v2520 = vmul.f32 %v2458, %v2498
      %v2521 = vmul.f32 %v2460, %v2500
      %v2522 = vmul.f32 %v2462, %v2502
      %v2523 = vmul.f32 %v2464, %v2504
      %v2524 = vmul.f32 %v2466, %v2506
      %v2525 = vmul.f32 %v2468, %v2508
      %v2526 = vmul.f32 %v2470, %v2510
      %2535 = vrot.lane.b32.xlu0 %v2519, 16
      %v2536 = vpop.permute.xlu0 %2535
      %2537 = vrot.lane.b32.xlu0 %v2520, 16
      %v2538 = vpop.permute.xlu0 %2537
      %2539 = vrot.lane.b32.xlu0 %v2521, 16
      %v2540 = vpop.permute.xlu0 %2539
      %2541 = vrot.lane.b32.xlu0 %v2522, 16
      %v2542 = vpop.permute.xlu0 %2541
      %2543 = vrot.lane.b32.xlu0 %v2523, 16
      %v2544 = vpop.permute.xlu0 %2543
      %2545 = vrot.lane.b32.xlu0 %v2524, 16
      %v2546 = vpop.permute.xlu0 %2545
      %2547 = vrot.lane.b32.xlu0 %v2525, 16
      %v2548 = vpop.permute.xlu0 %2547
      %2549 = vrot.lane.b32.xlu0 %v2526, 16
      %v2550 = vpop.permute.xlu0 %2549
      %v2559 = vadd.f32 %v2479, %v2536
      %v2560 = vadd.f32 %v2480, %v2538
      %v2561 = vadd.f32 %v2481, %v2540
      %v2562 = vadd.f32 %v2482, %v2542
      %v2563 = vadd.f32 %v2483, %v2544
      %v2564 = vadd.f32 %v2484, %v2546
      %v2565 = vadd.f32 %v2485, %v2548
      %v2566 = vadd.f32 %v2486, %v2550
      %v2567 = vtanh.pop %v2559
      %v2568 = vtanh.pop %v2560
      %v2569 = vtanh.pop %v2561
      %v2570 = vtanh.pop %v2562
      %v2571 = vtanh.pop %v2563
      %v2572 = vtanh.pop %v2564
      %v2573 = vtanh.pop %v2565
      %v2574 = vtanh.pop %v2566
      %2583 = vrot.lane.b32.xlu0 %v2567, 32
      %v2584 = vpop.permute.xlu0 %2583
      %2585 = vrot.lane.b32.xlu0 %v2568, 32
      %v2586 = vpop.permute.xlu0 %2585
      %2587 = vrot.lane.b32.xlu0 %v2569, 32
      %v2588 = vpop.permute.xlu0 %2587
      %2589 = vrot.lane.b32.xlu0 %v2570, 32
      %v2590 = vpop.permute.xlu0 %2589
      %2591 = vrot.lane.b32.xlu0 %v2571, 32
      %v2592 = vpop.permute.xlu0 %2591
      %2593 = vrot.lane.b32.xlu0 %v2572, 32
      %v2594 = vpop.permute.xlu0 %2593
      %2595 = vrot.lane.b32.xlu0 %v2573, 32
      %v2596 = vpop.permute.xlu0 %2595
      %2597 = vrot.lane.b32.xlu0 %v2574, 32
      %v2598 = vpop.permute.xlu0 %2597
      %v2607 = vmul.f32 %v2456, %v2584
      %v2608 = vmul.f32 %v2458, %v2586
      %v2609 = vmul.f32 %v2460, %v2588
      %v2610 = vmul.f32 %v2462, %v2590
      %v2611 = vmul.f32 %v2464, %v2592
      %v2612 = vmul.f32 %v2466, %v2594
      %v2613 = vmul.f32 %v2468, %v2596
      %v2614 = vmul.f32 %v2470, %v2598
      %vm2615 = vcmp.gt.s32.totalorder %v1177, 3
      %vm2616 = vcmp.gt.s32.totalorder %v1180, 3
      %vm2617 = vcmp.gt.s32.totalorder %v1183, 3
      %vm2618 = vcmp.gt.s32.totalorder %v1186, 3
      %vm2619 = vcmp.gt.s32.totalorder %v1189, 3
      %vm2620 = vcmp.gt.s32.totalorder %v1192, 3
      %vm2621 = vcmp.gt.s32.totalorder %v1195, 3
      %vm2622 = vcmp.gt.s32.totalorder %v1198, 3
      %v2623 = vsel %vm2615, %v2607, %v2254
      %v2624 = vsel %vm2616, %v2608, %v2255
      %v2625 = vsel %vm2617, %v2609, %v2256
      %v2626 = vsel %vm2618, %v2610, %v2257
      %v2627 = vsel %vm2619, %v2611, %v2258
      %v2628 = vsel %vm2620, %v2612, %v2259
      %v2629 = vsel %vm2621, %v2613, %v2260
      %v2630 = vsel %vm2622, %v2614, %v2261
      %v2631 = vsel %vm2615, %v2559, %v2262
      %v2632 = vsel %vm2616, %v2560, %v2263
      %v2633 = vsel %vm2617, %v2561, %v2264
      %v2634 = vsel %vm2618, %v2562, %v2265
      %v2635 = vsel %vm2619, %v2563, %v2266
      %v2636 = vsel %vm2620, %v2564, %v2267
      %v2637 = vsel %vm2621, %v2565, %v2268
      %v2638 = vsel %vm2622, %v2566, %v2269
      %2647 = vrot.lane.b32.xlu0 %v2623, 80
      %v2648 = vpop.permute.xlu0 %2647
      %2649 = vrot.lane.b32.xlu0 %v2624, 80
      %v2650 = vpop.permute.xlu0 %2649
      %2651 = vrot.lane.b32.xlu0 %v2625, 80
      %v2652 = vpop.permute.xlu0 %2651
      %2653 = vrot.lane.b32.xlu0 %v2626, 80
      %v2654 = vpop.permute.xlu0 %2653
      %2655 = vrot.lane.b32.xlu0 %v2627, 80
      %v2656 = vpop.permute.xlu0 %2655
      %2657 = vrot.lane.b32.xlu0 %v2628, 80
      %v2658 = vpop.permute.xlu0 %2657
      %2659 = vrot.lane.b32.xlu0 %v2629, 80
      %v2660 = vpop.permute.xlu0 %2659
      %2661 = vrot.lane.b32.xlu0 %v2630, 80
      %v2662 = vpop.permute.xlu0 %2661
      %v2663 = vsel %vm1199, %v2648, 0
      %v2665 = vsel %vm1199, %v2650, 0
      %v2667 = vsel %vm1199, %v2652, 0
      %v2669 = vsel %vm1199, %v2654, 0
      %v2671 = vsel %vm1199, %v2656, 0
      %v2673 = vsel %vm1199, %v2658, 0
      %v2675 = vsel %vm1199, %v2660, 0
      %v2677 = vsel %vm1199, %v2662, 0
      %2679 = vmatprep.subr.mxu0 0.0
      %2680 = vmatpush1.msra.mxu0 0.0
      %2681 = vmatprep.subr.mxu0 0.0
      %2682 = vmatpush1.msra.mxu0 0.0
      %2683 = vmatprep.subr.mxu0 0.0
      %2684 = vmatpush1.msra.mxu0 0.0
      %2685 = vmatprep.subr.mxu0 0.0
      %2686 = vmatpush1.msra.mxu0 0.0
      %2687 = vmatprep.subr.mxu0 0.0
      %2688 = vmatpush1.msra.mxu0 0.0
      %2689 = vmatprep.subr.mxu0 0.0
      %2690 = vmatpush1.msra.mxu0 0.0
      %2691 = vmatprep.subr.mxu0 0.0
      %2692 = vmatpush1.msra.mxu0 0.0
      %2693 = vmatprep.subr.mxu0 0.0
      %2694 = vmatpush1.msra.mxu0 0.0
      %2695 = vmatprep.subr.mxu0 0.0
      %2696 = vmatpush1.msra.mxu0 0.0
      %2697 = vmatprep.subr.mxu0 0.0
      %2698 = vmatpush1.msra.mxu0 0.0
      %2699 = vmatprep.subr.mxu0 0.0
      %2700 = vmatpush1.msra.mxu0 0.0
      %2701 = vmatprep.subr.mxu0 0.0
      %2702 = vmatpush1.msra.mxu0 0.0
      %2703 = vmatprep.subr.mxu0 0.0
      %2704 = vmatpush1.msra.mxu0 0.0
      %2705 = vmatprep.subr.mxu0 0.0
      %2706 = vmatpush1.msra.mxu0 0.0
      %2707 = vmatprep.subr.mxu0 0.0
      %2708 = vmatpush1.msra.mxu0 %v304
      %2709 = vmatprep.subr.mxu0 0.0
      %2710 = vmatpush1.msra.mxu0 %v303
      %2711 = vmatprep.subr.mxu0 0.0
      %2712 = vmatpush2.msra.mxu0 0.0
      %2713 = vmatprep.subr.mxu0 0.0
      %2714 = vmatpush2.msra.mxu0 0.0
      %2715 = vmatprep.subr.mxu0 0.0
      %2716 = vmatpush2.msra.mxu0 0.0
      %2717 = vmatprep.subr.mxu0 0.0
      %2718 = vmatpush2.msra.mxu0 0.0
      %2719 = vmatprep.subr.mxu0 0.0
      %2720 = vmatpush2.msra.mxu0 0.0
      %2721 = vmatprep.subr.mxu0 0.0
      %2722 = vmatpush2.msra.mxu0 0.0
      %2723 = vmatprep.subr.mxu0 0.0
      %2724 = vmatpush2.msra.mxu0 0.0
      %2725 = vmatprep.subr.mxu0 0.0
      %2726 = vmatpush2.msra.mxu0 0.0
      %2727 = vmatprep.subr.mxu0 0.0
      %2728 = vmatpush2.msra.mxu0 0.0
      %2729 = vmatprep.subr.mxu0 0.0
      %2730 = vmatpush2.msra.mxu0 0.0
      %2731 = vmatprep.subr.mxu0 0.0
      %2732 = vmatpush2.msra.mxu0 0.0
      %2733 = vmatprep.subr.mxu0 0.0
      %2734 = vmatpush2.msra.mxu0 0.0
      %2735 = vmatprep.subr.mxu0 0.0
      %2736 = vmatpush2.msra.mxu0 0.0
      %2737 = vmatprep.subr.mxu0 0.0
      %2738 = vmatpush2.msra.mxu0 0.0
      %2739 = vmatprep.subr.mxu0 0.0
      %2740 = vmatpush2.msra.mxu0 0.0
      %2741 = vmatprep.subr.mxu0 0.0
      %2742 = vmatpush2.msra.mxu0 0.0
      %2743 = vmatprep.mubr.f32.mxu0 0.0
      %2744 = vmatmul.mubr.f32.gmra.mxu0 %v2663
      %v2745 = vpop.f32.mrf.mxu0
      %v2746 = vadd.f32 0.0, %v2745
      %v2747 = vpop.f32.mrf.mxu0
      %2748 = vmatprep.mubr.f32.mxu0 0.0
      %2749 = vmatmul.mubr.f32.gmra.mxu0 %v2665
      %v2750 = vpop.f32.mrf.mxu0
      %v2751 = vadd.f32 0.0, %v2750
      %v2752 = vpop.f32.mrf.mxu0
      %2753 = vmatprep.mubr.f32.mxu0 0.0
      %2754 = vmatmul.mubr.f32.gmra.mxu0 %v2667
      %v2755 = vpop.f32.mrf.mxu0
      %v2756 = vadd.f32 0.0, %v2755
      %v2757 = vpop.f32.mrf.mxu0
      %2758 = vmatprep.mubr.f32.mxu0 0.0
      %2759 = vmatmul.mubr.f32.gmra.mxu0 %v2669
      %v2760 = vpop.f32.mrf.mxu0
      %v2761 = vadd.f32 0.0, %v2760
      %v2762 = vpop.f32.mrf.mxu0
      %2763 = vmatprep.mubr.f32.mxu0 0.0
      %2764 = vmatmul.mubr.f32.gmra.mxu0 %v2671
      %v2765 = vpop.f32.mrf.mxu0
      %v2766 = vadd.f32 0.0, %v2765
      %v2767 = vpop.f32.mrf.mxu0
      %2768 = vmatprep.mubr.f32.mxu0 0.0
      %2769 = vmatmul.mubr.f32.gmra.mxu0 %v2673
      %v2770 = vpop.f32.mrf.mxu0
      %v2771 = vadd.f32 0.0, %v2770
      %v2772 = vpop.f32.mrf.mxu0
      %2773 = vmatprep.mubr.f32.mxu0 0.0
      %2774 = vmatmul.mubr.f32.gmra.mxu0 %v2675
      %v2775 = vpop.f32.mrf.mxu0
      %v2776 = vadd.f32 0.0, %v2775
      %v2777 = vpop.f32.mrf.mxu0
      %2778 = vmatprep.mubr.f32.mxu0 0.0
      %2779 = vmatmul.mubr.f32.gmra.mxu0 %v2677
      %v2780 = vpop.f32.mrf.mxu0
      %v2781 = vadd.f32 0.0, %v2780
      %v2782 = vpop.f32.mrf.mxu0
      %2783 = vdwg.mxu0
      %v2784 = vadd.f32 %v1033, %v2746
      %v2785 = vadd.f32 %v1038, %v2751
      %v2786 = vadd.f32 %v1043, %v2756
      %v2787 = vadd.f32 %v1048, %v2761
      %v2788 = vadd.f32 %v1053, %v2766
      %v2789 = vadd.f32 %v1058, %v2771
      %v2790 = vadd.f32 %v1063, %v2776
      %v2791 = vadd.f32 %v1068, %v2781
      %v2792 = vxor.u32 %v2784, 2147483648
      %v2793 = vxor.u32 %v2785, 2147483648
      %v2794 = vxor.u32 %v2786, 2147483648
      %v2795 = vxor.u32 %v2787, 2147483648
      %v2796 = vxor.u32 %v2788, 2147483648
      %v2797 = vxor.u32 %v2789, 2147483648
      %v2798 = vxor.u32 %v2790, 2147483648
      %v2799 = vxor.u32 %v2791, 2147483648
      %v2800 = vmul.f32 %v2792, 1.442695
      %v2801 = vpow.pop %v2800
      %v2802 = vmul.f32 %v2793, 1.442695
      %v2803 = vpow.pop %v2802
      %v2804 = vmul.f32 %v2794, 1.442695
      %v2805 = vpow.pop %v2804
      %v2806 = vmul.f32 %v2795, 1.442695
      %v2807 = vpow.pop %v2806
      %v2808 = vmul.f32 %v2796, 1.442695
      %v2809 = vpow.pop %v2808
      %v2810 = vmul.f32 %v2797, 1.442695
      %v2811 = vpow.pop %v2810
      %v2812 = vmul.f32 %v2798, 1.442695
      %v2813 = vpow.pop %v2812
      %v2814 = vmul.f32 %v2799, 1.442695
      %v2815 = vpow.pop %v2814
      %v2816 = vadd.f32 %v2801, 1.0
      %v2817 = vadd.f32 %v2803, 1.0
      %v2818 = vadd.f32 %v2805, 1.0
      %v2819 = vadd.f32 %v2807, 1.0
      %v2820 = vadd.f32 %v2809, 1.0
      %v2821 = vadd.f32 %v2811, 1.0
      %v2822 = vadd.f32 %v2813, 1.0
      %v2823 = vadd.f32 %v2815, 1.0
      %v2824 = vrcp.pop %v2816
      %v2825 = vmul.f32 1.0, %v2824
      %v2826 = vrcp.pop %v2817
      %v2827 = vmul.f32 1.0, %v2826
      %v2828 = vrcp.pop %v2818
      %v2829 = vmul.f32 1.0, %v2828
      %v2830 = vrcp.pop %v2819
      %v2831 = vmul.f32 1.0, %v2830
      %v2832 = vrcp.pop %v2820
      %v2833 = vmul.f32 1.0, %v2832
      %v2834 = vrcp.pop %v2821
      %v2835 = vmul.f32 1.0, %v2834
      %v2836 = vrcp.pop %v2822
      %v2837 = vmul.f32 1.0, %v2836
      %v2838 = vrcp.pop %v2823
      %v2839 = vmul.f32 1.0, %v2838
      %v2840 = vtanh.pop %v2784
      %v2841 = vtanh.pop %v2785
      %v2842 = vtanh.pop %v2786
      %v2843 = vtanh.pop %v2787
      %v2844 = vtanh.pop %v2788
      %v2845 = vtanh.pop %v2789
      %v2846 = vtanh.pop %v2790
      %v2847 = vtanh.pop %v2791
      %v2848 = vmul.f32 %v2825, %v2631
      %v2849 = vmul.f32 %v2827, %v2632
      %v2850 = vmul.f32 %v2829, %v2633
      %v2851 = vmul.f32 %v2831, %v2634
      %v2852 = vmul.f32 %v2833, %v2635
      %v2853 = vmul.f32 %v2835, %v2636
      %v2854 = vmul.f32 %v2837, %v2637
      %v2855 = vmul.f32 %v2839, %v2638
      %2864 = vrot.lane.b32.xlu0 %v2840, 96
      %v2865 = vpop.permute.xlu0 %2864
      %2866 = vrot.lane.b32.xlu0 %v2841, 96
      %v2867 = vpop.permute.xlu0 %2866
      %2868 = vrot.lane.b32.xlu0 %v2842, 96
      %v2869 = vpop.permute.xlu0 %2868
      %2870 = vrot.lane.b32.xlu0 %v2843, 96
      %v2871 = vpop.permute.xlu0 %2870
      %2872 = vrot.lane.b32.xlu0 %v2844, 96
      %v2873 = vpop.permute.xlu0 %2872
      %2874 = vrot.lane.b32.xlu0 %v2845, 96
      %v2875 = vpop.permute.xlu0 %2874
      %2876 = vrot.lane.b32.xlu0 %v2846, 96
      %v2877 = vpop.permute.xlu0 %2876
      %2878 = vrot.lane.b32.xlu0 %v2847, 96
      %v2879 = vpop.permute.xlu0 %2878
      %v2888 = vmul.f32 %v2825, %v2865
      %v2889 = vmul.f32 %v2827, %v2867
      %v2890 = vmul.f32 %v2829, %v2869
      %v2891 = vmul.f32 %v2831, %v2871
      %v2892 = vmul.f32 %v2833, %v2873
      %v2893 = vmul.f32 %v2835, %v2875
      %v2894 = vmul.f32 %v2837, %v2877
      %v2895 = vmul.f32 %v2839, %v2879
      %2904 = vrot.lane.b32.xlu0 %v2888, 16
      %v2905 = vpop.permute.xlu0 %2904
      %2906 = vrot.lane.b32.xlu0 %v2889, 16
      %v2907 = vpop.permute.xlu0 %2906
      %2908 = vrot.lane.b32.xlu0 %v2890, 16
      %v2909 = vpop.permute.xlu0 %2908
      %2910 = vrot.lane.b32.xlu0 %v2891, 16
      %v2911 = vpop.permute.xlu0 %2910
      %2912 = vrot.lane.b32.xlu0 %v2892, 16
      %v2913 = vpop.permute.xlu0 %2912
      %2914 = vrot.lane.b32.xlu0 %v2893, 16
      %v2915 = vpop.permute.xlu0 %2914
      %2916 = vrot.lane.b32.xlu0 %v2894, 16
      %v2917 = vpop.permute.xlu0 %2916
      %2918 = vrot.lane.b32.xlu0 %v2895, 16
      %v2919 = vpop.permute.xlu0 %2918
      %v2928 = vadd.f32 %v2848, %v2905
      %v2929 = vadd.f32 %v2849, %v2907
      %v2930 = vadd.f32 %v2850, %v2909
      %v2931 = vadd.f32 %v2851, %v2911
      %v2932 = vadd.f32 %v2852, %v2913
      %v2933 = vadd.f32 %v2853, %v2915
      %v2934 = vadd.f32 %v2854, %v2917
      %v2935 = vadd.f32 %v2855, %v2919
      %v2936 = vtanh.pop %v2928
      %v2937 = vtanh.pop %v2929
      %v2938 = vtanh.pop %v2930
      %v2939 = vtanh.pop %v2931
      %v2940 = vtanh.pop %v2932
      %v2941 = vtanh.pop %v2933
      %v2942 = vtanh.pop %v2934
      %v2943 = vtanh.pop %v2935
      %2952 = vrot.lane.b32.xlu0 %v2936, 32
      %v2953 = vpop.permute.xlu0 %2952
      %2954 = vrot.lane.b32.xlu0 %v2937, 32
      %v2955 = vpop.permute.xlu0 %2954
      %2956 = vrot.lane.b32.xlu0 %v2938, 32
      %v2957 = vpop.permute.xlu0 %2956
      %2958 = vrot.lane.b32.xlu0 %v2939, 32
      %v2959 = vpop.permute.xlu0 %2958
      %2960 = vrot.lane.b32.xlu0 %v2940, 32
      %v2961 = vpop.permute.xlu0 %2960
      %2962 = vrot.lane.b32.xlu0 %v2941, 32
      %v2963 = vpop.permute.xlu0 %2962
      %2964 = vrot.lane.b32.xlu0 %v2942, 32
      %v2965 = vpop.permute.xlu0 %2964
      %2966 = vrot.lane.b32.xlu0 %v2943, 32
      %v2967 = vpop.permute.xlu0 %2966
      %v2976 = vmul.f32 %v2825, %v2953
      %v2977 = vmul.f32 %v2827, %v2955
      %v2978 = vmul.f32 %v2829, %v2957
      %v2979 = vmul.f32 %v2831, %v2959
      %v2980 = vmul.f32 %v2833, %v2961
      %v2981 = vmul.f32 %v2835, %v2963
      %v2982 = vmul.f32 %v2837, %v2965
      %v2983 = vmul.f32 %v2839, %v2967
      %vm2984 = vcmp.gt.s32.totalorder %v1177, 4
      %vm2985 = vcmp.gt.s32.totalorder %v1180, 4
      %vm2986 = vcmp.gt.s32.totalorder %v1183, 4
      %vm2987 = vcmp.gt.s32.totalorder %v1186, 4
      %vm2988 = vcmp.gt.s32.totalorder %v1189, 4
      %vm2989 = vcmp.gt.s32.totalorder %v1192, 4
      %vm2990 = vcmp.gt.s32.totalorder %v1195, 4
      %vm2991 = vcmp.gt.s32.totalorder %v1198, 4
      %v2992 = vsel %vm2984, %v2976, %v2623
      %v2993 = vsel %vm2985, %v2977, %v2624
      %v2994 = vsel %vm2986, %v2978, %v2625
      %v2995 = vsel %vm2987, %v2979, %v2626
      %v2996 = vsel %vm2988, %v2980, %v2627
      %v2997 = vsel %vm2989, %v2981, %v2628
      %v2998 = vsel %vm2990, %v2982, %v2629
      %v2999 = vsel %vm2991, %v2983, %v2630
      %v3000 = vsel %vm2984, %v2928, %v2631
      %v3001 = vsel %vm2985, %v2929, %v2632
      %v3002 = vsel %vm2986, %v2930, %v2633
      %v3003 = vsel %vm2987, %v2931, %v2634
      %v3004 = vsel %vm2988, %v2932, %v2635
      %v3005 = vsel %vm2989, %v2933, %v2636
      %v3006 = vsel %vm2990, %v2934, %v2637
      %v3007 = vsel %vm2991, %v2935, %v2638
      %3016 = vrot.lane.b32.xlu0 %v2992, 80
      %v3017 = vpop.permute.xlu0 %3016
      %3018 = vrot.lane.b32.xlu0 %v2993, 80
      %v3019 = vpop.permute.xlu0 %3018
      %3020 = vrot.lane.b32.xlu0 %v2994, 80
      %v3021 = vpop.permute.xlu0 %3020
      %3022 = vrot.lane.b32.xlu0 %v2995, 80
      %v3023 = vpop.permute.xlu0 %3022
      %3024 = vrot.lane.b32.xlu0 %v2996, 80
      %v3025 = vpop.permute.xlu0 %3024
      %3026 = vrot.lane.b32.xlu0 %v2997, 80
      %v3027 = vpop.permute.xlu0 %3026
      %3028 = vrot.lane.b32.xlu0 %v2998, 80
      %v3029 = vpop.permute.xlu0 %3028
      %3030 = vrot.lane.b32.xlu0 %v2999, 80
      %v3031 = vpop.permute.xlu0 %3030
      %v3032 = vsel %vm1199, %v3017, 0
      %v3034 = vsel %vm1199, %v3019, 0
      %v3036 = vsel %vm1199, %v3021, 0
      %v3038 = vsel %vm1199, %v3023, 0
      %v3040 = vsel %vm1199, %v3025, 0
      %v3042 = vsel %vm1199, %v3027, 0
      %v3044 = vsel %vm1199, %v3029, 0
      %v3046 = vsel %vm1199, %v3031, 0
      %3048 = vmatprep.subr.mxu0 0.0
      %3049 = vmatpush1.msra.mxu0 0.0
      %3050 = vmatprep.subr.mxu0 0.0
      %3051 = vmatpush1.msra.mxu0 0.0
      %3052 = vmatprep.subr.mxu0 0.0
      %3053 = vmatpush1.msra.mxu0 0.0
      %3054 = vmatprep.subr.mxu0 0.0
      %3055 = vmatpush1.msra.mxu0 0.0
      %3056 = vmatprep.subr.mxu0 0.0
      %3057 = vmatpush1.msra.mxu0 0.0
      %3058 = vmatprep.subr.mxu0 0.0
      %3059 = vmatpush1.msra.mxu0 0.0
      %3060 = vmatprep.subr.mxu0 0.0
      %3061 = vmatpush1.msra.mxu0 0.0
      %3062 = vmatprep.subr.mxu0 0.0
      %3063 = vmatpush1.msra.mxu0 0.0
      %3064 = vmatprep.subr.mxu0 0.0
      %3065 = vmatpush1.msra.mxu0 0.0
      %3066 = vmatprep.subr.mxu0 0.0
      %3067 = vmatpush1.msra.mxu0 0.0
      %3068 = vmatprep.subr.mxu0 0.0
      %3069 = vmatpush1.msra.mxu0 0.0
      %3070 = vmatprep.subr.mxu0 0.0
      %3071 = vmatpush1.msra.mxu0 0.0
      %3072 = vmatprep.subr.mxu0 0.0
      %3073 = vmatpush1.msra.mxu0 0.0
      %3074 = vmatprep.subr.mxu0 0.0
      %3075 = vmatpush1.msra.mxu0 0.0
      %3076 = vmatprep.subr.mxu0 0.0
      %3077 = vmatpush1.msra.mxu0 %v304
      %3078 = vmatprep.subr.mxu0 0.0
      %3079 = vmatpush1.msra.mxu0 %v303
      %3080 = vmatprep.subr.mxu0 0.0
      %3081 = vmatpush2.msra.mxu0 0.0
      %3082 = vmatprep.subr.mxu0 0.0
      %3083 = vmatpush2.msra.mxu0 0.0
      %3084 = vmatprep.subr.mxu0 0.0
      %3085 = vmatpush2.msra.mxu0 0.0
      %3086 = vmatprep.subr.mxu0 0.0
      %3087 = vmatpush2.msra.mxu0 0.0
      %3088 = vmatprep.subr.mxu0 0.0
      %3089 = vmatpush2.msra.mxu0 0.0
      %3090 = vmatprep.subr.mxu0 0.0
      %3091 = vmatpush2.msra.mxu0 0.0
      %3092 = vmatprep.subr.mxu0 0.0
      %3093 = vmatpush2.msra.mxu0 0.0
      %3094 = vmatprep.subr.mxu0 0.0
      %3095 = vmatpush2.msra.mxu0 0.0
      %3096 = vmatprep.subr.mxu0 0.0
      %3097 = vmatpush2.msra.mxu0 0.0
      %3098 = vmatprep.subr.mxu0 0.0
      %3099 = vmatpush2.msra.mxu0 0.0
      %3100 = vmatprep.subr.mxu0 0.0
      %3101 = vmatpush2.msra.mxu0 0.0
      %3102 = vmatprep.subr.mxu0 0.0
      %3103 = vmatpush2.msra.mxu0 0.0
      %3104 = vmatprep.subr.mxu0 0.0
      %3105 = vmatpush2.msra.mxu0 0.0
      %3106 = vmatprep.subr.mxu0 0.0
      %3107 = vmatpush2.msra.mxu0 0.0
      %3108 = vmatprep.subr.mxu0 0.0
      %3109 = vmatpush2.msra.mxu0 0.0
      %3110 = vmatprep.subr.mxu0 0.0
      %3111 = vmatpush2.msra.mxu0 0.0
      %3112 = vmatprep.mubr.f32.mxu0 0.0
      %3113 = vmatmul.mubr.f32.gmra.mxu0 %v3032
      %v3114 = vpop.f32.mrf.mxu0
      %v3115 = vadd.f32 0.0, %v3114
      %v3116 = vpop.f32.mrf.mxu0
      %3117 = vmatprep.mubr.f32.mxu0 0.0
      %3118 = vmatmul.mubr.f32.gmra.mxu0 %v3034
      %v3119 = vpop.f32.mrf.mxu0
      %v3120 = vadd.f32 0.0, %v3119
      %v3121 = vpop.f32.mrf.mxu0
      %3122 = vmatprep.mubr.f32.mxu0 0.0
      %3123 = vmatmul.mubr.f32.gmra.mxu0 %v3036
      %v3124 = vpop.f32.mrf.mxu0
      %v3125 = vadd.f32 0.0, %v3124
      %v3126 = vpop.f32.mrf.mxu0
      %3127 = vmatprep.mubr.f32.mxu0 0.0
      %3128 = vmatmul.mubr.f32.gmra.mxu0 %v3038
      %v3129 = vpop.f32.mrf.mxu0
      %v3130 = vadd.f32 0.0, %v3129
      %v3131 = vpop.f32.mrf.mxu0
      %3132 = vmatprep.mubr.f32.mxu0 0.0
      %3133 = vmatmul.mubr.f32.gmra.mxu0 %v3040
      %v3134 = vpop.f32.mrf.mxu0
      %v3135 = vadd.f32 0.0, %v3134
      %v3136 = vpop.f32.mrf.mxu0
      %3137 = vmatprep.mubr.f32.mxu0 0.0
      %3138 = vmatmul.mubr.f32.gmra.mxu0 %v3042
      %v3139 = vpop.f32.mrf.mxu0
      %v3140 = vadd.f32 0.0, %v3139
      %v3141 = vpop.f32.mrf.mxu0
      %3142 = vmatprep.mubr.f32.mxu0 0.0
      %3143 = vmatmul.mubr.f32.gmra.mxu0 %v3044
      %v3144 = vpop.f32.mrf.mxu0
      %v3145 = vadd.f32 0.0, %v3144
      %v3146 = vpop.f32.mrf.mxu0
      %3147 = vmatprep.mubr.f32.mxu0 0.0
      %3148 = vmatmul.mubr.f32.gmra.mxu0 %v3046
      %v3149 = vpop.f32.mrf.mxu0
      %v3150 = vadd.f32 0.0, %v3149
      %v3151 = vpop.f32.mrf.mxu0
      %3152 = vdwg.mxu0
      %v3153 = vadd.f32 %v1073, %v3115
      %v3154 = vadd.f32 %v1078, %v3120
      %v3155 = vadd.f32 %v1083, %v3125
      %v3156 = vadd.f32 %v1088, %v3130
      %v3157 = vadd.f32 %v1093, %v3135
      %v3158 = vadd.f32 %v1098, %v3140
      %v3159 = vadd.f32 %v1103, %v3145
      %v3160 = vadd.f32 %v1108, %v3150
      %v3161 = vxor.u32 %v3153, 2147483648
      %v3162 = vxor.u32 %v3154, 2147483648
      %v3163 = vxor.u32 %v3155, 2147483648
      %v3164 = vxor.u32 %v3156, 2147483648
      %v3165 = vxor.u32 %v3157, 2147483648
      %v3166 = vxor.u32 %v3158, 2147483648
      %v3167 = vxor.u32 %v3159, 2147483648
      %v3168 = vxor.u32 %v3160, 2147483648
      %v3169 = vmul.f32 %v3161, 1.442695
      %v3170 = vpow.pop %v3169
      %v3171 = vmul.f32 %v3162, 1.442695
      %v3172 = vpow.pop %v3171
      %v3173 = vmul.f32 %v3163, 1.442695
      %v3174 = vpow.pop %v3173
      %v3175 = vmul.f32 %v3164, 1.442695
      %v3176 = vpow.pop %v3175
      %v3177 = vmul.f32 %v3165, 1.442695
      %v3178 = vpow.pop %v3177
      %v3179 = vmul.f32 %v3166, 1.442695
      %v3180 = vpow.pop %v3179
      %v3181 = vmul.f32 %v3167, 1.442695
      %v3182 = vpow.pop %v3181
      %v3183 = vmul.f32 %v3168, 1.442695
      %v3184 = vpow.pop %v3183
      %v3185 = vadd.f32 %v3170, 1.0
      %v3186 = vadd.f32 %v3172, 1.0
      %v3187 = vadd.f32 %v3174, 1.0
      %v3188 = vadd.f32 %v3176, 1.0
      %v3189 = vadd.f32 %v3178, 1.0
      %v3190 = vadd.f32 %v3180, 1.0
      %v3191 = vadd.f32 %v3182, 1.0
      %v3192 = vadd.f32 %v3184, 1.0
      %v3193 = vrcp.pop %v3185
      %v3194 = vmul.f32 1.0, %v3193
      %v3195 = vrcp.pop %v3186
      %v3196 = vmul.f32 1.0, %v3195
      %v3197 = vrcp.pop %v3187
      %v3198 = vmul.f32 1.0, %v3197
      %v3199 = vrcp.pop %v3188
      %v3200 = vmul.f32 1.0, %v3199
      %v3201 = vrcp.pop %v3189
      %v3202 = vmul.f32 1.0, %v3201
      %v3203 = vrcp.pop %v3190
      %v3204 = vmul.f32 1.0, %v3203
      %v3205 = vrcp.pop %v3191
      %v3206 = vmul.f32 1.0, %v3205
      %v3207 = vrcp.pop %v3192
      %v3208 = vmul.f32 1.0, %v3207
      %v3209 = vtanh.pop %v3153
      %v3210 = vtanh.pop %v3154
      %v3211 = vtanh.pop %v3155
      %v3212 = vtanh.pop %v3156
      %v3213 = vtanh.pop %v3157
      %v3214 = vtanh.pop %v3158
      %v3215 = vtanh.pop %v3159
      %v3216 = vtanh.pop %v3160
      %v3217 = vmul.f32 %v3194, %v3000
      %v3218 = vmul.f32 %v3196, %v3001
      %v3219 = vmul.f32 %v3198, %v3002
      %v3220 = vmul.f32 %v3200, %v3003
      %v3221 = vmul.f32 %v3202, %v3004
      %v3222 = vmul.f32 %v3204, %v3005
      %v3223 = vmul.f32 %v3206, %v3006
      %v3224 = vmul.f32 %v3208, %v3007
      %3233 = vrot.lane.b32.xlu0 %v3209, 96
      %v3234 = vpop.permute.xlu0 %3233
      %3235 = vrot.lane.b32.xlu0 %v3210, 96
      %v3236 = vpop.permute.xlu0 %3235
      %3237 = vrot.lane.b32.xlu0 %v3211, 96
      %v3238 = vpop.permute.xlu0 %3237
      %3239 = vrot.lane.b32.xlu0 %v3212, 96
      %v3240 = vpop.permute.xlu0 %3239
      %3241 = vrot.lane.b32.xlu0 %v3213, 96
      %v3242 = vpop.permute.xlu0 %3241
      %3243 = vrot.lane.b32.xlu0 %v3214, 96
      %v3244 = vpop.permute.xlu0 %3243
      %3245 = vrot.lane.b32.xlu0 %v3215, 96
      %v3246 = vpop.permute.xlu0 %3245
      %3247 = vrot.lane.b32.xlu0 %v3216, 96
      %v3248 = vpop.permute.xlu0 %3247
      %v3257 = vmul.f32 %v3194, %v3234
      %v3258 = vmul.f32 %v3196, %v3236
      %v3259 = vmul.f32 %v3198, %v3238
      %v3260 = vmul.f32 %v3200, %v3240
      %v3261 = vmul.f32 %v3202, %v3242
      %v3262 = vmul.f32 %v3204, %v3244
      %v3263 = vmul.f32 %v3206, %v3246
      %v3264 = vmul.f32 %v3208, %v3248
      %3273 = vrot.lane.b32.xlu0 %v3257, 16
      %v3274 = vpop.permute.xlu0 %3273
      %3275 = vrot.lane.b32.xlu0 %v3258, 16
      %v3276 = vpop.permute.xlu0 %3275
      %3277 = vrot.lane.b32.xlu0 %v3259, 16
      %v3278 = vpop.permute.xlu0 %3277
      %3279 = vrot.lane.b32.xlu0 %v3260, 16
      %v3280 = vpop.permute.xlu0 %3279
      %3281 = vrot.lane.b32.xlu0 %v3261, 16
      %v3282 = vpop.permute.xlu0 %3281
      %3283 = vrot.lane.b32.xlu0 %v3262, 16
      %v3284 = vpop.permute.xlu0 %3283
      %3285 = vrot.lane.b32.xlu0 %v3263, 16
      %v3286 = vpop.permute.xlu0 %3285
      %3287 = vrot.lane.b32.xlu0 %v3264, 16
      %v3288 = vpop.permute.xlu0 %3287
      %v3297 = vadd.f32 %v3217, %v3274
      %v3298 = vadd.f32 %v3218, %v3276
      %v3299 = vadd.f32 %v3219, %v3278
      %v3300 = vadd.f32 %v3220, %v3280
      %v3301 = vadd.f32 %v3221, %v3282
      %v3302 = vadd.f32 %v3222, %v3284
      %v3303 = vadd.f32 %v3223, %v3286
      %v3304 = vadd.f32 %v3224, %v3288
      %v3305 = vtanh.pop %v3297
      %v3306 = vtanh.pop %v3298
      %v3307 = vtanh.pop %v3299
      %v3308 = vtanh.pop %v3300
      %v3309 = vtanh.pop %v3301
      %v3310 = vtanh.pop %v3302
      %v3311 = vtanh.pop %v3303
      %v3312 = vtanh.pop %v3304
      %3321 = vrot.lane.b32.xlu0 %v3305, 32
      %v3322 = vpop.permute.xlu0 %3321
      %3323 = vrot.lane.b32.xlu0 %v3306, 32
      %v3324 = vpop.permute.xlu0 %3323
      %3325 = vrot.lane.b32.xlu0 %v3307, 32
      %v3326 = vpop.permute.xlu0 %3325
      %3327 = vrot.lane.b32.xlu0 %v3308, 32
      %v3328 = vpop.permute.xlu0 %3327
      %3329 = vrot.lane.b32.xlu0 %v3309, 32
      %v3330 = vpop.permute.xlu0 %3329
      %3331 = vrot.lane.b32.xlu0 %v3310, 32
      %v3332 = vpop.permute.xlu0 %3331
      %3333 = vrot.lane.b32.xlu0 %v3311, 32
      %v3334 = vpop.permute.xlu0 %3333
      %3335 = vrot.lane.b32.xlu0 %v3312, 32
      %v3336 = vpop.permute.xlu0 %3335
      %v3345 = vmul.f32 %v3194, %v3322
      %v3346 = vmul.f32 %v3196, %v3324
      %v3347 = vmul.f32 %v3198, %v3326
      %v3348 = vmul.f32 %v3200, %v3328
      %v3349 = vmul.f32 %v3202, %v3330
      %v3350 = vmul.f32 %v3204, %v3332
      %v3351 = vmul.f32 %v3206, %v3334
      %v3352 = vmul.f32 %v3208, %v3336
      %vm3353 = vcmp.gt.s32.totalorder %v1177, 5
      %vm3354 = vcmp.gt.s32.totalorder %v1180, 5
      %vm3355 = vcmp.gt.s32.totalorder %v1183, 5
      %vm3356 = vcmp.gt.s32.totalorder %v1186, 5
      %vm3357 = vcmp.gt.s32.totalorder %v1189, 5
      %vm3358 = vcmp.gt.s32.totalorder %v1192, 5
      %vm3359 = vcmp.gt.s32.totalorder %v1195, 5
      %vm3360 = vcmp.gt.s32.totalorder %v1198, 5
      %v3361 = vsel %vm3353, %v3345, %v2992
      %v3362 = vsel %vm3354, %v3346, %v2993
      %v3363 = vsel %vm3355, %v3347, %v2994
      %v3364 = vsel %vm3356, %v3348, %v2995
      %v3365 = vsel %vm3357, %v3349, %v2996
      %v3366 = vsel %vm3358, %v3350, %v2997
      %v3367 = vsel %vm3359, %v3351, %v2998
      %v3368 = vsel %vm3360, %v3352, %v2999
      %3377 = vrot.lane.b32.xlu0 %v3361, 80
      %v3378 = vpop.permute.xlu0 %3377
      %3379 = vrot.lane.b32.xlu0 %v3362, 80
      %v3380 = vpop.permute.xlu0 %3379
      %3381 = vrot.lane.b32.xlu0 %v3363, 80
      %v3382 = vpop.permute.xlu0 %3381
      %3383 = vrot.lane.b32.xlu0 %v3364, 80
      %v3384 = vpop.permute.xlu0 %3383
      %3385 = vrot.lane.b32.xlu0 %v3365, 80
      %v3386 = vpop.permute.xlu0 %3385
      %3387 = vrot.lane.b32.xlu0 %v3366, 80
      %v3388 = vpop.permute.xlu0 %3387
      %3389 = vrot.lane.b32.xlu0 %v3367, 80
      %v3390 = vpop.permute.xlu0 %3389
      %3391 = vrot.lane.b32.xlu0 %v3368, 80
      %v3392 = vpop.permute.xlu0 %3391
      %v3393 = vsel %vm1199, %v3378, 0
      %v3395 = vsel %vm1199, %v3380, 0
      %v3397 = vsel %vm1199, %v3382, 0
      %v3399 = vsel %vm1199, %v3384, 0
      %v3401 = vsel %vm1199, %v3386, 0
      %v3403 = vsel %vm1199, %v3388, 0
      %v3405 = vsel %vm1199, %v3390, 0
      %v3407 = vsel %vm1199, %v3392, 0
      %3409 = vmatprep.subr.mxu0 0.0
      %3410 = vmatpush1.msra.mxu0 0.0
      %3411 = vmatprep.subr.mxu0 0.0
      %3412 = vmatpush1.msra.mxu0 0.0
      %3413 = vmatprep.subr.mxu0 0.0
      %3414 = vmatpush1.msra.mxu0 0.0
      %3415 = vmatprep.subr.mxu0 0.0
      %3416 = vmatpush1.msra.mxu0 0.0
      %3417 = vmatprep.subr.mxu0 0.0
      %3418 = vmatpush1.msra.mxu0 0.0
      %3419 = vmatprep.subr.mxu0 0.0
      %3420 = vmatpush1.msra.mxu0 0.0
      %3421 = vmatprep.subr.mxu0 0.0
      %3422 = vmatpush1.msra.mxu0 0.0
      %3423 = vmatprep.subr.mxu0 0.0
      %3424 = vmatpush1.msra.mxu0 0.0
      %3425 = vmatprep.subr.mxu0 0.0
      %3426 = vmatpush1.msra.mxu0 0.0
      %3427 = vmatprep.subr.mxu0 0.0
      %3428 = vmatpush1.msra.mxu0 0.0
      %3429 = vmatprep.subr.mxu0 0.0
      %3430 = vmatpush1.msra.mxu0 0.0
      %3431 = vmatprep.subr.mxu0 0.0
      %3432 = vmatpush1.msra.mxu0 0.0
      %3433 = vmatprep.subr.mxu0 0.0
      %3434 = vmatpush1.msra.mxu0 0.0
      %3435 = vmatprep.subr.mxu0 0.0
      %3436 = vmatpush1.msra.mxu0 0.0
      %3437 = vmatprep.subr.mxu0 0.0
      %3438 = vmatpush1.msra.mxu0 %v313
      %3439 = vmatprep.subr.mxu0 0.0
      %3440 = vmatpush1.msra.mxu0 %v312
      %3441 = vmatprep.subr.mxu0 0.0
      %3442 = vmatpush2.msra.mxu0 0.0
      %3443 = vmatprep.subr.mxu0 0.0
      %3444 = vmatpush2.msra.mxu0 0.0
      %3445 = vmatprep.subr.mxu0 0.0
      %3446 = vmatpush2.msra.mxu0 0.0
      %3447 = vmatprep.subr.mxu0 0.0
      %3448 = vmatpush2.msra.mxu0 0.0
      %3449 = vmatprep.subr.mxu0 0.0
      %3450 = vmatpush2.msra.mxu0 0.0
      %3451 = vmatprep.subr.mxu0 0.0
      %3452 = vmatpush2.msra.mxu0 0.0
      %3453 = vmatprep.subr.mxu0 0.0
      %3454 = vmatpush2.msra.mxu0 0.0
      %3455 = vmatprep.subr.mxu0 0.0
      %3456 = vmatpush2.msra.mxu0 0.0
      %3457 = vmatprep.subr.mxu0 0.0
      %3458 = vmatpush2.msra.mxu0 0.0
      %3459 = vmatprep.subr.mxu0 0.0
      %3460 = vmatpush2.msra.mxu0 0.0
      %3461 = vmatprep.subr.mxu0 0.0
      %3462 = vmatpush2.msra.mxu0 0.0
      %3463 = vmatprep.subr.mxu0 0.0
      %3464 = vmatpush2.msra.mxu0 0.0
      %3465 = vmatprep.subr.mxu0 0.0
      %3466 = vmatpush2.msra.mxu0 0.0
      %3467 = vmatprep.subr.mxu0 0.0
      %3468 = vmatpush2.msra.mxu0 0.0
      %3469 = vmatprep.subr.mxu0 0.0
      %3470 = vmatpush2.msra.mxu0 0.0
      %3471 = vmatprep.subr.mxu0 0.0
      %3472 = vmatpush2.msra.mxu0 0.0
      %3473 = vmatprep.mubr.f32.mxu0 0.0
      %3474 = vmatmul.mubr.f32.gmra.mxu0 %v3393
      %v3475 = vpop.f32.mrf.mxu0
      %v3476 = vadd.f32 0.0, %v3475
      %v3477 = vpop.f32.mrf.mxu0
      %3478 = vmatprep.mubr.f32.mxu0 0.0
      %3479 = vmatmul.mubr.f32.gmra.mxu0 %v3395
      %v3480 = vpop.f32.mrf.mxu0
      %v3481 = vadd.f32 0.0, %v3480
      %v3482 = vpop.f32.mrf.mxu0
      %3483 = vmatprep.mubr.f32.mxu0 0.0
      %3484 = vmatmul.mubr.f32.gmra.mxu0 %v3397
      %v3485 = vpop.f32.mrf.mxu0
      %v3486 = vadd.f32 0.0, %v3485
      %v3487 = vpop.f32.mrf.mxu0
      %3488 = vmatprep.mubr.f32.mxu0 0.0
      %3489 = vmatmul.mubr.f32.gmra.mxu0 %v3399
      %v3490 = vpop.f32.mrf.mxu0
      %v3491 = vadd.f32 0.0, %v3490
      %v3492 = vpop.f32.mrf.mxu0
      %3493 = vmatprep.mubr.f32.mxu0 0.0
      %3494 = vmatmul.mubr.f32.gmra.mxu0 %v3401
      %v3495 = vpop.f32.mrf.mxu0
      %v3496 = vadd.f32 0.0, %v3495
      %v3497 = vpop.f32.mrf.mxu0
      %3498 = vmatprep.mubr.f32.mxu0 0.0
      %3499 = vmatmul.mubr.f32.gmra.mxu0 %v3403
      %v3500 = vpop.f32.mrf.mxu0
      %v3501 = vadd.f32 0.0, %v3500
      %v3502 = vpop.f32.mrf.mxu0
      %3503 = vmatprep.mubr.f32.mxu0 0.0
      %3504 = vmatmul.mubr.f32.gmra.mxu0 %v3405
      %v3505 = vpop.f32.mrf.mxu0
      %v3506 = vadd.f32 0.0, %v3505
      %v3507 = vpop.f32.mrf.mxu0
      %3508 = vmatprep.mubr.f32.mxu0 0.0
      %3509 = vmatmul.mubr.f32.gmra.mxu0 %v3407
      %v3510 = vpop.f32.mrf.mxu0
      %v3511 = vadd.f32 0.0, %v3510
      %v3512 = vpop.f32.mrf.mxu0
      %3513 = vdwg.mxu0
      %vm3514 = vcmask 457728
      %v3516 = vsel %vm3514, %v1159, 0
      %v3519 = vsel %vm3514, %v1160, 0
      %v3522 = vsel %vm3514, %v1161, 0
      %v3525 = vsel %vm3514, %v1162, 0
      %v3528 = vsel %vm3514, %v1163, 0
      %v3531 = vsel %vm3514, %v1164, 0
      %v3534 = vsel %vm3514, %v1165, 0
      %v3537 = vsel %vm3514, %v1166, 0
      %3539 = vmatprep.subr.mxu0 0.0
      %3540 = vmatpush1.msra.mxu0 0.0
      %3541 = vmatprep.subr.mxu0 0.0
      %3542 = vmatpush1.msra.mxu0 0.0
      %3543 = vmatprep.subr.mxu0 0.0
      %3544 = vmatpush1.msra.mxu0 0.0
      %3545 = vmatprep.subr.mxu0 0.0
      %3546 = vmatpush1.msra.mxu0 0.0
      %3547 = vmatprep.subr.mxu0 0.0
      %3548 = vmatpush1.msra.mxu0 0.0
      %3549 = vmatprep.subr.mxu0 0.0
      %3550 = vmatpush1.msra.mxu0 0.0
      %3551 = vmatprep.subr.mxu0 0.0
      %3552 = vmatpush1.msra.mxu0 0.0
      %3553 = vmatprep.subr.mxu0 0.0
      %3554 = vmatpush1.msra.mxu0 0.0
      %3555 = vmatprep.subr.mxu0 0.0
      %3556 = vmatpush1.msra.mxu0 0.0
      %3557 = vmatprep.subr.mxu0 0.0
      %3558 = vmatpush1.msra.mxu0 %v311
      %3559 = vmatprep.subr.mxu0 0.0
      %3560 = vmatpush1.msra.mxu0 %v310
      %3561 = vmatprep.subr.mxu0 0.0
      %3562 = vmatpush1.msra.mxu0 %v309
      %3563 = vmatprep.subr.mxu0 0.0
      %3564 = vmatpush1.msra.mxu0 %v308
      %3565 = vmatprep.subr.mxu0 0.0
      %3566 = vmatpush1.msra.mxu0 %v307
      %3567 = vmatprep.subr.mxu0 0.0
      %3568 = vmatpush1.msra.mxu0 %v306
      %3569 = vmatprep.subr.mxu0 0.0
      %3570 = vmatpush1.msra.mxu0 %v305
      %3571 = vmatprep.subr.mxu0 0.0
      %3572 = vmatpush2.msra.mxu0 0.0
      %3573 = vmatprep.subr.mxu0 0.0
      %3574 = vmatpush2.msra.mxu0 0.0
      %3575 = vmatprep.subr.mxu0 0.0
      %3576 = vmatpush2.msra.mxu0 0.0
      %3577 = vmatprep.subr.mxu0 0.0
      %3578 = vmatpush2.msra.mxu0 0.0
      %3579 = vmatprep.subr.mxu0 0.0
      %3580 = vmatpush2.msra.mxu0 0.0
      %3581 = vmatprep.subr.mxu0 0.0
      %3582 = vmatpush2.msra.mxu0 0.0
      %3583 = vmatprep.subr.mxu0 0.0
      %3584 = vmatpush2.msra.mxu0 0.0
      %3585 = vmatprep.subr.mxu0 0.0
      %3586 = vmatpush2.msra.mxu0 0.0
      %3587 = vmatprep.subr.mxu0 0.0
      %3588 = vmatpush2.msra.mxu0 0.0
      %3589 = vmatprep.subr.mxu0 0.0
      %3590 = vmatpush2.msra.mxu0 0.0
      %3591 = vmatprep.subr.mxu0 0.0
      %3592 = vmatpush2.msra.mxu0 0.0
      %3593 = vmatprep.subr.mxu0 0.0
      %3594 = vmatpush2.msra.mxu0 0.0
      %3595 = vmatprep.subr.mxu0 0.0
      %3596 = vmatpush2.msra.mxu0 0.0
      %3597 = vmatprep.subr.mxu0 0.0
      %3598 = vmatpush2.msra.mxu0 0.0
      %3599 = vmatprep.subr.mxu0 0.0
      %3600 = vmatpush2.msra.mxu0 0.0
      %3601 = vmatprep.subr.mxu0 0.0
      %3602 = vmatpush2.msra.mxu0 0.0
      %3603 = vmatprep.mubr.f32.mxu0 0.0
      %3604 = vmatmul.mubr.f32.gmra.mxu0 %v3516
      %v3605 = vpop.f32.mrf.mxu0
      %v3606 = vadd.f32 %v3476, %v3605
      %v3607 = vpop.f32.mrf.mxu0
      %3608 = vmatprep.mubr.f32.mxu0 0.0
      %3609 = vmatmul.mubr.f32.gmra.mxu0 %v3519
      %v3610 = vpop.f32.mrf.mxu0
      %v3611 = vadd.f32 %v3481, %v3610
      %v3612 = vpop.f32.mrf.mxu0
      %3613 = vmatprep.mubr.f32.mxu0 0.0
      %3614 = vmatmul.mubr.f32.gmra.mxu0 %v3522
      %v3615 = vpop.f32.mrf.mxu0
      %v3616 = vadd.f32 %v3486, %v3615
      %v3617 = vpop.f32.mrf.mxu0
      %3618 = vmatprep.mubr.f32.mxu0 0.0
      %3619 = vmatmul.mubr.f32.gmra.mxu0 %v3525
      %v3620 = vpop.f32.mrf.mxu0
      %v3621 = vadd.f32 %v3491, %v3620
      %v3622 = vpop.f32.mrf.mxu0
      %3623 = vmatprep.mubr.f32.mxu0 0.0
      %3624 = vmatmul.mubr.f32.gmra.mxu0 %v3528
      %v3625 = vpop.f32.mrf.mxu0
      %v3626 = vadd.f32 %v3496, %v3625
      %v3627 = vpop.f32.mrf.mxu0
      %3628 = vmatprep.mubr.f32.mxu0 0.0
      %3629 = vmatmul.mubr.f32.gmra.mxu0 %v3531
      %v3630 = vpop.f32.mrf.mxu0
      %v3631 = vadd.f32 %v3501, %v3630
      %v3632 = vpop.f32.mrf.mxu0
      %3633 = vmatprep.mubr.f32.mxu0 0.0
      %3634 = vmatmul.mubr.f32.gmra.mxu0 %v3534
      %v3635 = vpop.f32.mrf.mxu0
      %v3636 = vadd.f32 %v3506, %v3635
      %v3637 = vpop.f32.mrf.mxu0
      %3638 = vmatprep.mubr.f32.mxu0 0.0
      %3639 = vmatmul.mubr.f32.gmra.mxu0 %v3537
      %v3640 = vpop.f32.mrf.mxu0
      %v3641 = vadd.f32 %v3511, %v3640
      %v3642 = vpop.f32.mrf.mxu0
      %3643 = vdwg.mxu0
      %v3644 = vsel %vm661, 0.0, 0
      %3646 = vmatprep.subr.mxu0 0.0
      %3647 = vmatpush1.msra.mxu0 0.0
      %3648 = vmatprep.subr.mxu0 0.0
      %3649 = vmatpush1.msra.mxu0 0.0
      %3650 = vmatprep.subr.mxu0 0.0
      %3651 = vmatpush1.msra.mxu0 0.0
      %3652 = vmatprep.subr.mxu0 0.0
      %3653 = vmatpush1.msra.mxu0 0.0
      %3654 = vmatprep.subr.mxu0 0.0
      %3655 = vmatpush1.msra.mxu0 0.0
      %3656 = vmatprep.subr.mxu0 0.0
      %3657 = vmatpush1.msra.mxu0 0.0
      %3658 = vmatprep.subr.mxu0 0.0
      %3659 = vmatpush1.msra.mxu0 0.0
      %3660 = vmatprep.subr.mxu0 0.0
      %3661 = vmatpush1.msra.mxu0 0.0
      %3662 = vmatprep.subr.mxu0 0.0
      %3663 = vmatpush1.msra.mxu0 0.0
      %3664 = vmatprep.subr.mxu0 0.0
      %3665 = vmatpush1.msra.mxu0 0.0
      %3666 = vmatprep.subr.mxu0 0.0
      %3667 = vmatpush1.msra.mxu0 0.0
      %3668 = vmatprep.subr.mxu0 0.0
      %3669 = vmatpush1.msra.mxu0 0.0
      %3670 = vmatprep.subr.mxu0 0.0
      %3671 = vmatpush1.msra.mxu0 %v317
      %3672 = vmatprep.subr.mxu0 0.0
      %3673 = vmatpush1.msra.mxu0 %v316
      %3674 = vmatprep.subr.mxu0 0.0
      %3675 = vmatpush1.msra.mxu0 %v315
      %3676 = vmatprep.subr.mxu0 0.0
      %3677 = vmatpush1.msra.mxu0 %v314
      %3678 = vmatprep.subr.mxu0 0.0
      %3679 = vmatpush2.msra.mxu0 0.0
      %3680 = vmatprep.subr.mxu0 0.0
      %3681 = vmatpush2.msra.mxu0 0.0
      %3682 = vmatprep.subr.mxu0 0.0
      %3683 = vmatpush2.msra.mxu0 0.0
      %3684 = vmatprep.subr.mxu0 0.0
      %3685 = vmatpush2.msra.mxu0 0.0
      %3686 = vmatprep.subr.mxu0 0.0
      %3687 = vmatpush2.msra.mxu0 0.0
      %3688 = vmatprep.subr.mxu0 0.0
      %3689 = vmatpush2.msra.mxu0 0.0
      %3690 = vmatprep.subr.mxu0 0.0
      %3691 = vmatpush2.msra.mxu0 0.0
      %3692 = vmatprep.subr.mxu0 0.0
      %3693 = vmatpush2.msra.mxu0 0.0
      %3694 = vmatprep.subr.mxu0 0.0
      %3695 = vmatpush2.msra.mxu0 0.0
      %3696 = vmatprep.subr.mxu0 0.0
      %3697 = vmatpush2.msra.mxu0 0.0
      %3698 = vmatprep.subr.mxu0 0.0
      %3699 = vmatpush2.msra.mxu0 0.0
      %3700 = vmatprep.subr.mxu0 0.0
      %3701 = vmatpush2.msra.mxu0 0.0
      %3702 = vmatprep.subr.mxu0 0.0
      %3703 = vmatpush2.msra.mxu0 0.0
      %3704 = vmatprep.subr.mxu0 0.0
      %3705 = vmatpush2.msra.mxu0 0.0
      %3706 = vmatprep.subr.mxu0 0.0
      %3707 = vmatpush2.msra.mxu0 0.0
      %3708 = vmatprep.subr.mxu0 0.0
      %3709 = vmatpush2.msra.mxu0 0.0
      %3710 = vmatprep.mubr.f32.mxu0 0.0
      %3711 = vmatmul.mubr.f32.gmra.mxu0 %v3644
      %v3712 = vpop.f32.mrf.mxu0
      %v3713 = vadd.f32 0.0, %v3712
      %v3714 = vpop.f32.mrf.mxu0
      %3715 = vdwg.mxu0
      %v3716 = vadd.f32 %v3606, %v3713
      %v3717 = vxor.u32 %v3716, 2147483648
      %v3718 = vmul.f32 %v3717, 1.442695
      %v3719 = vpow.pop %v3718
      %v3720 = vadd.f32 %v3719, 1.0
      %v3721 = vrcp.pop %v3720
      %v3722 = vmul.f32 1.0, %v3721
      %v3723 = vtanh.pop %v3716
      %v3724 = vmul.f32 %v3722, 0.0
      %3726 = vrot.lane.b32.xlu0 %v3723, 64
      %v3727 = vpop.permute.xlu0 %3726
      %v3729 = vmul.f32 %v3722, %v3727
      %3731 = vrot.lane.b32.xlu0 %v3729, 32
      %v3732 = vpop.permute.xlu0 %3731
      %v3734 = vadd.f32 %v3724, %v3732
      %v3735 = vtanh.pop %v3734
      %3737 = vrot.lane.b32.xlu0 %v3735, 64
      %v3738 = vpop.permute.xlu0 %3737
      %v3740 = vmul.f32 %v3722, %v3738
      %3742 = vrot.lane.b32.xlu0 %v3740, 32
      %v3743 = vpop.permute.xlu0 %3742
      %v3744 = vsel %vm661, %v3743, 0
      %3746 = vmatprep.subr.mxu0 0.0
      %3747 = vmatpush1.msra.mxu0 0.0
      %3748 = vmatprep.subr.mxu0 0.0
      %3749 = vmatpush1.msra.mxu0 0.0
      %3750 = vmatprep.subr.mxu0 0.0
      %3751 = vmatpush1.msra.mxu0 0.0
      %3752 = vmatprep.subr.mxu0 0.0
      %3753 = vmatpush1.msra.mxu0 0.0
      %3754 = vmatprep.subr.mxu0 0.0
      %3755 = vmatpush1.msra.mxu0 0.0
      %3756 = vmatprep.subr.mxu0 0.0
      %3757 = vmatpush1.msra.mxu0 0.0
      %3758 = vmatprep.subr.mxu0 0.0
      %3759 = vmatpush1.msra.mxu0 0.0
      %3760 = vmatprep.subr.mxu0 0.0
      %3761 = vmatpush1.msra.mxu0 0.0
      %3762 = vmatprep.subr.mxu0 0.0
      %3763 = vmatpush1.msra.mxu0 0.0
      %3764 = vmatprep.subr.mxu0 0.0
      %3765 = vmatpush1.msra.mxu0 0.0
      %3766 = vmatprep.subr.mxu0 0.0
      %3767 = vmatpush1.msra.mxu0 0.0
      %3768 = vmatprep.subr.mxu0 0.0
      %3769 = vmatpush1.msra.mxu0 0.0
      %3770 = vmatprep.subr.mxu0 0.0
      %3771 = vmatpush1.msra.mxu0 %v317
      %3772 = vmatprep.subr.mxu0 0.0
      %3773 = vmatpush1.msra.mxu0 %v316
      %3774 = vmatprep.subr.mxu0 0.0
      %3775 = vmatpush1.msra.mxu0 %v315
      %3776 = vmatprep.subr.mxu0 0.0
      %3777 = vmatpush1.msra.mxu0 %v314
      %3778 = vmatprep.subr.mxu0 0.0
      %3779 = vmatpush2.msra.mxu0 0.0
      %3780 = vmatprep.subr.mxu0 0.0
      %3781 = vmatpush2.msra.mxu0 0.0
      %3782 = vmatprep.subr.mxu0 0.0
      %3783 = vmatpush2.msra.mxu0 0.0
      %3784 = vmatprep.subr.mxu0 0.0
      %3785 = vmatpush2.msra.mxu0 0.0
      %3786 = vmatprep.subr.mxu0 0.0
      %3787 = vmatpush2.msra.mxu0 0.0
      %3788 = vmatprep.subr.mxu0 0.0
      %3789 = vmatpush2.msra.mxu0 0.0
      %3790 = vmatprep.subr.mxu0 0.0
      %3791 = vmatpush2.msra.mxu0 0.0
      %3792 = vmatprep.subr.mxu0 0.0
      %3793 = vmatpush2.msra.mxu0 0.0
      %3794 = vmatprep.subr.mxu0 0.0
      %3795 = vmatpush2.msra.mxu0 0.0
      %3796 = vmatprep.subr.mxu0 0.0
      %3797 = vmatpush2.msra.mxu0 0.0
      %3798 = vmatprep.subr.mxu0 0.0
      %3799 = vmatpush2.msra.mxu0 0.0
      %3800 = vmatprep.subr.mxu0 0.0
      %3801 = vmatpush2.msra.mxu0 0.0
      %3802 = vmatprep.subr.mxu0 0.0
      %3803 = vmatpush2.msra.mxu0 0.0
      %3804 = vmatprep.subr.mxu0 0.0
      %3805 = vmatpush2.msra.mxu0 0.0
      %3806 = vmatprep.subr.mxu0 0.0
      %3807 = vmatpush2.msra.mxu0 0.0
      %3808 = vmatprep.subr.mxu0 0.0
      %3809 = vmatpush2.msra.mxu0 0.0
      %3810 = vmatprep.mubr.f32.mxu0 0.0
      %3811 = vmatmul.mubr.f32.gmra.mxu0 %v3744
      %v3812 = vpop.f32.mrf.mxu0
      %v3813 = vadd.f32 0.0, %v3812
      %v3814 = vpop.f32.mrf.mxu0
      %3815 = vdwg.mxu0
      %v3816 = vadd.f32 %v3611, %v3813
      %v3817 = vxor.u32 %v3816, 2147483648
      %v3818 = vmul.f32 %v3817, 1.442695
      %v3819 = vpow.pop %v3818
      %v3820 = vadd.f32 %v3819, 1.0
      %v3821 = vrcp.pop %v3820
      %v3822 = vmul.f32 1.0, %v3821
      %v3823 = vtanh.pop %v3816
      %v3824 = vmul.f32 %v3822, %v3734
      %3826 = vrot.lane.b32.xlu0 %v3823, 64
      %v3827 = vpop.permute.xlu0 %3826
      %v3829 = vmul.f32 %v3822, %v3827
      %3831 = vrot.lane.b32.xlu0 %v3829, 32
      %v3832 = vpop.permute.xlu0 %3831
      %v3834 = vadd.f32 %v3824, %v3832
      %v3835 = vtanh.pop %v3834
      %3837 = vrot.lane.b32.xlu0 %v3835, 64
      %v3838 = vpop.permute.xlu0 %3837
      %v3840 = vmul.f32 %v3822, %v3838
      %3842 = vrot.lane.b32.xlu0 %v3840, 32
      %v3843 = vpop.permute.xlu0 %3842
      %v3844 = vsel %vm661, %v3843, 0
      %3846 = vmatprep.subr.mxu0 0.0
      %3847 = vmatpush1.msra.mxu0 0.0
      %3848 = vmatprep.subr.mxu0 0.0
      %3849 = vmatpush1.msra.mxu0 0.0
      %3850 = vmatprep.subr.mxu0 0.0
      %3851 = vmatpush1.msra.mxu0 0.0
      %3852 = vmatprep.subr.mxu0 0.0
      %3853 = vmatpush1.msra.mxu0 0.0
      %3854 = vmatprep.subr.mxu0 0.0
      %3855 = vmatpush1.msra.mxu0 0.0
      %3856 = vmatprep.subr.mxu0 0.0
      %3857 = vmatpush1.msra.mxu0 0.0
      %3858 = vmatprep.subr.mxu0 0.0
      %3859 = vmatpush1.msra.mxu0 0.0
      %3860 = vmatprep.subr.mxu0 0.0
      %3861 = vmatpush1.msra.mxu0 0.0
      %3862 = vmatprep.subr.mxu0 0.0
      %3863 = vmatpush1.msra.mxu0 0.0
      %3864 = vmatprep.subr.mxu0 0.0
      %3865 = vmatpush1.msra.mxu0 0.0
      %3866 = vmatprep.subr.mxu0 0.0
      %3867 = vmatpush1.msra.mxu0 0.0
      %3868 = vmatprep.subr.mxu0 0.0
      %3869 = vmatpush1.msra.mxu0 0.0
      %3870 = vmatprep.subr.mxu0 0.0
      %3871 = vmatpush1.msra.mxu0 %v317
      %3872 = vmatprep.subr.mxu0 0.0
      %3873 = vmatpush1.msra.mxu0 %v316
      %3874 = vmatprep.subr.mxu0 0.0
      %3875 = vmatpush1.msra.mxu0 %v315
      %3876 = vmatprep.subr.mxu0 0.0
      %3877 = vmatpush1.msra.mxu0 %v314
      %3878 = vmatprep.subr.mxu0 0.0
      %3879 = vmatpush2.msra.mxu0 0.0
      %3880 = vmatprep.subr.mxu0 0.0
      %3881 = vmatpush2.msra.mxu0 0.0
      %3882 = vmatprep.subr.mxu0 0.0
      %3883 = vmatpush2.msra.mxu0 0.0
      %3884 = vmatprep.subr.mxu0 0.0
      %3885 = vmatpush2.msra.mxu0 0.0
      %3886 = vmatprep.subr.mxu0 0.0
      %3887 = vmatpush2.msra.mxu0 0.0
      %3888 = vmatprep.subr.mxu0 0.0
      %3889 = vmatpush2.msra.mxu0 0.0
      %3890 = vmatprep.subr.mxu0 0.0
      %3891 = vmatpush2.msra.mxu0 0.0
      %3892 = vmatprep.subr.mxu0 0.0
      %3893 = vmatpush2.msra.mxu0 0.0
      %3894 = vmatprep.subr.mxu0 0.0
      %3895 = vmatpush2.msra.mxu0 0.0
      %3896 = vmatprep.subr.mxu0 0.0
      %3897 = vmatpush2.msra.mxu0 0.0
      %3898 = vmatprep.subr.mxu0 0.0
      %3899 = vmatpush2.msra.mxu0 0.0
      %3900 = vmatprep.subr.mxu0 0.0
      %3901 = vmatpush2.msra.mxu0 0.0
      %3902 = vmatprep.subr.mxu0 0.0
      %3903 = vmatpush2.msra.mxu0 0.0
      %3904 = vmatprep.subr.mxu0 0.0
      %3905 = vmatpush2.msra.mxu0 0.0
      %3906 = vmatprep.subr.mxu0 0.0
      %3907 = vmatpush2.msra.mxu0 0.0
      %3908 = vmatprep.subr.mxu0 0.0
      %3909 = vmatpush2.msra.mxu0 0.0
      %3910 = vmatprep.mubr.f32.mxu0 0.0
      %3911 = vmatmul.mubr.f32.gmra.mxu0 %v3844
      %v3912 = vpop.f32.mrf.mxu0
      %v3913 = vadd.f32 0.0, %v3912
      %v3914 = vpop.f32.mrf.mxu0
      %3915 = vdwg.mxu0
      %v3916 = vadd.f32 %v3616, %v3913
      %v3917 = vxor.u32 %v3916, 2147483648
      %v3918 = vmul.f32 %v3917, 1.442695
      %v3919 = vpow.pop %v3918
      %v3920 = vadd.f32 %v3919, 1.0
      %v3921 = vrcp.pop %v3920
      %v3922 = vmul.f32 1.0, %v3921
      %v3923 = vtanh.pop %v3916
      %v3924 = vmul.f32 %v3922, %v3834
      %3926 = vrot.lane.b32.xlu0 %v3923, 64
      %v3927 = vpop.permute.xlu0 %3926
      %v3929 = vmul.f32 %v3922, %v3927
      %3931 = vrot.lane.b32.xlu0 %v3929, 32
      %v3932 = vpop.permute.xlu0 %3931
      %v3934 = vadd.f32 %v3924, %v3932
      %v3935 = vtanh.pop %v3934
      %3937 = vrot.lane.b32.xlu0 %v3935, 64
      %v3938 = vpop.permute.xlu0 %3937
      %v3940 = vmul.f32 %v3922, %v3938
      %3942 = vrot.lane.b32.xlu0 %v3940, 32
      %v3943 = vpop.permute.xlu0 %3942
      %v3944 = vsel %vm661, %v3943, 0
      %3946 = vmatprep.subr.mxu0 0.0
      %3947 = vmatpush1.msra.mxu0 0.0
      %3948 = vmatprep.subr.mxu0 0.0
      %3949 = vmatpush1.msra.mxu0 0.0
      %3950 = vmatprep.subr.mxu0 0.0
      %3951 = vmatpush1.msra.mxu0 0.0
      %3952 = vmatprep.subr.mxu0 0.0
      %3953 = vmatpush1.msra.mxu0 0.0
      %3954 = vmatprep.subr.mxu0 0.0
      %3955 = vmatpush1.msra.mxu0 0.0
      %3956 = vmatprep.subr.mxu0 0.0
      %3957 = vmatpush1.msra.mxu0 0.0
      %3958 = vmatprep.subr.mxu0 0.0
      %3959 = vmatpush1.msra.mxu0 0.0
      %3960 = vmatprep.subr.mxu0 0.0
      %3961 = vmatpush1.msra.mxu0 0.0
      %3962 = vmatprep.subr.mxu0 0.0
      %3963 = vmatpush1.msra.mxu0 0.0
      %3964 = vmatprep.subr.mxu0 0.0
      %3965 = vmatpush1.msra.mxu0 0.0
      %3966 = vmatprep.subr.mxu0 0.0
      %3967 = vmatpush1.msra.mxu0 0.0
      %3968 = vmatprep.subr.mxu0 0.0
      %3969 = vmatpush1.msra.mxu0 0.0
      %3970 = vmatprep.subr.mxu0 0.0
      %3971 = vmatpush1.msra.mxu0 %v317
      %3972 = vmatprep.subr.mxu0 0.0
      %3973 = vmatpush1.msra.mxu0 %v316
      %3974 = vmatprep.subr.mxu0 0.0
      %3975 = vmatpush1.msra.mxu0 %v315
      %3976 = vmatprep.subr.mxu0 0.0
      %3977 = vmatpush1.msra.mxu0 %v314
      %3978 = vmatprep.subr.mxu0 0.0
      %3979 = vmatpush2.msra.mxu0 0.0
      %3980 = vmatprep.subr.mxu0 0.0
      %3981 = vmatpush2.msra.mxu0 0.0
      %3982 = vmatprep.subr.mxu0 0.0
      %3983 = vmatpush2.msra.mxu0 0.0
      %3984 = vmatprep.subr.mxu0 0.0
      %3985 = vmatpush2.msra.mxu0 0.0
      %3986 = vmatprep.subr.mxu0 0.0
      %3987 = vmatpush2.msra.mxu0 0.0
      %3988 = vmatprep.subr.mxu0 0.0
      %3989 = vmatpush2.msra.mxu0 0.0
      %3990 = vmatprep.subr.mxu0 0.0
      %3991 = vmatpush2.msra.mxu0 0.0
      %3992 = vmatprep.subr.mxu0 0.0
      %3993 = vmatpush2.msra.mxu0 0.0
      %3994 = vmatprep.subr.mxu0 0.0
      %3995 = vmatpush2.msra.mxu0 0.0
      %3996 = vmatprep.subr.mxu0 0.0
      %3997 = vmatpush2.msra.mxu0 0.0
      %3998 = vmatprep.subr.mxu0 0.0
      %3999 = vmatpush2.msra.mxu0 0.0
      %4000 = vmatprep.subr.mxu0 0.0
      %4001 = vmatpush2.msra.mxu0 0.0
      %4002 = vmatprep.subr.mxu0 0.0
      %4003 = vmatpush2.msra.mxu0 0.0
      %4004 = vmatprep.subr.mxu0 0.0
      %4005 = vmatpush2.msra.mxu0 0.0
      %4006 = vmatprep.subr.mxu0 0.0
      %4007 = vmatpush2.msra.mxu0 0.0
      %4008 = vmatprep.subr.mxu0 0.0
      %4009 = vmatpush2.msra.mxu0 0.0
      %4010 = vmatprep.mubr.f32.mxu0 0.0
      %4011 = vmatmul.mubr.f32.gmra.mxu0 %v3944
      %v4012 = vpop.f32.mrf.mxu0
      %v4013 = vadd.f32 0.0, %v4012
      %v4014 = vpop.f32.mrf.mxu0
      %4015 = vdwg.mxu0
      %v4016 = vadd.f32 %v3621, %v4013
      %v4017 = vxor.u32 %v4016, 2147483648
      %v4018 = vmul.f32 %v4017, 1.442695
      %v4019 = vpow.pop %v4018
      %v4020 = vadd.f32 %v4019, 1.0
      %v4021 = vrcp.pop %v4020
      %v4022 = vmul.f32 1.0, %v4021
      %v4023 = vtanh.pop %v4016
      %v4024 = vmul.f32 %v4022, %v3934
      %4026 = vrot.lane.b32.xlu0 %v4023, 64
      %v4027 = vpop.permute.xlu0 %4026
      %v4029 = vmul.f32 %v4022, %v4027
      %4031 = vrot.lane.b32.xlu0 %v4029, 32
      %v4032 = vpop.permute.xlu0 %4031
      %v4034 = vadd.f32 %v4024, %v4032
      %v4035 = vtanh.pop %v4034
      %4037 = vrot.lane.b32.xlu0 %v4035, 64
      %v4038 = vpop.permute.xlu0 %4037
      %v4040 = vmul.f32 %v4022, %v4038
      %4042 = vrot.lane.b32.xlu0 %v4040, 32
      %v4043 = vpop.permute.xlu0 %4042
      %v4044 = vsel %vm661, %v4043, 0
      %4046 = vmatprep.subr.mxu0 0.0
      %4047 = vmatpush1.msra.mxu0 0.0
      %4048 = vmatprep.subr.mxu0 0.0
      %4049 = vmatpush1.msra.mxu0 0.0
      %4050 = vmatprep.subr.mxu0 0.0
      %4051 = vmatpush1.msra.mxu0 0.0
      %4052 = vmatprep.subr.mxu0 0.0
      %4053 = vmatpush1.msra.mxu0 0.0
      %4054 = vmatprep.subr.mxu0 0.0
      %4055 = vmatpush1.msra.mxu0 0.0
      %4056 = vmatprep.subr.mxu0 0.0
      %4057 = vmatpush1.msra.mxu0 0.0
      %4058 = vmatprep.subr.mxu0 0.0
      %4059 = vmatpush1.msra.mxu0 0.0
      %4060 = vmatprep.subr.mxu0 0.0
      %4061 = vmatpush1.msra.mxu0 0.0
      %4062 = vmatprep.subr.mxu0 0.0
      %4063 = vmatpush1.msra.mxu0 0.0
      %4064 = vmatprep.subr.mxu0 0.0
      %4065 = vmatpush1.msra.mxu0 0.0
      %4066 = vmatprep.subr.mxu0 0.0
      %4067 = vmatpush1.msra.mxu0 0.0
      %4068 = vmatprep.subr.mxu0 0.0
      %4069 = vmatpush1.msra.mxu0 0.0
      %4070 = vmatprep.subr.mxu0 0.0
      %4071 = vmatpush1.msra.mxu0 %v317
      %4072 = vmatprep.subr.mxu0 0.0
      %4073 = vmatpush1.msra.mxu0 %v316
      %4074 = vmatprep.subr.mxu0 0.0
      %4075 = vmatpush1.msra.mxu0 %v315
      %4076 = vmatprep.subr.mxu0 0.0
      %4077 = vmatpush1.msra.mxu0 %v314
      %4078 = vmatprep.subr.mxu0 0.0
      %4079 = vmatpush2.msra.mxu0 0.0
      %4080 = vmatprep.subr.mxu0 0.0
      %4081 = vmatpush2.msra.mxu0 0.0
      %4082 = vmatprep.subr.mxu0 0.0
      %4083 = vmatpush2.msra.mxu0 0.0
      %4084 = vmatprep.subr.mxu0 0.0
      %4085 = vmatpush2.msra.mxu0 0.0
      %4086 = vmatprep.subr.mxu0 0.0
      %4087 = vmatpush2.msra.mxu0 0.0
      %4088 = vmatprep.subr.mxu0 0.0
      %4089 = vmatpush2.msra.mxu0 0.0
      %4090 = vmatprep.subr.mxu0 0.0
      %4091 = vmatpush2.msra.mxu0 0.0
      %4092 = vmatprep.subr.mxu0 0.0
      %4093 = vmatpush2.msra.mxu0 0.0
      %4094 = vmatprep.subr.mxu0 0.0
      %4095 = vmatpush2.msra.mxu0 0.0
      %4096 = vmatprep.subr.mxu0 0.0
      %4097 = vmatpush2.msra.mxu0 0.0
      %4098 = vmatprep.subr.mxu0 0.0
      %4099 = vmatpush2.msra.mxu0 0.0
      %4100 = vmatprep.subr.mxu0 0.0
      %4101 = vmatpush2.msra.mxu0 0.0
      %4102 = vmatprep.subr.mxu0 0.0
      %4103 = vmatpush2.msra.mxu0 0.0
      %4104 = vmatprep.subr.mxu0 0.0
      %4105 = vmatpush2.msra.mxu0 0.0
      %4106 = vmatprep.subr.mxu0 0.0
      %4107 = vmatpush2.msra.mxu0 0.0
      %4108 = vmatprep.subr.mxu0 0.0
      %4109 = vmatpush2.msra.mxu0 0.0
      %4110 = vmatprep.mubr.f32.mxu0 0.0
      %4111 = vmatmul.mubr.f32.gmra.mxu0 %v4044
      %v4112 = vpop.f32.mrf.mxu0
      %v4113 = vadd.f32 0.0, %v4112
      %v4114 = vpop.f32.mrf.mxu0
      %4115 = vdwg.mxu0
      %v4116 = vadd.f32 %v3626, %v4113
      %v4117 = vxor.u32 %v4116, 2147483648
      %v4118 = vmul.f32 %v4117, 1.442695
      %v4119 = vpow.pop %v4118
      %v4120 = vadd.f32 %v4119, 1.0
      %v4121 = vrcp.pop %v4120
      %v4122 = vmul.f32 1.0, %v4121
      %v4123 = vtanh.pop %v4116
      %v4124 = vmul.f32 %v4122, %v4034
      %4126 = vrot.lane.b32.xlu0 %v4123, 64
      %v4127 = vpop.permute.xlu0 %4126
      %v4129 = vmul.f32 %v4122, %v4127
      %4131 = vrot.lane.b32.xlu0 %v4129, 32
      %v4132 = vpop.permute.xlu0 %4131
      %v4134 = vadd.f32 %v4124, %v4132
      %v4135 = vtanh.pop %v4134
      %4137 = vrot.lane.b32.xlu0 %v4135, 64
      %v4138 = vpop.permute.xlu0 %4137
      %v4140 = vmul.f32 %v4122, %v4138
      %4142 = vrot.lane.b32.xlu0 %v4140, 32
      %v4143 = vpop.permute.xlu0 %4142
      %v4144 = vsel %vm661, %v4143, 0
      %4146 = vmatprep.subr.mxu0 0.0
      %4147 = vmatpush1.msra.mxu0 0.0
      %4148 = vmatprep.subr.mxu0 0.0
      %4149 = vmatpush1.msra.mxu0 0.0
      %4150 = vmatprep.subr.mxu0 0.0
      %4151 = vmatpush1.msra.mxu0 0.0
      %4152 = vmatprep.subr.mxu0 0.0
      %4153 = vmatpush1.msra.mxu0 0.0
      %4154 = vmatprep.subr.mxu0 0.0
      %4155 = vmatpush1.msra.mxu0 0.0
      %4156 = vmatprep.subr.mxu0 0.0
      %4157 = vmatpush1.msra.mxu0 0.0
      %4158 = vmatprep.subr.mxu0 0.0
      %4159 = vmatpush1.msra.mxu0 0.0
      %4160 = vmatprep.subr.mxu0 0.0
      %4161 = vmatpush1.msra.mxu0 0.0
      %4162 = vmatprep.subr.mxu0 0.0
      %4163 = vmatpush1.msra.mxu0 0.0
      %4164 = vmatprep.subr.mxu0 0.0
      %4165 = vmatpush1.msra.mxu0 0.0
      %4166 = vmatprep.subr.mxu0 0.0
      %4167 = vmatpush1.msra.mxu0 0.0
      %4168 = vmatprep.subr.mxu0 0.0
      %4169 = vmatpush1.msra.mxu0 0.0
      %4170 = vmatprep.subr.mxu0 0.0
      %4171 = vmatpush1.msra.mxu0 %v317
      %4172 = vmatprep.subr.mxu0 0.0
      %4173 = vmatpush1.msra.mxu0 %v316
      %4174 = vmatprep.subr.mxu0 0.0
      %4175 = vmatpush1.msra.mxu0 %v315
      %4176 = vmatprep.subr.mxu0 0.0
      %4177 = vmatpush1.msra.mxu0 %v314
      %4178 = vmatprep.subr.mxu0 0.0
      %4179 = vmatpush2.msra.mxu0 0.0
      %4180 = vmatprep.subr.mxu0 0.0
      %4181 = vmatpush2.msra.mxu0 0.0
      %4182 = vmatprep.subr.mxu0 0.0
      %4183 = vmatpush2.msra.mxu0 0.0
      %4184 = vmatprep.subr.mxu0 0.0
      %4185 = vmatpush2.msra.mxu0 0.0
      %4186 = vmatprep.subr.mxu0 0.0
      %4187 = vmatpush2.msra.mxu0 0.0
      %4188 = vmatprep.subr.mxu0 0.0
      %4189 = vmatpush2.msra.mxu0 0.0
      %4190 = vmatprep.subr.mxu0 0.0
      %4191 = vmatpush2.msra.mxu0 0.0
      %4192 = vmatprep.subr.mxu0 0.0
      %4193 = vmatpush2.msra.mxu0 0.0
      %4194 = vmatprep.subr.mxu0 0.0
      %4195 = vmatpush2.msra.mxu0 0.0
      %4196 = vmatprep.subr.mxu0 0.0
      %4197 = vmatpush2.msra.mxu0 0.0
      %4198 = vmatprep.subr.mxu0 0.0
      %4199 = vmatpush2.msra.mxu0 0.0
      %4200 = vmatprep.subr.mxu0 0.0
      %4201 = vmatpush2.msra.mxu0 0.0
      %4202 = vmatprep.subr.mxu0 0.0
      %4203 = vmatpush2.msra.mxu0 0.0
      %4204 = vmatprep.subr.mxu0 0.0
      %4205 = vmatpush2.msra.mxu0 0.0
      %4206 = vmatprep.subr.mxu0 0.0
      %4207 = vmatpush2.msra.mxu0 0.0
      %4208 = vmatprep.subr.mxu0 0.0
      %4209 = vmatpush2.msra.mxu0 0.0
      %4210 = vmatprep.mubr.f32.mxu0 0.0
      %4211 = vmatmul.mubr.f32.gmra.mxu0 %v4144
      %v4212 = vpop.f32.mrf.mxu0
      %v4213 = vadd.f32 0.0, %v4212
      %v4214 = vpop.f32.mrf.mxu0
      %4215 = vdwg.mxu0
      %v4216 = vadd.f32 %v3631, %v4213
      %v4217 = vxor.u32 %v4216, 2147483648
      %v4218 = vmul.f32 %v4217, 1.442695
      %v4219 = vpow.pop %v4218
      %v4220 = vadd.f32 %v4219, 1.0
      %v4221 = vrcp.pop %v4220
      %v4222 = vmul.f32 1.0, %v4221
      %v4223 = vtanh.pop %v4216
      %v4224 = vmul.f32 %v4222, %v4134
      %4226 = vrot.lane.b32.xlu0 %v4223, 64
      %v4227 = vpop.permute.xlu0 %4226
      %v4229 = vmul.f32 %v4222, %v4227
      %4231 = vrot.lane.b32.xlu0 %v4229, 32
      %v4232 = vpop.permute.xlu0 %4231
      %v4234 = vadd.f32 %v4224, %v4232
      %v4235 = vtanh.pop %v4234
      %4237 = vrot.lane.b32.xlu0 %v4235, 64
      %v4238 = vpop.permute.xlu0 %4237
      %v4240 = vmul.f32 %v4222, %v4238
      %4242 = vrot.lane.b32.xlu0 %v4240, 32
      %v4243 = vpop.permute.xlu0 %4242
      %v4244 = vsel %vm661, %v4243, 0
      %4246 = vmatprep.subr.mxu0 0.0
      %4247 = vmatpush1.msra.mxu0 0.0
      %4248 = vmatprep.subr.mxu0 0.0
      %4249 = vmatpush1.msra.mxu0 0.0
      %4250 = vmatprep.subr.mxu0 0.0
      %4251 = vmatpush1.msra.mxu0 0.0
      %4252 = vmatprep.subr.mxu0 0.0
      %4253 = vmatpush1.msra.mxu0 0.0
      %4254 = vmatprep.subr.mxu0 0.0
      %4255 = vmatpush1.msra.mxu0 0.0
      %4256 = vmatprep.subr.mxu0 0.0
      %4257 = vmatpush1.msra.mxu0 0.0
      %4258 = vmatprep.subr.mxu0 0.0
      %4259 = vmatpush1.msra.mxu0 0.0
      %4260 = vmatprep.subr.mxu0 0.0
      %4261 = vmatpush1.msra.mxu0 0.0
      %4262 = vmatprep.subr.mxu0 0.0
      %4263 = vmatpush1.msra.mxu0 0.0
      %4264 = vmatprep.subr.mxu0 0.0
      %4265 = vmatpush1.msra.mxu0 0.0
      %4266 = vmatprep.subr.mxu0 0.0
      %4267 = vmatpush1.msra.mxu0 0.0
      %4268 = vmatprep.subr.mxu0 0.0
      %4269 = vmatpush1.msra.mxu0 0.0
      %4270 = vmatprep.subr.mxu0 0.0
      %4271 = vmatpush1.msra.mxu0 %v317
      %4272 = vmatprep.subr.mxu0 0.0
      %4273 = vmatpush1.msra.mxu0 %v316
      %4274 = vmatprep.subr.mxu0 0.0
      %4275 = vmatpush1.msra.mxu0 %v315
      %4276 = vmatprep.subr.mxu0 0.0
      %4277 = vmatpush1.msra.mxu0 %v314
      %4278 = vmatprep.subr.mxu0 0.0
      %4279 = vmatpush2.msra.mxu0 0.0
      %4280 = vmatprep.subr.mxu0 0.0
      %4281 = vmatpush2.msra.mxu0 0.0
      %4282 = vmatprep.subr.mxu0 0.0
      %4283 = vmatpush2.msra.mxu0 0.0
      %4284 = vmatprep.subr.mxu0 0.0
      %4285 = vmatpush2.msra.mxu0 0.0
      %4286 = vmatprep.subr.mxu0 0.0
      %4287 = vmatpush2.msra.mxu0 0.0
      %4288 = vmatprep.subr.mxu0 0.0
      %4289 = vmatpush2.msra.mxu0 0.0
      %4290 = vmatprep.subr.mxu0 0.0
      %4291 = vmatpush2.msra.mxu0 0.0
      %4292 = vmatprep.subr.mxu0 0.0
      %4293 = vmatpush2.msra.mxu0 0.0
      %4294 = vmatprep.subr.mxu0 0.0
      %4295 = vmatpush2.msra.mxu0 0.0
      %4296 = vmatprep.subr.mxu0 0.0
      %4297 = vmatpush2.msra.mxu0 0.0
      %4298 = vmatprep.subr.mxu0 0.0
      %4299 = vmatpush2.msra.mxu0 0.0
      %4300 = vmatprep.subr.mxu0 0.0
      %4301 = vmatpush2.msra.mxu0 0.0
      %4302 = vmatprep.subr.mxu0 0.0
      %4303 = vmatpush2.msra.mxu0 0.0
      %4304 = vmatprep.subr.mxu0 0.0
      %4305 = vmatpush2.msra.mxu0 0.0
      %4306 = vmatprep.subr.mxu0 0.0
      %4307 = vmatpush2.msra.mxu0 0.0
      %4308 = vmatprep.subr.mxu0 0.0
      %4309 = vmatpush2.msra.mxu0 0.0
      %4310 = vmatprep.mubr.f32.mxu0 0.0
      %4311 = vmatmul.mubr.f32.gmra.mxu0 %v4244
      %v4312 = vpop.f32.mrf.mxu0
      %v4313 = vadd.f32 0.0, %v4312
      %v4314 = vpop.f32.mrf.mxu0
      %4315 = vdwg.mxu0
      %v4316 = vadd.f32 %v3636, %v4313
      %v4317 = vxor.u32 %v4316, 2147483648
      %v4318 = vmul.f32 %v4317, 1.442695
      %v4319 = vpow.pop %v4318
      %v4320 = vadd.f32 %v4319, 1.0
      %v4321 = vrcp.pop %v4320
      %v4322 = vmul.f32 1.0, %v4321
      %v4323 = vtanh.pop %v4316
      %v4324 = vmul.f32 %v4322, %v4234
      %4326 = vrot.lane.b32.xlu0 %v4323, 64
      %v4327 = vpop.permute.xlu0 %4326
      %v4329 = vmul.f32 %v4322, %v4327
      %4331 = vrot.lane.b32.xlu0 %v4329, 32
      %v4332 = vpop.permute.xlu0 %4331
      %v4334 = vadd.f32 %v4324, %v4332
      %v4335 = vtanh.pop %v4334
      %4337 = vrot.lane.b32.xlu0 %v4335, 64
      %v4338 = vpop.permute.xlu0 %4337
      %v4340 = vmul.f32 %v4322, %v4338
      %4342 = vrot.lane.b32.xlu0 %v4340, 32
      %v4343 = vpop.permute.xlu0 %4342
      %v4344 = vsel %vm661, %v4343, 0
      %4346 = vmatprep.subr.mxu0 0.0
      %4347 = vmatpush1.msra.mxu0 0.0
      %4348 = vmatprep.subr.mxu0 0.0
      %4349 = vmatpush1.msra.mxu0 0.0
      %4350 = vmatprep.subr.mxu0 0.0
      %4351 = vmatpush1.msra.mxu0 0.0
      %4352 = vmatprep.subr.mxu0 0.0
      %4353 = vmatpush1.msra.mxu0 0.0
      %4354 = vmatprep.subr.mxu0 0.0
      %4355 = vmatpush1.msra.mxu0 0.0
      %4356 = vmatprep.subr.mxu0 0.0
      %4357 = vmatpush1.msra.mxu0 0.0
      %4358 = vmatprep.subr.mxu0 0.0
      %4359 = vmatpush1.msra.mxu0 0.0
      %4360 = vmatprep.subr.mxu0 0.0
      %4361 = vmatpush1.msra.mxu0 0.0
      %4362 = vmatprep.subr.mxu0 0.0
      %4363 = vmatpush1.msra.mxu0 0.0
      %4364 = vmatprep.subr.mxu0 0.0
      %4365 = vmatpush1.msra.mxu0 0.0
      %4366 = vmatprep.subr.mxu0 0.0
      %4367 = vmatpush1.msra.mxu0 0.0
      %4368 = vmatprep.subr.mxu0 0.0
      %4369 = vmatpush1.msra.mxu0 0.0
      %4370 = vmatprep.subr.mxu0 0.0
      %4371 = vmatpush1.msra.mxu0 %v317
      %4372 = vmatprep.subr.mxu0 0.0
      %4373 = vmatpush1.msra.mxu0 %v316
      %4374 = vmatprep.subr.mxu0 0.0
      %4375 = vmatpush1.msra.mxu0 %v315
      %4376 = vmatprep.subr.mxu0 0.0
      %4377 = vmatpush1.msra.mxu0 %v314
      %4378 = vmatprep.subr.mxu0 0.0
      %4379 = vmatpush2.msra.mxu0 0.0
      %4380 = vmatprep.subr.mxu0 0.0
      %4381 = vmatpush2.msra.mxu0 0.0
      %4382 = vmatprep.subr.mxu0 0.0
      %4383 = vmatpush2.msra.mxu0 0.0
      %4384 = vmatprep.subr.mxu0 0.0
      %4385 = vmatpush2.msra.mxu0 0.0
      %4386 = vmatprep.subr.mxu0 0.0
      %4387 = vmatpush2.msra.mxu0 0.0
      %4388 = vmatprep.subr.mxu0 0.0
      %4389 = vmatpush2.msra.mxu0 0.0
      %4390 = vmatprep.subr.mxu0 0.0
      %4391 = vmatpush2.msra.mxu0 0.0
      %4392 = vmatprep.subr.mxu0 0.0
      %4393 = vmatpush2.msra.mxu0 0.0
      %4394 = vmatprep.subr.mxu0 0.0
      %4395 = vmatpush2.msra.mxu0 0.0
      %4396 = vmatprep.subr.mxu0 0.0
      %4397 = vmatpush2.msra.mxu0 0.0
      %4398 = vmatprep.subr.mxu0 0.0
      %4399 = vmatpush2.msra.mxu0 0.0
      %4400 = vmatprep.subr.mxu0 0.0
      %4401 = vmatpush2.msra.mxu0 0.0
      %4402 = vmatprep.subr.mxu0 0.0
      %4403 = vmatpush2.msra.mxu0 0.0
      %4404 = vmatprep.subr.mxu0 0.0
      %4405 = vmatpush2.msra.mxu0 0.0
      %4406 = vmatprep.subr.mxu0 0.0
      %4407 = vmatpush2.msra.mxu0 0.0
      %4408 = vmatprep.subr.mxu0 0.0
      %4409 = vmatpush2.msra.mxu0 0.0
      %4410 = vmatprep.mubr.f32.mxu0 0.0
      %4411 = vmatmul.mubr.f32.gmra.mxu0 %v4344
      %v4412 = vpop.f32.mrf.mxu0
      %v4413 = vadd.f32 0.0, %v4412
      %v4414 = vpop.f32.mrf.mxu0
      %4415 = vdwg.mxu0
      %v4416 = vadd.f32 %v3641, %v4413
      %v4417 = vxor.u32 %v4416, 2147483648
      %v4418 = vmul.f32 %v4417, 1.442695
      %v4419 = vpow.pop %v4418
      %v4420 = vadd.f32 %v4419, 1.0
      %v4421 = vrcp.pop %v4420
      %v4422 = vmul.f32 1.0, %v4421
      %v4423 = vtanh.pop %v4416
      %v4424 = vmul.f32 %v4422, %v4334
      %4426 = vrot.lane.b32.xlu0 %v4423, 64
      %v4427 = vpop.permute.xlu0 %4426
      %v4429 = vmul.f32 %v4422, %v4427
      %4431 = vrot.lane.b32.xlu0 %v4429, 32
      %v4432 = vpop.permute.xlu0 %4431
      %v4434 = vadd.f32 %v4424, %v4432
      %v4435 = vtanh.pop %v4434
      %4437 = vrot.lane.b32.xlu0 %v4435, 64
      %v4438 = vpop.permute.xlu0 %4437
      %v4440 = vmul.f32 %v4422, %v4438
      %v4441 = vlaneseq
      %v4442 = vshrl.u32 %v4441, 7
      %v4443 = vsub.s32 0, %v4442
      %v4444 = vrot.slane %v322, %v4443
      %4446 = vrot.lane.b32.xlu0 %v4440, 32
      %v4447 = vpop.permute.xlu0 %4446
      %v4448 = vsel %vm661, %v4447, 0
      %4450 = vmatprep.subr.mxu0 0.0
      %4451 = vmatpush1.msra.mxu0 0.0
      %4452 = vmatprep.subr.mxu0 0.0
      %4453 = vmatpush1.msra.mxu0 0.0
      %4454 = vmatprep.subr.mxu0 0.0
      %4455 = vmatpush1.msra.mxu0 0.0
      %4456 = vmatprep.subr.mxu0 0.0
      %4457 = vmatpush1.msra.mxu0 0.0
      %4458 = vmatprep.subr.mxu0 0.0
      %4459 = vmatpush1.msra.mxu0 0.0
      %4460 = vmatprep.subr.mxu0 0.0
      %4461 = vmatpush1.msra.mxu0 0.0
      %4462 = vmatprep.subr.mxu0 0.0
      %4463 = vmatpush1.msra.mxu0 0.0
      %4464 = vmatprep.subr.mxu0 0.0
      %4465 = vmatpush1.msra.mxu0 0.0
      %4466 = vmatprep.subr.mxu0 0.0
      %4467 = vmatpush1.msra.mxu0 0.0
      %4468 = vmatprep.subr.mxu0 0.0
      %4469 = vmatpush1.msra.mxu0 0.0
      %4470 = vmatprep.subr.mxu0 0.0
      %4471 = vmatpush1.msra.mxu0 0.0
      %4472 = vmatprep.subr.mxu0 0.0
      %4473 = vmatpush1.msra.mxu0 0.0
      %4474 = vmatprep.subr.mxu0 0.0
      %4475 = vmatpush1.msra.mxu0 %v321
      %4476 = vmatprep.subr.mxu0 0.0
      %4477 = vmatpush1.msra.mxu0 %v320
      %4478 = vmatprep.subr.mxu0 0.0
      %4479 = vmatpush1.msra.mxu0 %v319
      %4480 = vmatprep.subr.mxu0 0.0
      %4481 = vmatpush1.msra.mxu0 %v318
      %4482 = vmatprep.subr.mxu0 0.0
      %4483 = vmatpush2.msra.mxu0 0.0
      %4484 = vmatprep.subr.mxu0 0.0
      %4485 = vmatpush2.msra.mxu0 0.0
      %4486 = vmatprep.subr.mxu0 0.0
      %4487 = vmatpush2.msra.mxu0 0.0
      %4488 = vmatprep.subr.mxu0 0.0
      %4489 = vmatpush2.msra.mxu0 0.0
      %4490 = vmatprep.subr.mxu0 0.0
      %4491 = vmatpush2.msra.mxu0 0.0
      %4492 = vmatprep.subr.mxu0 0.0
      %4493 = vmatpush2.msra.mxu0 0.0
      %4494 = vmatprep.subr.mxu0 0.0
      %4495 = vmatpush2.msra.mxu0 0.0
      %4496 = vmatprep.subr.mxu0 0.0
      %4497 = vmatpush2.msra.mxu0 0.0
      %4498 = vmatprep.subr.mxu0 0.0
      %4499 = vmatpush2.msra.mxu0 0.0
      %4500 = vmatprep.subr.mxu0 0.0
      %4501 = vmatpush2.msra.mxu0 0.0
      %4502 = vmatprep.subr.mxu0 0.0
      %4503 = vmatpush2.msra.mxu0 0.0
      %4504 = vmatprep.subr.mxu0 0.0
      %4505 = vmatpush2.msra.mxu0 0.0
      %4506 = vmatprep.subr.mxu0 0.0
      %4507 = vmatpush2.msra.mxu0 0.0
      %4508 = vmatprep.subr.mxu0 0.0
      %4509 = vmatpush2.msra.mxu0 0.0
      %4510 = vmatprep.subr.mxu0 0.0
      %4511 = vmatpush2.msra.mxu0 0.0
      %4512 = vmatprep.subr.mxu0 0.0
      %4513 = vmatpush2.msra.mxu0 0.0
      %4514 = vmatprep.mubr.f32.mxu0 0.0
      %4515 = vmatmul.mubr.f32.gmra.mxu0 %v3744
      %v4516 = vpop.f32.mrf.mxu0
      %v4517 = vadd.f32 %v4444, %v4516
      %v4518 = vpop.f32.mrf.mxu0
      %4519 = vmatprep.mubr.f32.mxu0 0.0
      %4520 = vmatmul.mubr.f32.gmra.mxu0 %v3844
      %v4521 = vpop.f32.mrf.mxu0
      %v4522 = vadd.f32 %v4444, %v4521
      %v4523 = vpop.f32.mrf.mxu0
      %4524 = vmatprep.mubr.f32.mxu0 0.0
      %4525 = vmatmul.mubr.f32.gmra.mxu0 %v3944
      %v4526 = vpop.f32.mrf.mxu0
      %v4527 = vadd.f32 %v4444, %v4526
      %v4528 = vpop.f32.mrf.mxu0
      %4529 = vmatprep.mubr.f32.mxu0 0.0
      %4530 = vmatmul.mubr.f32.gmra.mxu0 %v4044
      %v4531 = vpop.f32.mrf.mxu0
      %v4532 = vadd.f32 %v4444, %v4531
      %v4533 = vpop.f32.mrf.mxu0
      %4534 = vmatprep.mubr.f32.mxu0 0.0
      %4535 = vmatmul.mubr.f32.gmra.mxu0 %v4144
      %v4536 = vpop.f32.mrf.mxu0
      %v4537 = vadd.f32 %v4444, %v4536
      %v4538 = vpop.f32.mrf.mxu0
      %4539 = vmatprep.mubr.f32.mxu0 0.0
      %4540 = vmatmul.mubr.f32.gmra.mxu0 %v4244
      %v4541 = vpop.f32.mrf.mxu0
      %v4542 = vadd.f32 %v4444, %v4541
      %v4543 = vpop.f32.mrf.mxu0
      %4544 = vmatprep.mubr.f32.mxu0 0.0
      %4545 = vmatmul.mubr.f32.gmra.mxu0 %v4344
      %v4546 = vpop.f32.mrf.mxu0
      %v4547 = vadd.f32 %v4444, %v4546
      %v4548 = vpop.f32.mrf.mxu0
      %4549 = vmatprep.mubr.f32.mxu0 0.0
      %4550 = vmatmul.mubr.f32.gmra.mxu0 %v4448
      %v4551 = vpop.f32.mrf.mxu0
      %v4552 = vadd.f32 %v4444, %v4551
      %v4553 = vpop.f32.mrf.mxu0
      %4554 = vdwg.mxu0
      %4555 = vmax.xlane.f32.xlu0 %v4517
      %v4556 = vpop.xlane.xlu0 %4555
      %4557 = vmax.xlane.f32.xlu0 %v4522
      %v4558 = vpop.xlane.xlu0 %4557
      %4559 = vmax.xlane.f32.xlu0 %v4527
      %v4560 = vpop.xlane.xlu0 %4559
      %4561 = vmax.xlane.f32.xlu0 %v4532
      %v4562 = vpop.xlane.xlu0 %4561
      %4563 = vmax.xlane.f32.xlu0 %v4537
      %v4564 = vpop.xlane.xlu0 %4563
      %4565 = vmax.xlane.f32.xlu0 %v4542
      %v4566 = vpop.xlane.xlu0 %4565
      %4567 = vmax.xlane.f32.xlu0 %v4547
      %v4568 = vpop.xlane.xlu0 %4567
      %4569 = vmax.xlane.f32.xlu0 %v4552
      %v4570 = vpop.xlane.xlu0 %4569
      %v4571 = vsub.f32 %v4517, %v4556
      %v4572 = vsub.f32 %v4522, %v4558
      %v4573 = vsub.f32 %v4527, %v4560
      %v4574 = vsub.f32 %v4532, %v4562
      %v4575 = vsub.f32 %v4537, %v4564
      %v4576 = vsub.f32 %v4542, %v4566
      %v4577 = vsub.f32 %v4547, %v4568
      %v4578 = vsub.f32 %v4552, %v4570
      %v4579 = vmul.f32 %v4571, 1.442695
      %v4580 = vpow.pop %v4579
      %v4581 = vmul.f32 %v4572, 1.442695
      %v4582 = vpow.pop %v4581
      %v4583 = vmul.f32 %v4573, 1.442695
      %v4584 = vpow.pop %v4583
      %v4585 = vmul.f32 %v4574, 1.442695
      %v4586 = vpow.pop %v4585
      %v4587 = vmul.f32 %v4575, 1.442695
      %v4588 = vpow.pop %v4587
      %v4589 = vmul.f32 %v4576, 1.442695
      %v4590 = vpow.pop %v4589
      %v4591 = vmul.f32 %v4577, 1.442695
      %v4592 = vpow.pop %v4591
      %v4593 = vmul.f32 %v4578, 1.442695
      %v4594 = vpow.pop %v4593
      %4595 = vadd.xlane.f32.xlu0 %v4580
      %v4596 = vpop.xlane.xlu0 %4595
      %4597 = vadd.xlane.f32.xlu0 %v4582
      %v4598 = vpop.xlane.xlu0 %4597
      %4599 = vadd.xlane.f32.xlu0 %v4584
      %v4600 = vpop.xlane.xlu0 %4599
      %4601 = vadd.xlane.f32.xlu0 %v4586
      %v4602 = vpop.xlane.xlu0 %4601
      %4603 = vadd.xlane.f32.xlu0 %v4588
      %v4604 = vpop.xlane.xlu0 %4603
      %4605 = vadd.xlane.f32.xlu0 %v4590
      %v4606 = vpop.xlane.xlu0 %4605
      %4607 = vadd.xlane.f32.xlu0 %v4592
      %v4608 = vpop.xlane.xlu0 %4607
      %4609 = vadd.xlane.f32.xlu0 %v4594
      %v4610 = vpop.xlane.xlu0 %4609
      %v4611 = vlog2.pop %v4596
      %v4612 = vmul.f32 %v4611, 0.6931472
      %v4613 = vlog2.pop %v4598
      %v4614 = vmul.f32 %v4613, 0.6931472
      %v4615 = vlog2.pop %v4600
      %v4616 = vmul.f32 %v4615, 0.6931472
      %v4617 = vlog2.pop %v4602
      %v4618 = vmul.f32 %v4617, 0.6931472
      %v4619 = vlog2.pop %v4604
      %v4620 = vmul.f32 %v4619, 0.6931472
      %v4621 = vlog2.pop %v4606
      %v4622 = vmul.f32 %v4621, 0.6931472
      %v4623 = vlog2.pop %v4608
      %v4624 = vmul.f32 %v4623, 0.6931472
      %v4625 = vlog2.pop %v4610
      %v4626 = vmul.f32 %v4625, 0.6931472
      %v4627 = vsub.f32 %v4571, %v4612
      %v4628 = vsub.f32 %v4572, %v4614
      %v4629 = vsub.f32 %v4573, %v4616
      %v4630 = vsub.f32 %v4574, %v4618
      %v4631 = vsub.f32 %v4575, %v4620
      %v4632 = vsub.f32 %v4576, %v4622
      %v4633 = vsub.f32 %v4577, %v4624
      %v4634 = vsub.f32 %v4578, %v4626
      %4635 = vst [vmem:[%s297] sm:$0xff] %v4627
      %4636 = vst [vmem:[%s297 + $0x8] sm:$0xff] %v4628
      %4637 = vst [vmem:[%s297 + $0x10] sm:$0xff] %v4629
      %4638 = vst [vmem:[%s297 + $0x18] sm:$0xff] %v4630
      %4639 = vst [vmem:[%s297 + $0x20] sm:$0xff] %v4631
      %4640 = vst [vmem:[%s297 + $0x28] sm:$0xff] %v4632
      %4641 = vst [vmem:[%s297 + $0x30] sm:$0xff] %v4633
      %4642 = vst [vmem:[%s297 + $0x38] sm:$0xff] %v4634
      %s4643 = smul.u32 8, %s17
      %p4644 = scmp.lt.s32.totalorder %s4643, 15
      %s4645 = scalar_select %p4644, %s4643, 15
      %s4646 = smul.addr %s4645, 8
      %s4647 = scalar_lea.vmem %s6, %s4646
      // Predicated region
      $region45: #{_lambda_.1} parent=43 // pred_check
        %p4648 = pneg %p176
      $region46: #{_lambda_.1} parent=43 // pred_check_branch
        %4650 = sbr.rel (%p4648) target = $region48
      $region47: #{_lambda_.1} parent=43 // pred_region
        %s4651 = smul.u32 8, %s17
      $region48: #{_lambda_.1} parent=43 // pred_fallthru
        _
    $region44: #{_lambda_.1} parent=5 // pred_fallthru
      _
    %p4652 = scmp.le.s32.totalorder 2, %s12
    // Predicated region
    $region49: #{_lambda_.1} parent=5 // pred_check
      %p4653 = pneg %p4652
    $region50: #{_lambda_.1} parent=5 // pred_check_branch
      %4655 = sbr.rel (%p4653) target = $region52
    $region51: #{_lambda_.1} parent=5 // pred_region
      %s4656 = ssub.s32 %s12, 2
      // Predicated region
      $region53: #{_lambda_.1} parent=51 // pred_check
        %p4657 = pneg %p182
      $region54: #{_lambda_.1} parent=51 // pred_check_branch
        %4659 = sbr.rel (%p4657) target = $region56
      $region55: #{_lambda_.1} parent=51 // pred_region
        %s4660 = smul.u32 8, %s18
        %p4661 = scmp.lt.s32.totalorder %s4660, 15
        %s4662 = scalar_select %p4661, %s4660, 15
        %s4663 = smul.addr %s4662, 8
        %s4664 = scalar_lea.vmem %s6, %s4663
      $region56: #{_lambda_.1} parent=51 // pred_fallthru
        _
    $region52: #{_lambda_.1} parent=5 // pred_fallthru
      _
  $region6: #{_lambda_.1} parent=0 // loop_footer
    %s16 = sadd.s32 1, %s12
  $region7: #{_lambda_.1} parent=0 // loop_footer_branch
    %11 = sbr.rel target = $region3
  $region8: #{_lambda_.1} parent=0 // loop_exit
    _

</llo_original>
